<compile_context>
chip_gen: v6e
topology: v6e:2x2x1
jax: 0.10.0
libtpu: 0.0.40
codegen_flags: <defaults>
</compile_context>

<pallas_src>
import jax
import jax.numpy as jnp
from jax import lax
from jax.experimental import pallas as pl
from jax.experimental.pallas import tpu as pltpu


# ----------------------------------------------------------------------------
# Pallas kernel
# ----------------------------------------------------------------------------
def make_pm25_kernel(num_layers: int, hidden_size: int, seq_len: int,
                     batch_tile: int, hidden_pad: int):
    H = hidden_size
    L = num_layers
    T = seq_len
    Bt = batch_tile
    Hp = hidden_pad
    full_width_gates = (4 * H) <= 128          # one vreg -> 1 sigmoid + 1 tanh push
    unroll = True if T <= 16 else min(8, T)    # full unroll only for small T

    def kernel(*refs):
        # refs: x, [w_ih_l, w_hh_l, b_l] * L, w_fc, b_fc, out, gx_scr, hseq_scr
        x_ref = refs[0]                        # (Bt, T, I)   f32, natural layout
        layer_refs = refs[1:1 + 3 * L]
        w_fc_ref = refs[1 + 3 * L]             # (H, Op)      f32
        b_fc_ref = refs[2 + 3 * L]             # (1, Op)      f32
        out_ref = refs[3 + 3 * L]              # (Bt, Op)     f32
        gx_scr = refs[4 + 3 * L]               # (T*Bt, 4H)   f32, precomputed input gates
        hseq_scr = refs[5 + 3 * L]             # (T*Bt, Hp)   f32, lane-dense layer output

        # hoisted zero pad for lane-dense h stores (JAX does not CSE broadcasts)
        zpad = jnp.zeros((Bt, Hp - H), jnp.float32) if Hp != H else None

        h_last = None
        for l in range(L):
            w_ih_ref = layer_refs[3 * l]       # (I, 4H) or (Hp, 4H)   bf16
            w_hh_ref = layer_refs[3 * l + 1]   # (H, 4H)               bf16
            b = layer_refs[3 * l + 2][...]     # (1, 4H)  f32  (b_ih + b_hh), hoisted

            # ---- input projection for ALL timesteps (bf16 MXU, f32 accum) ----
            if l == 0:
                # K = input_size is tiny: T small independent matmuls straight
                # from the natural (Bt, T, I) layout (no wrapper transpose).
                for t in range(T):
                    x_t = x_ref[:, t, :].astype(jnp.bfloat16)          # (Bt, I)
                    gx_scr[pl.ds(t * Bt, Bt), :] = (
                        jnp.dot(x_t, w_ih_ref[...],
                                preferred_element_type=jnp.float32) + b
                    )
            else:
                in_seq = hseq_scr[...].astype(jnp.bfloat16)            # (T*Bt, Hp)
                gx_scr[...] = (
                    jnp.dot(in_seq, w_ih_ref[...],
                            preferred_element_type=jnp.float32) + b
                )

            h0 = jnp.zeros((Bt, H), jnp.float32)
            c0 = jnp.zeros((Bt, H), jnp.float32)
            is_last_layer = (l == L - 1)

            # ---- sequential recurrence: only h_prev @ W_hh + gx[t] -----------
            def step(t, carry, _is_last=is_last_layer, _w_hh_ref=w_hh_ref):
                h_prev, c_prev = carry          # (Bt, H) f32 each
                start = pl.multiple_of(t * Bt, Bt)
                # MXU fed from VMEM (W_hh not hoisted into vregs), bf16 operands
                gates = gx_scr[pl.ds(start, Bt), :] + jnp.dot(
                    h_prev.astype(jnp.bfloat16), _w_hh_ref[...],
                    preferred_element_type=jnp.float32,
                )  # (Bt, 4H), PyTorch gate order: i, f, g, o

                if full_width_gates:
                    sig = jax.nn.sigmoid(gates)
                    th = jnp.tanh(gates)
                    i_g = sig[:, 0 * H:1 * H]
                    f_g = sig[:, 1 * H:2 * H]
                    g_g = th[:, 2 * H:3 * H]
                    o_g = sig[:, 3 * H:4 * H]
                else:
                    i_g = jax.nn.sigmoid(gates[:, 0 * H:1 * H])
                    f_g = jax.nn.sigmoid(gates[:, 1 * H:2 * H])
                    g_g = jnp.tanh(gates[:, 2 * H:3 * H])
                    o_g = jax.nn.sigmoid(gates[:, 3 * H:4 * H])

                c_new = f_g * c_prev + i_g * g_g
                h_new = o_g * jnp.tanh(c_new)

                if not _is_last:  # feed the next layer's input projection
                    h_store = h_new
                    if zpad is not None:
                        h_store = jnp.concatenate([h_new, zpad], axis=-1)
                    hseq_scr[pl.ds(start, Bt), :] = h_store   # unmasked 128-lane store
                return (h_new, c_new)

            h_last, _ = lax.fori_loop(0, T, step, (h0, c0), unroll=unroll)

        # fc(out[:, -1, :]) == h_T of the last layer; f32, lane-dense padded output
        out_ref[...] = (
            jnp.dot(h_last, w_fc_ref[...], preferred_element_type=jnp.float32)
            + b_fc_ref[...]
        )

    return kernel


# ----------------------------------------------------------------------------
# Wrapper: parameter plumbing + pallas_call (batch-tiled grid)
# ----------------------------------------------------------------------------
def pm25_predict(x, params, *, hidden_size, num_layers, output_size):
    """x: (B, T, I) float32 (batch_first, like the PyTorch module)."""
    B, T, I = x.shape
    H = hidden_size
    L = num_layers
    O = output_size

    Hp = ((H + 127) // 128) * 128    # lane-dense hidden-sequence scratch
    Op = ((O + 127) // 128) * 128    # lane-dense FC output

    # Batch tiling: one tile per <=256 rows; parallel grid axis uses v7x's 2nd core
    if B <= 256:
        Bp = ((B + 7) // 8) * 8
        Bt = Bp
    else:
        Bt = 256
        Bp = ((B + Bt - 1) // Bt) * Bt
    num_tiles = Bp // Bt

    xf = x.astype(jnp.float32)
    if Bp != B:
        xf = jnp.pad(xf, ((0, Bp - B), (0, 0), (0, 0)))
    # natural (B, T, I) layout; no wrapper-side transpose (layer 0 reads per-t).

    args = [xf]
    in_specs = [pl.BlockSpec((Bt, T, I), lambda b: (b, 0, 0))]
    for l in range(L):
        w_ih, w_hh, b_ih, b_hh = params["layers"][l]
        w_ih_t = jnp.transpose(w_ih).astype(jnp.float32)             # (in_dim, 4H)
        if l > 0 and Hp != H:
            # zero rows for the padded lanes of the previous layer's h sequence
            w_ih_t = jnp.pad(w_ih_t, ((0, Hp - H), (0, 0)))          # (Hp, 4H)
        args.append(w_ih_t.astype(jnp.bfloat16))                     # bf16 MXU operand
        args.append(jnp.transpose(w_hh).astype(jnp.bfloat16))        # (H, 4H) bf16
        args.append((b_ih + b_hh).reshape(1, 4 * H).astype(jnp.float32))
        in_specs += [
            pl.BlockSpec(args[-3].shape, lambda b: (0, 0)),
            pl.BlockSpec(args[-2].shape, lambda b: (0, 0)),
            pl.BlockSpec(args[-1].shape, lambda b: (0, 0)),
        ]
    w_fc = jnp.transpose(params["fc_w"]).astype(jnp.float32)         # (H, O)
    b_fc = params["fc_b"].reshape(1, O).astype(jnp.float32)          # (1, O)
    args.append(jnp.pad(w_fc, ((0, 0), (0, Op - O))))                # (H, Op) f32
    args.append(jnp.pad(b_fc, ((0, 0), (0, Op - O))))                # (1, Op) f32
    in_specs += [
        pl.BlockSpec((H, Op), lambda b: (0, 0)),
        pl.BlockSpec((1, Op), lambda b: (0, 0)),
    ]

    kernel = make_pm25_kernel(L, H, T, Bt, Hp)

    out = pl.pallas_call(
        kernel,
        out_shape=jax.ShapeDtypeStruct((Bp, Op), jnp.float32),
        grid=(num_tiles,),
        in_specs=in_specs,
        out_specs=pl.BlockSpec((Bt, Op), lambda b: (b, 0)),
        scratch_shapes=[
            pltpu.VMEM((T * Bt, 4 * H), jnp.float32),   # precomputed input gates
            pltpu.VMEM((T * Bt, Hp), jnp.float32),      # per-layer output sequence (lane-dense)
        ],
        compiler_params=pltpu.CompilerParams(
            dimension_semantics=("parallel",),
            vmem_limit_bytes=32 * 1024 * 1024,          # deliberate, safe on v5e/v6e/v7x
        ),
    )(*args)
    return out[:B, :O]


# ----------------------------------------------------------------------------
# Deterministic parameter init (PyTorch-style uniform(-1/sqrt(H), 1/sqrt(H)))
# ----------------------------------------------------------------------------
def init_params(key, input_size, hidden_size, num_layers, output_size):
    H = hidden_size
    k = 1.0 / jnp.sqrt(jnp.float32(H))
    layers = []
    for l in range(num_layers):
        in_dim = input_size if l == 0 else H
        key, k1, k2, k3, k4 = jax.random.split(key, 5)
        w_ih = jax.random.uniform(k1, (4 * H, in_dim), jnp.float32, -k, k)
        w_hh = jax.random.uniform(k2, (4 * H, H), jnp.float32, -k, k)
        b_ih = jax.random.uniform(k3, (4 * H,), jnp.float32, -k, k)
        b_hh = jax.random.uniform(k4, (4 * H,), jnp.float32, -k, k)
        layers.append((w_ih, w_hh, b_ih, b_hh))
    key, k5, k6 = jax.random.split(key, 3)
    fc_w = jax.random.uniform(k5, (output_size, H), jnp.float32, -k, k)
    fc_b = jax.random.uniform(k6, (output_size,), jnp.float32, -k, k)
    return {"layers": layers, "fc_w": fc_w, "fc_b": fc_b}


# ----------------------------------------------------------------------------
# Pure-JAX f32 reference (mirrors torch.nn.LSTM semantics) for a sanity check.
# ----------------------------------------------------------------------------
def pm25_ref(x, params, *, hidden_size, num_layers):
    B, T, I = x.shape
    H = hidden_size
    h = [jnp.zeros((B, H), jnp.float32) for _ in range(num_layers)]
    c = [jnp.zeros((B, H), jnp.float32) for _ in range(num_layers)]
    for t in range(T):
        inp = x[:, t, :]
        for l in range(num_layers):
            w_ih, w_hh, b_ih, b_hh = params["layers"][l]
            gates = inp @ w_ih.T + h[l] @ w_hh.T + b_ih + b_hh
            i_g = jax.nn.sigmoid(gates[:, 0 * H:1 * H])
            f_g = jax.nn.sigmoid(gates[:, 1 * H:2 * H])
            g_g = jnp.tanh(gates[:, 2 * H:3 * H])
            o_g = jax.nn.sigmoid(gates[:, 3 * H:4 * H])
            c[l] = f_g * c[l] + i_g * g_g
            h[l] = o_g * jnp.tanh(c[l])
            inp = h[l]
    return h[-1] @ params["fc_w"].T + params["fc_b"]


if __name__ == "__main__":
    # x is (batch, seq, features), consistent with batch_first=True
    B, T, I = 2, 8, 4          # batch=2, seq=8, input_size=4
    H, L, O = 32, 2, 1         # hidden_size=32, num_layers=2, output_size=1

    key = jax.random.PRNGKey(0)
    key, kx, kp = jax.random.split(key, 3)
    x = jax.random.normal(kx, (B, T, I), jnp.float32)
    params = init_params(kp, I, H, L, O)

    out = pm25_predict(x, params, hidden_size=H, num_layers=L, output_size=O)
    out = jax.block_until_ready(out)

    ref = pm25_ref(x, params, hidden_size=H, num_layers=L)
    assert out.shape == (B, O)
    # bf16 MXU operands (f32 accumulation / state): tolerance widened vs pure-f32.
    assert jnp.allclose(out, ref, rtol=1e-2, atol=1e-2), (out, ref)

    print("KERNEL_OK")
</pallas_src>

<mosaic_0001>
module attributes {stable_mosaic.version = 11 : i64} {
  func.func @kernel(%arg0: i32, %arg1: memref<8x8x4xf32, #tpu.memory_space<vmem>>, %arg2: memref<4x128xbf16, #tpu.memory_space<vmem>>, %arg3: memref<32x128xbf16, #tpu.memory_space<vmem>>, %arg4: memref<1x128xf32, #tpu.memory_space<vmem>>, %arg5: memref<128x128xbf16, #tpu.memory_space<vmem>>, %arg6: memref<32x128xbf16, #tpu.memory_space<vmem>>, %arg7: memref<1x128xf32, #tpu.memory_space<vmem>>, %arg8: memref<32x128xf32, #tpu.memory_space<vmem>>, %arg9: memref<1x128xf32, #tpu.memory_space<vmem>>, %arg10: memref<8x128xf32, #tpu.memory_space<vmem>>, %arg11: memref<64x128xf32, #tpu.memory_space<vmem>>, %arg12: memref<64x128xf32, #tpu.memory_space<vmem>>) attributes {dimension_semantics = [#tpu.dimension_semantics<parallel>], iteration_bounds = array<i64: 1>, scalar_prefetch = 0 : i64, scratch_operands = 2 : i64, tpu.core_type = #tpu.core_type<tc>, window_params = [{transform_indices = @transform_0, window_bounds = array<i64: 8, 8, 4>}, {pipeline_mode = #tpu.pipeline_mode<synchronous>, transform_indices = @transform_1, window_bounds = array<i64: 4, 128>}, {pipeline_mode = #tpu.pipeline_mode<synchronous>, transform_indices = @transform_2, window_bounds = array<i64: 32, 128>}, {pipeline_mode = #tpu.pipeline_mode<synchronous>, transform_indices = @transform_3, window_bounds = array<i64: 1, 128>}, {pipeline_mode = #tpu.pipeline_mode<synchronous>, transform_indices = @transform_4, window_bounds = array<i64: 128, 128>}, {pipeline_mode = #tpu.pipeline_mode<synchronous>, transform_indices = @transform_5, window_bounds = array<i64: 32, 128>}, {pipeline_mode = #tpu.pipeline_mode<synchronous>, transform_indices = @transform_6, window_bounds = array<i64: 1, 128>}, {pipeline_mode = #tpu.pipeline_mode<synchronous>, transform_indices = @transform_7, window_bounds = array<i64: 32, 128>}, {pipeline_mode = #tpu.pipeline_mode<synchronous>, transform_indices = @transform_8, window_bounds = array<i64: 1, 128>}, {transform_indices = @transform_9, window_bounds = array<i64: 8, 128>}]} {
    %cst = arith.constant 0.000000e+00 : f32
    %0 = vector.broadcast %cst : f32 to vector<8x96xf32>
    %c0 = arith.constant 0 : index
    %c0_0 = arith.constant 0 : index
    %1 = vector.load %arg4[%c0, %c0_0] : memref<1x128xf32, #tpu.memory_space<vmem>>, vector<1x128xf32>
    %c0_1 = arith.constant 0 : index
    %c0_2 = arith.constant 0 : index
    %c0_3 = arith.constant 0 : index
    %2 = vector.load %arg1[%c0_1, %c0_2, %c0_3] : memref<8x8x4xf32, #tpu.memory_space<vmem>>, vector<8x1x4xf32>
    %3 = vector.shape_cast %2 : vector<8x1x4xf32> to vector<8x4xf32>
    %4 = arith.truncf %3 : vector<8x4xf32> to vector<8x4xbf16>
    %c0_4 = arith.constant 0 : index
    %c0_5 = arith.constant 0 : index
    %5 = vector.load %arg2[%c0_4, %c0_5] : memref<4x128xbf16, #tpu.memory_space<vmem>>, vector<4x128xbf16>
    %cst_6 = arith.constant dense<0.000000e+00> : vector<8x128xf32>
    %6 = tpu.matmul %4, %5, %cst_6 {dimension_numbers = #tpu.dot_dimension_numbers<[1], [0], [0], [1], [0, 0, 1, 1], [], []>} : vector<8x4xbf16>, vector<4x128xbf16>, vector<8x128xf32> -> vector<8x128xf32>
    %7 = vector.broadcast %1 : vector<1x128xf32> to vector<8x128xf32>
    %8 = arith.addf %6, %7 : vector<8x128xf32>
    %c0_7 = arith.constant 0 : index
    %c0_8 = arith.constant 0 : index
    %9 = vector.load %arg11[%c0_7, %c0_8] : memref<64x128xf32, #tpu.memory_space<vmem>>, vector<8x128xf32>
    tpu.vector_store %arg11[%c0_7, %c0_8], %8 {strides = array<i32>} : memref<64x128xf32, #tpu.memory_space<vmem>>, vector<8x128xf32>,
    %c0_9 = arith.constant 0 : index
    %c1 = arith.constant 1 : index
    %c0_10 = arith.constant 0 : index
    %10 = vector.load %arg1[%c0_9, %c1, %c0_10] : memref<8x8x4xf32, #tpu.memory_space<vmem>>, vector<8x1x4xf32>
    %11 = vector.shape_cast %10 : vector<8x1x4xf32> to vector<8x4xf32>
    %12 = arith.truncf %11 : vector<8x4xf32> to vector<8x4xbf16>
    %c0_11 = arith.constant 0 : index
    %c0_12 = arith.constant 0 : index
    %13 = vector.load %arg2[%c0_11, %c0_12] : memref<4x128xbf16, #tpu.memory_space<vmem>>, vector<4x128xbf16>
    %cst_13 = arith.constant dense<0.000000e+00> : vector<8x128xf32>
    %14 = tpu.matmul %12, %13, %cst_13 {dimension_numbers = #tpu.dot_dimension_numbers<[1], [0], [0], [1], [0, 0, 1, 1], [], []>} : vector<8x4xbf16>, vector<4x128xbf16>, vector<8x128xf32> -> vector<8x128xf32>
    %15 = vector.broadcast %1 : vector<1x128xf32> to vector<8x128xf32>
    %16 = arith.addf %14, %15 : vector<8x128xf32>
    %c8 = arith.constant 8 : index
    %c0_14 = arith.constant 0 : index
    %17 = vector.load %arg11[%c8, %c0_14] : memref<64x128xf32, #tpu.memory_space<vmem>>, vector<8x128xf32>
    tpu.vector_store %arg11[%c8, %c0_14], %16 {strides = array<i32>} : memref<64x128xf32, #tpu.memory_space<vmem>>, vector<8x128xf32>,
    %c0_15 = arith.constant 0 : index
    %c2 = arith.constant 2 : index
    %c0_16 = arith.constant 0 : index
    %18 = vector.load %arg1[%c0_15, %c2, %c0_16] : memref<8x8x4xf32, #tpu.memory_space<vmem>>, vector<8x1x4xf32>
    %19 = vector.shape_cast %18 : vector<8x1x4xf32> to vector<8x4xf32>
    %20 = arith.truncf %19 : vector<8x4xf32> to vector<8x4xbf16>
    %c0_17 = arith.constant 0 : index
    %c0_18 = arith.constant 0 : index
    %21 = vector.load %arg2[%c0_17, %c0_18] : memref<4x128xbf16, #tpu.memory_space<vmem>>, vector<4x128xbf16>
    %cst_19 = arith.constant dense<0.000000e+00> : vector<8x128xf32>
    %22 = tpu.matmul %20, %21, %cst_19 {dimension_numbers = #tpu.dot_dimension_numbers<[1], [0], [0], [1], [0, 0, 1, 1], [], []>} : vector<8x4xbf16>, vector<4x128xbf16>, vector<8x128xf32> -> vector<8x128xf32>
    %23 = vector.broadcast %1 : vector<1x128xf32> to vector<8x128xf32>
    %24 = arith.addf %22, %23 : vector<8x128xf32>
    %c16 = arith.constant 16 : index
    %c0_20 = arith.constant 0 : index
    %25 = vector.load %arg11[%c16, %c0_20] : memref<64x128xf32, #tpu.memory_space<vmem>>, vector<8x128xf32>
    tpu.vector_store %arg11[%c16, %c0_20], %24 {strides = array<i32>} : memref<64x128xf32, #tpu.memory_space<vmem>>, vector<8x128xf32>,
    %c0_21 = arith.constant 0 : index
    %c3 = arith.constant 3 : index
    %c0_22 = arith.constant 0 : index
    %26 = vector.load %arg1[%c0_21, %c3, %c0_22] : memref<8x8x4xf32, #tpu.memory_space<vmem>>, vector<8x1x4xf32>
    %27 = vector.shape_cast %26 : vector<8x1x4xf32> to vector<8x4xf32>
    %28 = arith.truncf %27 : vector<8x4xf32> to vector<8x4xbf16>
    %c0_23 = arith.constant 0 : index
    %c0_24 = arith.constant 0 : index
    %29 = vector.load %arg2[%c0_23, %c0_24] : memref<4x128xbf16, #tpu.memory_space<vmem>>, vector<4x128xbf16>
    %cst_25 = arith.constant dense<0.000000e+00> : vector<8x128xf32>
    %30 = tpu.matmul %28, %29, %cst_25 {dimension_numbers = #tpu.dot_dimension_numbers<[1], [0], [0], [1], [0, 0, 1, 1], [], []>} : vector<8x4xbf16>, vector<4x128xbf16>, vector<8x128xf32> -> vector<8x128xf32>
    %31 = vector.broadcast %1 : vector<1x128xf32> to vector<8x128xf32>
    %32 = arith.addf %30, %31 : vector<8x128xf32>
    %c24 = arith.constant 24 : index
    %c0_26 = arith.constant 0 : index
    %33 = vector.load %arg11[%c24, %c0_26] : memref<64x128xf32, #tpu.memory_space<vmem>>, vector<8x128xf32>
    tpu.vector_store %arg11[%c24, %c0_26], %32 {strides = array<i32>} : memref<64x128xf32, #tpu.memory_space<vmem>>, vector<8x128xf32>,
    %c0_27 = arith.constant 0 : index
    %c4 = arith.constant 4 : index
    %c0_28 = arith.constant 0 : index
    %34 = vector.load %arg1[%c0_27, %c4, %c0_28] : memref<8x8x4xf32, #tpu.memory_space<vmem>>, vector<8x1x4xf32>
    %35 = vector.shape_cast %34 : vector<8x1x4xf32> to vector<8x4xf32>
    %36 = arith.truncf %35 : vector<8x4xf32> to vector<8x4xbf16>
    %c0_29 = arith.constant 0 : index
    %c0_30 = arith.constant 0 : index
    %37 = vector.load %arg2[%c0_29, %c0_30] : memref<4x128xbf16, #tpu.memory_space<vmem>>, vector<4x128xbf16>
    %cst_31 = arith.constant dense<0.000000e+00> : vector<8x128xf32>
    %38 = tpu.matmul %36, %37, %cst_31 {dimension_numbers = #tpu.dot_dimension_numbers<[1], [0], [0], [1], [0, 0, 1, 1], [], []>} : vector<8x4xbf16>, vector<4x128xbf16>, vector<8x128xf32> -> vector<8x128xf32>
    %39 = vector.broadcast %1 : vector<1x128xf32> to vector<8x128xf32>
    %40 = arith.addf %38, %39 : vector<8x128xf32>
    %c32 = arith.constant 32 : index
    %c0_32 = arith.constant 0 : index
    %41 = vector.load %arg11[%c32, %c0_32] : memref<64x128xf32, #tpu.memory_space<vmem>>, vector<8x128xf32>
    tpu.vector_store %arg11[%c32, %c0_32], %40 {strides = array<i32>} : memref<64x128xf32, #tpu.memory_space<vmem>>, vector<8x128xf32>,
    %c0_33 = arith.constant 0 : index
    %c5 = arith.constant 5 : index
    %c0_34 = arith.constant 0 : index
    %42 = vector.load %arg1[%c0_33, %c5, %c0_34] : memref<8x8x4xf32, #tpu.memory_space<vmem>>, vector<8x1x4xf32>
    %43 = vector.shape_cast %42 : vector<8x1x4xf32> to vector<8x4xf32>
    %44 = arith.truncf %43 : vector<8x4xf32> to vector<8x4xbf16>
    %c0_35 = arith.constant 0 : index
    %c0_36 = arith.constant 0 : index
    %45 = vector.load %arg2[%c0_35, %c0_36] : memref<4x128xbf16, #tpu.memory_space<vmem>>, vector<4x128xbf16>
    %cst_37 = arith.constant dense<0.000000e+00> : vector<8x128xf32>
    %46 = tpu.matmul %44, %45, %cst_37 {dimension_numbers = #tpu.dot_dimension_numbers<[1], [0], [0], [1], [0, 0, 1, 1], [], []>} : vector<8x4xbf16>, vector<4x128xbf16>, vector<8x128xf32> -> vector<8x128xf32>
    %47 = vector.broadcast %1 : vector<1x128xf32> to vector<8x128xf32>
    %48 = arith.addf %46, %47 : vector<8x128xf32>
    %c40 = arith.constant 40 : index
    %c0_38 = arith.constant 0 : index
    %49 = vector.load %arg11[%c40, %c0_38] : memref<64x128xf32, #tpu.memory_space<vmem>>, vector<8x128xf32>
    tpu.vector_store %arg11[%c40, %c0_38], %48 {strides = array<i32>} : memref<64x128xf32, #tpu.memory_space<vmem>>, vector<8x128xf32>,
    %c0_39 = arith.constant 0 : index
    %c6 = arith.constant 6 : index
    %c0_40 = arith.constant 0 : index
    %50 = vector.load %arg1[%c0_39, %c6, %c0_40] : memref<8x8x4xf32, #tpu.memory_space<vmem>>, vector<8x1x4xf32>
    %51 = vector.shape_cast %50 : vector<8x1x4xf32> to vector<8x4xf32>
    %52 = arith.truncf %51 : vector<8x4xf32> to vector<8x4xbf16>
    %c0_41 = arith.constant 0 : index
    %c0_42 = arith.constant 0 : index
    %53 = vector.load %arg2[%c0_41, %c0_42] : memref<4x128xbf16, #tpu.memory_space<vmem>>, vector<4x128xbf16>
    %cst_43 = arith.constant dense<0.000000e+00> : vector<8x128xf32>
    %54 = tpu.matmul %52, %53, %cst_43 {dimension_numbers = #tpu.dot_dimension_numbers<[1], [0], [0], [1], [0, 0, 1, 1], [], []>} : vector<8x4xbf16>, vector<4x128xbf16>, vector<8x128xf32> -> vector<8x128xf32>
    %55 = vector.broadcast %1 : vector<1x128xf32> to vector<8x128xf32>
    %56 = arith.addf %54, %55 : vector<8x128xf32>
    %c48 = arith.constant 48 : index
    %c0_44 = arith.constant 0 : index
    %57 = vector.load %arg11[%c48, %c0_44] : memref<64x128xf32, #tpu.memory_space<vmem>>, vector<8x128xf32>
    tpu.vector_store %arg11[%c48, %c0_44], %56 {strides = array<i32>} : memref<64x128xf32, #tpu.memory_space<vmem>>, vector<8x128xf32>,
    %c0_45 = arith.constant 0 : index
    %c7 = arith.constant 7 : index
    %c0_46 = arith.constant 0 : index
    %58 = vector.load %arg1[%c0_45, %c7, %c0_46] : memref<8x8x4xf32, #tpu.memory_space<vmem>>, vector<8x1x4xf32>
    %59 = vector.shape_cast %58 : vector<8x1x4xf32> to vector<8x4xf32>
    %60 = arith.truncf %59 : vector<8x4xf32> to vector<8x4xbf16>
    %c0_47 = arith.constant 0 : index
    %c0_48 = arith.constant 0 : index
    %61 = vector.load %arg2[%c0_47, %c0_48] : memref<4x128xbf16, #tpu.memory_space<vmem>>, vector<4x128xbf16>
    %cst_49 = arith.constant dense<0.000000e+00> : vector<8x128xf32>
    %62 = tpu.matmul %60, %61, %cst_49 {dimension_numbers = #tpu.dot_dimension_numbers<[1], [0], [0], [1], [0, 0, 1, 1], [], []>} : vector<8x4xbf16>, vector<4x128xbf16>, vector<8x128xf32> -> vector<8x128xf32>
    %63 = vector.broadcast %1 : vector<1x128xf32> to vector<8x128xf32>
    %64 = arith.addf %62, %63 : vector<8x128xf32>
    %c56 = arith.constant 56 : index
    %c0_50 = arith.constant 0 : index
    %65 = vector.load %arg11[%c56, %c0_50] : memref<64x128xf32, #tpu.memory_space<vmem>>, vector<8x128xf32>
    tpu.vector_store %arg11[%c56, %c0_50], %64 {strides = array<i32>} : memref<64x128xf32, #tpu.memory_space<vmem>>, vector<8x128xf32>,
    %cst_51 = arith.constant 0.000000e+00 : f32
    %66 = vector.broadcast %cst_51 : f32 to vector<8x32xf32>
    %cst_52 = arith.constant 0.000000e+00 : f32
    %67 = vector.broadcast %cst_52 : f32 to vector<8x32xf32>
    %c0_i32 = arith.constant 0 : i32
    %c8_i32 = arith.constant 8 : i32
    %68 = arith.muli %c0_i32, %c8_i32 : i32
    %69 = tpu.assume_multiple %68, 8 : i32
    %70 = arith.index_cast %69 : i32 to index
    %c0_53 = arith.constant 0 : index
    %71 = vector.load %arg11[%70, %c0_53] : memref<64x128xf32, #tpu.memory_space<vmem>>, vector<8x128xf32>
    %72 = arith.truncf %66 : vector<8x32xf32> to vector<8x32xbf16>
    %c0_54 = arith.constant 0 : index
    %c0_55 = arith.constant 0 : index
    %73 = vector.load %arg3[%c0_54, %c0_55] : memref<32x128xbf16, #tpu.memory_space<vmem>>, vector<32x128xbf16>
    %cst_56 = arith.constant dense<0.000000e+00> : vector<8x128xf32>
    %74 = tpu.matmul %72, %73, %cst_56 {dimension_numbers = #tpu.dot_dimension_numbers<[1], [0], [0], [1], [0, 0, 1, 1], [], []>} : vector<8x32xbf16>, vector<32x128xbf16>, vector<8x128xf32> -> vector<8x128xf32>
    %75 = arith.addf %71, %74 : vector<8x128xf32>
    %76 = arith.negf %75 : vector<8x128xf32>
    %77 = math.exp %76 : vector<8x128xf32>
    %cst_57 = arith.constant 1.000000e+00 : f32
    %78 = vector.broadcast %cst_57 : f32 to vector<8x128xf32>
    %79 = arith.addf %78, %77 : vector<8x128xf32>
    %80 = arith.divf %78, %79 : vector<8x128xf32>
    %81 = math.tanh %75 : vector<8x128xf32>
    %82 = vector.extract_strided_slice %80 {offsets = [0, 0], sizes = [8, 32], strides = [1, 1]} : vector<8x128xf32> to vector<8x32xf32>
    %83 = vector.extract_strided_slice %80 {offsets = [0, 32], sizes = [8, 32], strides = [1, 1]} : vector<8x128xf32> to vector<8x32xf32>
    %84 = vector.extract_strided_slice %81 {offsets = [0, 64], sizes = [8, 32], strides = [1, 1]} : vector<8x128xf32> to vector<8x32xf32>
    %85 = vector.extract_strided_slice %80 {offsets = [0, 96], sizes = [8, 32], strides = [1, 1]} : vector<8x128xf32> to vector<8x32xf32>
    %86 = arith.mulf %83, %67 : vector<8x32xf32>
    %87 = arith.mulf %82, %84 : vector<8x32xf32>
    %88 = arith.addf %86, %87 : vector<8x32xf32>
    %89 = math.tanh %88 : vector<8x32xf32>
    %90 = arith.mulf %85, %89 : vector<8x32xf32>
    %91 = tpu.concatenate %90, %0 in 1 : vector<8x32xf32>, vector<8x96xf32> -> vector<8x128xf32>
    %92 = arith.index_cast %69 : i32 to index
    %c0_58 = arith.constant 0 : index
    %93 = vector.load %arg12[%92, %c0_58] : memref<64x128xf32, #tpu.memory_space<vmem>>, vector<8x128xf32>
    tpu.vector_store %arg12[%92, %c0_58], %91 {strides = array<i32>} : memref<64x128xf32, #tpu.memory_space<vmem>>, vector<8x128xf32>,
    %c1_i32 = arith.constant 1 : i32
    %c8_i32_59 = arith.constant 8 : i32
    %94 = arith.muli %c1_i32, %c8_i32_59 : i32
    %95 = tpu.assume_multiple %94, 8 : i32
    %96 = arith.index_cast %95 : i32 to index
    %c0_60 = arith.constant 0 : index
    %97 = vector.load %arg11[%96, %c0_60] : memref<64x128xf32, #tpu.memory_space<vmem>>, vector<8x128xf32>
    %98 = arith.truncf %90 : vector<8x32xf32> to vector<8x32xbf16>
    %c0_61 = arith.constant 0 : index
    %c0_62 = arith.constant 0 : index
    %99 = vector.load %arg3[%c0_61, %c0_62] : memref<32x128xbf16, #tpu.memory_space<vmem>>, vector<32x128xbf16>
    %cst_63 = arith.constant dense<0.000000e+00> : vector<8x128xf32>
    %100 = tpu.matmul %98, %99, %cst_63 {dimension_numbers = #tpu.dot_dimension_numbers<[1], [0], [0], [1], [0, 0, 1, 1], [], []>} : vector<8x32xbf16>, vector<32x128xbf16>, vector<8x128xf32> -> vector<8x128xf32>
    %101 = arith.addf %97, %100 : vector<8x128xf32>
    %102 = arith.negf %101 : vector<8x128xf32>
    %103 = math.exp %102 : vector<8x128xf32>
    %cst_64 = arith.constant 1.000000e+00 : f32
    %104 = vector.broadcast %cst_64 : f32 to vector<8x128xf32>
    %105 = arith.addf %104, %103 : vector<8x128xf32>
    %106 = arith.divf %104, %105 : vector<8x128xf32>
    %107 = math.tanh %101 : vector<8x128xf32>
    %108 = vector.extract_strided_slice %106 {offsets = [0, 0], sizes = [8, 32], strides = [1, 1]} : vector<8x128xf32> to vector<8x32xf32>
    %109 = vector.extract_strided_slice %106 {offsets = [0, 32], sizes = [8, 32], strides = [1, 1]} : vector<8x128xf32> to vector<8x32xf32>
    %110 = vector.extract_strided_slice %107 {offsets = [0, 64], sizes = [8, 32], strides = [1, 1]} : vector<8x128xf32> to vector<8x32xf32>
    %111 = vector.extract_strided_slice %106 {offsets = [0, 96], sizes = [8, 32], strides = [1, 1]} : vector<8x128xf32> to vector<8x32xf32>
    %112 = arith.mulf %109, %88 : vector<8x32xf32>
    %113 = arith.mulf %108, %110 : vector<8x32xf32>
    %114 = arith.addf %112, %113 : vector<8x32xf32>
    %115 = math.tanh %114 : vector<8x32xf32>
    %116 = arith.mulf %111, %115 : vector<8x32xf32>
    %117 = tpu.concatenate %116, %0 in 1 : vector<8x32xf32>, vector<8x96xf32> -> vector<8x128xf32>
    %118 = arith.index_cast %95 : i32 to index
    %c0_65 = arith.constant 0 : index
    %119 = vector.load %arg12[%118, %c0_65] : memref<64x128xf32, #tpu.memory_space<vmem>>, vector<8x128xf32>
    tpu.vector_store %arg12[%118, %c0_65], %117 {strides = array<i32>} : memref<64x128xf32, #tpu.memory_space<vmem>>, vector<8x128xf32>,
    %c2_i32 = arith.constant 2 : i32
    %c8_i32_66 = arith.constant 8 : i32
    %120 = arith.muli %c2_i32, %c8_i32_66 : i32
    %121 = tpu.assume_multiple %120, 8 : i32
    %122 = arith.index_cast %121 : i32 to index
    %c0_67 = arith.constant 0 : index
    %123 = vector.load %arg11[%122, %c0_67] : memref<64x128xf32, #tpu.memory_space<vmem>>, vector<8x128xf32>
    %124 = arith.truncf %116 : vector<8x32xf32> to vector<8x32xbf16>
    %c0_68 = arith.constant 0 : index
    %c0_69 = arith.constant 0 : index
    %125 = vector.load %arg3[%c0_68, %c0_69] : memref<32x128xbf16, #tpu.memory_space<vmem>>, vector<32x128xbf16>
    %cst_70 = arith.constant dense<0.000000e+00> : vector<8x128xf32>
    %126 = tpu.matmul %124, %125, %cst_70 {dimension_numbers = #tpu.dot_dimension_numbers<[1], [0], [0], [1], [0, 0, 1, 1], [], []>} : vector<8x32xbf16>, vector<32x128xbf16>, vector<8x128xf32> -> vector<8x128xf32>
    %127 = arith.addf %123, %126 : vector<8x128xf32>
    %128 = arith.negf %127 : vector<8x128xf32>
    %129 = math.exp %128 : vector<8x128xf32>
    %cst_71 = arith.constant 1.000000e+00 : f32
    %130 = vector.broadcast %cst_71 : f32 to vector<8x128xf32>
    %131 = arith.addf %130, %129 : vector<8x128xf32>
    %132 = arith.divf %130, %131 : vector<8x128xf32>
    %133 = math.tanh %127 : vector<8x128xf32>
    %134 = vector.extract_strided_slice %132 {offsets = [0, 0], sizes = [8, 32], strides = [1, 1]} : vector<8x128xf32> to vector<8x32xf32>
    %135 = vector.extract_strided_slice %132 {offsets = [0, 32], sizes = [8, 32], strides = [1, 1]} : vector<8x128xf32> to vector<8x32xf32>
    %136 = vector.extract_strided_slice %133 {offsets = [0, 64], sizes = [8, 32], strides = [1, 1]} : vector<8x128xf32> to vector<8x32xf32>
    %137 = vector.extract_strided_slice %132 {offsets = [0, 96], sizes = [8, 32], strides = [1, 1]} : vector<8x128xf32> to vector<8x32xf32>
    %138 = arith.mulf %135, %114 : vector<8x32xf32>
    %139 = arith.mulf %134, %136 : vector<8x32xf32>
    %140 = arith.addf %138, %139 : vector<8x32xf32>
    %141 = math.tanh %140 : vector<8x32xf32>
    %142 = arith.mulf %137, %141 : vector<8x32xf32>
    %143 = tpu.concatenate %142, %0 in 1 : vector<8x32xf32>, vector<8x96xf32> -> vector<8x128xf32>
    %144 = arith.index_cast %121 : i32 to index
    %c0_72 = arith.constant 0 : index
    %145 = vector.load %arg12[%144, %c0_72] : memref<64x128xf32, #tpu.memory_space<vmem>>, vector<8x128xf32>
    tpu.vector_store %arg12[%144, %c0_72], %143 {strides = array<i32>} : memref<64x128xf32, #tpu.memory_space<vmem>>, vector<8x128xf32>,
    %c3_i32 = arith.constant 3 : i32
    %c8_i32_73 = arith.constant 8 : i32
    %146 = arith.muli %c3_i32, %c8_i32_73 : i32
    %147 = tpu.assume_multiple %146, 8 : i32
    %148 = arith.index_cast %147 : i32 to index
    %c0_74 = arith.constant 0 : index
    %149 = vector.load %arg11[%148, %c0_74] : memref<64x128xf32, #tpu.memory_space<vmem>>, vector<8x128xf32>
    %150 = arith.truncf %142 : vector<8x32xf32> to vector<8x32xbf16>
    %c0_75 = arith.constant 0 : index
    %c0_76 = arith.constant 0 : index
    %151 = vector.load %arg3[%c0_75, %c0_76] : memref<32x128xbf16, #tpu.memory_space<vmem>>, vector<32x128xbf16>
    %cst_77 = arith.constant dense<0.000000e+00> : vector<8x128xf32>
    %152 = tpu.matmul %150, %151, %cst_77 {dimension_numbers = #tpu.dot_dimension_numbers<[1], [0], [0], [1], [0, 0, 1, 1], [], []>} : vector<8x32xbf16>, vector<32x128xbf16>, vector<8x128xf32> -> vector<8x128xf32>
    %153 = arith.addf %149, %152 : vector<8x128xf32>
    %154 = arith.negf %153 : vector<8x128xf32>
    %155 = math.exp %154 : vector<8x128xf32>
    %cst_78 = arith.constant 1.000000e+00 : f32
    %156 = vector.broadcast %cst_78 : f32 to vector<8x128xf32>
    %157 = arith.addf %156, %155 : vector<8x128xf32>
    %158 = arith.divf %156, %157 : vector<8x128xf32>
    %159 = math.tanh %153 : vector<8x128xf32>
    %160 = vector.extract_strided_slice %158 {offsets = [0, 0], sizes = [8, 32], strides = [1, 1]} : vector<8x128xf32> to vector<8x32xf32>
    %161 = vector.extract_strided_slice %158 {offsets = [0, 32], sizes = [8, 32], strides = [1, 1]} : vector<8x128xf32> to vector<8x32xf32>
    %162 = vector.extract_strided_slice %159 {offsets = [0, 64], sizes = [8, 32], strides = [1, 1]} : vector<8x128xf32> to vector<8x32xf32>
    %163 = vector.extract_strided_slice %158 {offsets = [0, 96], sizes = [8, 32], strides = [1, 1]} : vector<8x128xf32> to vector<8x32xf32>
    %164 = arith.mulf %161, %140 : vector<8x32xf32>
    %165 = arith.mulf %160, %162 : vector<8x32xf32>
    %166 = arith.addf %164, %165 : vector<8x32xf32>
    %167 = math.tanh %166 : vector<8x32xf32>
    %168 = arith.mulf %163, %167 : vector<8x32xf32>
    %169 = tpu.concatenate %168, %0 in 1 : vector<8x32xf32>, vector<8x96xf32> -> vector<8x128xf32>
    %170 = arith.index_cast %147 : i32 to index
    %c0_79 = arith.constant 0 : index
    %171 = vector.load %arg12[%170, %c0_79] : memref<64x128xf32, #tpu.memory_space<vmem>>, vector<8x128xf32>
    tpu.vector_store %arg12[%170, %c0_79], %169 {strides = array<i32>} : memref<64x128xf32, #tpu.memory_space<vmem>>, vector<8x128xf32>,
    %c4_i32 = arith.constant 4 : i32
    %c8_i32_80 = arith.constant 8 : i32
    %172 = arith.muli %c4_i32, %c8_i32_80 : i32
    %173 = tpu.assume_multiple %172, 8 : i32
    %174 = arith.index_cast %173 : i32 to index
    %c0_81 = arith.constant 0 : index
    %175 = vector.load %arg11[%174, %c0_81] : memref<64x128xf32, #tpu.memory_space<vmem>>, vector<8x128xf32>
    %176 = arith.truncf %168 : vector<8x32xf32> to vector<8x32xbf16>
    %c0_82 = arith.constant 0 : index
    %c0_83 = arith.constant 0 : index
    %177 = vector.load %arg3[%c0_82, %c0_83] : memref<32x128xbf16, #tpu.memory_space<vmem>>, vector<32x128xbf16>
    %cst_84 = arith.constant dense<0.000000e+00> : vector<8x128xf32>
    %178 = tpu.matmul %176, %177, %cst_84 {dimension_numbers = #tpu.dot_dimension_numbers<[1], [0], [0], [1], [0, 0, 1, 1], [], []>} : vector<8x32xbf16>, vector<32x128xbf16>, vector<8x128xf32> -> vector<8x128xf32>
    %179 = arith.addf %175, %178 : vector<8x128xf32>
    %180 = arith.negf %179 : vector<8x128xf32>
    %181 = math.exp %180 : vector<8x128xf32>
    %cst_85 = arith.constant 1.000000e+00 : f32
    %182 = vector.broadcast %cst_85 : f32 to vector<8x128xf32>
    %183 = arith.addf %182, %181 : vector<8x128xf32>
    %184 = arith.divf %182, %183 : vector<8x128xf32>
    %185 = math.tanh %179 : vector<8x128xf32>
    %186 = vector.extract_strided_slice %184 {offsets = [0, 0], sizes = [8, 32], strides = [1, 1]} : vector<8x128xf32> to vector<8x32xf32>
    %187 = vector.extract_strided_slice %184 {offsets = [0, 32], sizes = [8, 32], strides = [1, 1]} : vector<8x128xf32> to vector<8x32xf32>
    %188 = vector.extract_strided_slice %185 {offsets = [0, 64], sizes = [8, 32], strides = [1, 1]} : vector<8x128xf32> to vector<8x32xf32>
    %189 = vector.extract_strided_slice %184 {offsets = [0, 96], sizes = [8, 32], strides = [1, 1]} : vector<8x128xf32> to vector<8x32xf32>
    %190 = arith.mulf %187, %166 : vector<8x32xf32>
    %191 = arith.mulf %186, %188 : vector<8x32xf32>
    %192 = arith.addf %190, %191 : vector<8x32xf32>
    %193 = math.tanh %192 : vector<8x32xf32>
    %194 = arith.mulf %189, %193 : vector<8x32xf32>
    %195 = tpu.concatenate %194, %0 in 1 : vector<8x32xf32>, vector<8x96xf32> -> vector<8x128xf32>
    %196 = arith.index_cast %173 : i32 to index
    %c0_86 = arith.constant 0 : index
    %197 = vector.load %arg12[%196, %c0_86] : memref<64x128xf32, #tpu.memory_space<vmem>>, vector<8x128xf32>
    tpu.vector_store %arg12[%196, %c0_86], %195 {strides = array<i32>} : memref<64x128xf32, #tpu.memory_space<vmem>>, vector<8x128xf32>,
    %c5_i32 = arith.constant 5 : i32
    %c8_i32_87 = arith.constant 8 : i32
    %198 = arith.muli %c5_i32, %c8_i32_87 : i32
    %199 = tpu.assume_multiple %198, 8 : i32
    %200 = arith.index_cast %199 : i32 to index
    %c0_88 = arith.constant 0 : index
    %201 = vector.load %arg11[%200, %c0_88] : memref<64x128xf32, #tpu.memory_space<vmem>>, vector<8x128xf32>
    %202 = arith.truncf %194 : vector<8x32xf32> to vector<8x32xbf16>
    %c0_89 = arith.constant 0 : index
    %c0_90 = arith.constant 0 : index
    %203 = vector.load %arg3[%c0_89, %c0_90] : memref<32x128xbf16, #tpu.memory_space<vmem>>, vector<32x128xbf16>
    %cst_91 = arith.constant dense<0.000000e+00> : vector<8x128xf32>
    %204 = tpu.matmul %202, %203, %cst_91 {dimension_numbers = #tpu.dot_dimension_numbers<[1], [0], [0], [1], [0, 0, 1, 1], [], []>} : vector<8x32xbf16>, vector<32x128xbf16>, vector<8x128xf32> -> vector<8x128xf32>
    %205 = arith.addf %201, %204 : vector<8x128xf32>
    %206 = arith.negf %205 : vector<8x128xf32>
    %207 = math.exp %206 : vector<8x128xf32>
    %cst_92 = arith.constant 1.000000e+00 : f32
    %208 = vector.broadcast %cst_92 : f32 to vector<8x128xf32>
    %209 = arith.addf %208, %207 : vector<8x128xf32>
    %210 = arith.divf %208, %209 : vector<8x128xf32>
    %211 = math.tanh %205 : vector<8x128xf32>
    %212 = vector.extract_strided_slice %210 {offsets = [0, 0], sizes = [8, 32], strides = [1, 1]} : vector<8x128xf32> to vector<8x32xf32>
    %213 = vector.extract_strided_slice %210 {offsets = [0, 32], sizes = [8, 32], strides = [1, 1]} : vector<8x128xf32> to vector<8x32xf32>
    %214 = vector.extract_strided_slice %211 {offsets = [0, 64], sizes = [8, 32], strides = [1, 1]} : vector<8x128xf32> to vector<8x32xf32>
    %215 = vector.extract_strided_slice %210 {offsets = [0, 96], sizes = [8, 32], strides = [1, 1]} : vector<8x128xf32> to vector<8x32xf32>
    %216 = arith.mulf %213, %192 : vector<8x32xf32>
    %217 = arith.mulf %212, %214 : vector<8x32xf32>
    %218 = arith.addf %216, %217 : vector<8x32xf32>
    %219 = math.tanh %218 : vector<8x32xf32>
    %220 = arith.mulf %215, %219 : vector<8x32xf32>
    %221 = tpu.concatenate %220, %0 in 1 : vector<8x32xf32>, vector<8x96xf32> -> vector<8x128xf32>
    %222 = arith.index_cast %199 : i32 to index
    %c0_93 = arith.constant 0 : index
    %223 = vector.load %arg12[%222, %c0_93] : memref<64x128xf32, #tpu.memory_space<vmem>>, vector<8x128xf32>
    tpu.vector_store %arg12[%222, %c0_93], %221 {strides = array<i32>} : memref<64x128xf32, #tpu.memory_space<vmem>>, vector<8x128xf32>,
    %c6_i32 = arith.constant 6 : i32
    %c8_i32_94 = arith.constant 8 : i32
    %224 = arith.muli %c6_i32, %c8_i32_94 : i32
    %225 = tpu.assume_multiple %224, 8 : i32
    %226 = arith.index_cast %225 : i32 to index
    %c0_95 = arith.constant 0 : index
    %227 = vector.load %arg11[%226, %c0_95] : memref<64x128xf32, #tpu.memory_space<vmem>>, vector<8x128xf32>
    %228 = arith.truncf %220 : vector<8x32xf32> to vector<8x32xbf16>
    %c0_96 = arith.constant 0 : index
    %c0_97 = arith.constant 0 : index
    %229 = vector.load %arg3[%c0_96, %c0_97] : memref<32x128xbf16, #tpu.memory_space<vmem>>, vector<32x128xbf16>
    %cst_98 = arith.constant dense<0.000000e+00> : vector<8x128xf32>
    %230 = tpu.matmul %228, %229, %cst_98 {dimension_numbers = #tpu.dot_dimension_numbers<[1], [0], [0], [1], [0, 0, 1, 1], [], []>} : vector<8x32xbf16>, vector<32x128xbf16>, vector<8x128xf32> -> vector<8x128xf32>
    %231 = arith.addf %227, %230 : vector<8x128xf32>
    %232 = arith.negf %231 : vector<8x128xf32>
    %233 = math.exp %232 : vector<8x128xf32>
    %cst_99 = arith.constant 1.000000e+00 : f32
    %234 = vector.broadcast %cst_99 : f32 to vector<8x128xf32>
    %235 = arith.addf %234, %233 : vector<8x128xf32>
    %236 = arith.divf %234, %235 : vector<8x128xf32>
    %237 = math.tanh %231 : vector<8x128xf32>
    %238 = vector.extract_strided_slice %236 {offsets = [0, 0], sizes = [8, 32], strides = [1, 1]} : vector<8x128xf32> to vector<8x32xf32>
    %239 = vector.extract_strided_slice %236 {offsets = [0, 32], sizes = [8, 32], strides = [1, 1]} : vector<8x128xf32> to vector<8x32xf32>
    %240 = vector.extract_strided_slice %237 {offsets = [0, 64], sizes = [8, 32], strides = [1, 1]} : vector<8x128xf32> to vector<8x32xf32>
    %241 = vector.extract_strided_slice %236 {offsets = [0, 96], sizes = [8, 32], strides = [1, 1]} : vector<8x128xf32> to vector<8x32xf32>
    %242 = arith.mulf %239, %218 : vector<8x32xf32>
    %243 = arith.mulf %238, %240 : vector<8x32xf32>
    %244 = arith.addf %242, %243 : vector<8x32xf32>
    %245 = math.tanh %244 : vector<8x32xf32>
    %246 = arith.mulf %241, %245 : vector<8x32xf32>
    %247 = tpu.concatenate %246, %0 in 1 : vector<8x32xf32>, vector<8x96xf32> -> vector<8x128xf32>
    %248 = arith.index_cast %225 : i32 to index
    %c0_100 = arith.constant 0 : index
    %249 = vector.load %arg12[%248, %c0_100] : memref<64x128xf32, #tpu.memory_space<vmem>>, vector<8x128xf32>
    tpu.vector_store %arg12[%248, %c0_100], %247 {strides = array<i32>} : memref<64x128xf32, #tpu.memory_space<vmem>>, vector<8x128xf32>,
    %c7_i32 = arith.constant 7 : i32
    %c8_i32_101 = arith.constant 8 : i32
    %250 = arith.muli %c7_i32, %c8_i32_101 : i32
    %251 = tpu.assume_multiple %250, 8 : i32
    %252 = arith.index_cast %251 : i32 to index
    %c0_102 = arith.constant 0 : index
    %253 = vector.load %arg11[%252, %c0_102] : memref<64x128xf32, #tpu.memory_space<vmem>>, vector<8x128xf32>
    %254 = arith.truncf %246 : vector<8x32xf32> to vector<8x32xbf16>
    %c0_103 = arith.constant 0 : index
    %c0_104 = arith.constant 0 : index
    %255 = vector.load %arg3[%c0_103, %c0_104] : memref<32x128xbf16, #tpu.memory_space<vmem>>, vector<32x128xbf16>
    %cst_105 = arith.constant dense<0.000000e+00> : vector<8x128xf32>
    %256 = tpu.matmul %254, %255, %cst_105 {dimension_numbers = #tpu.dot_dimension_numbers<[1], [0], [0], [1], [0, 0, 1, 1], [], []>} : vector<8x32xbf16>, vector<32x128xbf16>, vector<8x128xf32> -> vector<8x128xf32>
    %257 = arith.addf %253, %256 : vector<8x128xf32>
    %258 = arith.negf %257 : vector<8x128xf32>
    %259 = math.exp %258 : vector<8x128xf32>
    %cst_106 = arith.constant 1.000000e+00 : f32
    %260 = vector.broadcast %cst_106 : f32 to vector<8x128xf32>
    %261 = arith.addf %260, %259 : vector<8x128xf32>
    %262 = arith.divf %260, %261 : vector<8x128xf32>
    %263 = math.tanh %257 : vector<8x128xf32>
    %264 = vector.extract_strided_slice %262 {offsets = [0, 0], sizes = [8, 32], strides = [1, 1]} : vector<8x128xf32> to vector<8x32xf32>
    %265 = vector.extract_strided_slice %262 {offsets = [0, 32], sizes = [8, 32], strides = [1, 1]} : vector<8x128xf32> to vector<8x32xf32>
    %266 = vector.extract_strided_slice %263 {offsets = [0, 64], sizes = [8, 32], strides = [1, 1]} : vector<8x128xf32> to vector<8x32xf32>
    %267 = vector.extract_strided_slice %262 {offsets = [0, 96], sizes = [8, 32], strides = [1, 1]} : vector<8x128xf32> to vector<8x32xf32>
    %268 = arith.mulf %265, %244 : vector<8x32xf32>
    %269 = arith.mulf %264, %266 : vector<8x32xf32>
    %270 = arith.addf %268, %269 : vector<8x32xf32>
    %271 = math.tanh %270 : vector<8x32xf32>
    %272 = arith.mulf %267, %271 : vector<8x32xf32>
    %273 = tpu.concatenate %272, %0 in 1 : vector<8x32xf32>, vector<8x96xf32> -> vector<8x128xf32>
    %274 = arith.index_cast %251 : i32 to index
    %c0_107 = arith.constant 0 : index
    %275 = vector.load %arg12[%274, %c0_107] : memref<64x128xf32, #tpu.memory_space<vmem>>, vector<8x128xf32>
    tpu.vector_store %arg12[%274, %c0_107], %273 {strides = array<i32>} : memref<64x128xf32, #tpu.memory_space<vmem>>, vector<8x128xf32>,
    %c8_i32_108 = arith.constant 8 : i32
    %c0_109 = arith.constant 0 : index
    %c0_110 = arith.constant 0 : index
    %276 = vector.load %arg7[%c0_109, %c0_110] : memref<1x128xf32, #tpu.memory_space<vmem>>, vector<1x128xf32>
    %c0_111 = arith.constant 0 : index
    %c0_112 = arith.constant 0 : index
    %277 = vector.load %arg12[%c0_111, %c0_112] : memref<64x128xf32, #tpu.memory_space<vmem>>, vector<64x128xf32>
    %278 = arith.truncf %277 : vector<64x128xf32> to vector<64x128xbf16>
    %c0_113 = arith.constant 0 : index
    %c0_114 = arith.constant 0 : index
    %279 = vector.load %arg5[%c0_113, %c0_114] : memref<128x128xbf16, #tpu.memory_space<vmem>>, vector<128x128xbf16>
    %cst_115 = arith.constant dense<0.000000e+00> : vector<64x128xf32>
    %280 = tpu.matmul %278, %279, %cst_115 {dimension_numbers = #tpu.dot_dimension_numbers<[1], [0], [0], [1], [0, 0, 1, 1], [], []>} : vector<64x128xbf16>, vector<128x128xbf16>, vector<64x128xf32> -> vector<64x128xf32>
    %281 = vector.broadcast %276 : vector<1x128xf32> to vector<64x128xf32>
    %282 = arith.addf %280, %281 : vector<64x128xf32>
    %c0_116 = arith.constant 0 : index
    %c0_117 = arith.constant 0 : index
    %283 = vector.load %arg11[%c0_116, %c0_117] : memref<64x128xf32, #tpu.memory_space<vmem>>, vector<64x128xf32>
    tpu.vector_store %arg11[%c0_116, %c0_117], %282 {strides = array<i32>} : memref<64x128xf32, #tpu.memory_space<vmem>>, vector<64x128xf32>,
    %cst_118 = arith.constant 0.000000e+00 : f32
    %284 = vector.broadcast %cst_118 : f32 to vector<8x32xf32>
    %cst_119 = arith.constant 0.000000e+00 : f32
    %285 = vector.broadcast %cst_119 : f32 to vector<8x32xf32>
    %c0_i32_120 = arith.constant 0 : i32
    %c8_i32_121 = arith.constant 8 : i32
    %286 = arith.muli %c0_i32_120, %c8_i32_121 : i32
    %287 = tpu.assume_multiple %286, 8 : i32
    %288 = arith.index_cast %287 : i32 to index
    %c0_122 = arith.constant 0 : index
    %289 = vector.load %arg11[%288, %c0_122] : memref<64x128xf32, #tpu.memory_space<vmem>>, vector<8x128xf32>
    %290 = arith.truncf %284 : vector<8x32xf32> to vector<8x32xbf16>
    %c0_123 = arith.constant 0 : index
    %c0_124 = arith.constant 0 : index
    %291 = vector.load %arg6[%c0_123, %c0_124] : memref<32x128xbf16, #tpu.memory_space<vmem>>, vector<32x128xbf16>
    %cst_125 = arith.constant dense<0.000000e+00> : vector<8x128xf32>
    %292 = tpu.matmul %290, %291, %cst_125 {dimension_numbers = #tpu.dot_dimension_numbers<[1], [0], [0], [1], [0, 0, 1, 1], [], []>} : vector<8x32xbf16>, vector<32x128xbf16>, vector<8x128xf32> -> vector<8x128xf32>
    %293 = arith.addf %289, %292 : vector<8x128xf32>
    %294 = arith.negf %293 : vector<8x128xf32>
    %295 = math.exp %294 : vector<8x128xf32>
    %cst_126 = arith.constant 1.000000e+00 : f32
    %296 = vector.broadcast %cst_126 : f32 to vector<8x128xf32>
    %297 = arith.addf %296, %295 : vector<8x128xf32>
    %298 = arith.divf %296, %297 : vector<8x128xf32>
    %299 = math.tanh %293 : vector<8x128xf32>
    %300 = vector.extract_strided_slice %298 {offsets = [0, 0], sizes = [8, 32], strides = [1, 1]} : vector<8x128xf32> to vector<8x32xf32>
    %301 = vector.extract_strided_slice %298 {offsets = [0, 32], sizes = [8, 32], strides = [1, 1]} : vector<8x128xf32> to vector<8x32xf32>
    %302 = vector.extract_strided_slice %299 {offsets = [0, 64], sizes = [8, 32], strides = [1, 1]} : vector<8x128xf32> to vector<8x32xf32>
    %303 = vector.extract_strided_slice %298 {offsets = [0, 96], sizes = [8, 32], strides = [1, 1]} : vector<8x128xf32> to vector<8x32xf32>
    %304 = arith.mulf %301, %285 : vector<8x32xf32>
    %305 = arith.mulf %300, %302 : vector<8x32xf32>
    %306 = arith.addf %304, %305 : vector<8x32xf32>
    %307 = math.tanh %306 : vector<8x32xf32>
    %308 = arith.mulf %303, %307 : vector<8x32xf32>
    %c1_i32_127 = arith.constant 1 : i32
    %c8_i32_128 = arith.constant 8 : i32
    %309 = arith.muli %c1_i32_127, %c8_i32_128 : i32
    %310 = tpu.assume_multiple %309, 8 : i32
    %311 = arith.index_cast %310 : i32 to index
    %c0_129 = arith.constant 0 : index
    %312 = vector.load %arg11[%311, %c0_129] : memref<64x128xf32, #tpu.memory_space<vmem>>, vector<8x128xf32>
    %313 = arith.truncf %308 : vector<8x32xf32> to vector<8x32xbf16>
    %c0_130 = arith.constant 0 : index
    %c0_131 = arith.constant 0 : index
    %314 = vector.load %arg6[%c0_130, %c0_131] : memref<32x128xbf16, #tpu.memory_space<vmem>>, vector<32x128xbf16>
    %cst_132 = arith.constant dense<0.000000e+00> : vector<8x128xf32>
    %315 = tpu.matmul %313, %314, %cst_132 {dimension_numbers = #tpu.dot_dimension_numbers<[1], [0], [0], [1], [0, 0, 1, 1], [], []>} : vector<8x32xbf16>, vector<32x128xbf16>, vector<8x128xf32> -> vector<8x128xf32>
    %316 = arith.addf %312, %315 : vector<8x128xf32>
    %317 = arith.negf %316 : vector<8x128xf32>
    %318 = math.exp %317 : vector<8x128xf32>
    %cst_133 = arith.constant 1.000000e+00 : f32
    %319 = vector.broadcast %cst_133 : f32 to vector<8x128xf32>
    %320 = arith.addf %319, %318 : vector<8x128xf32>
    %321 = arith.divf %319, %320 : vector<8x128xf32>
    %322 = math.tanh %316 : vector<8x128xf32>
    %323 = vector.extract_strided_slice %321 {offsets = [0, 0], sizes = [8, 32], strides = [1, 1]} : vector<8x128xf32> to vector<8x32xf32>
    %324 = vector.extract_strided_slice %321 {offsets = [0, 32], sizes = [8, 32], strides = [1, 1]} : vector<8x128xf32> to vector<8x32xf32>
    %325 = vector.extract_strided_slice %322 {offsets = [0, 64], sizes = [8, 32], strides = [1, 1]} : vector<8x128xf32> to vector<8x32xf32>
    %326 = vector.extract_strided_slice %321 {offsets = [0, 96], sizes = [8, 32], strides = [1, 1]} : vector<8x128xf32> to vector<8x32xf32>
    %327 = arith.mulf %324, %306 : vector<8x32xf32>
    %328 = arith.mulf %323, %325 : vector<8x32xf32>
    %329 = arith.addf %327, %328 : vector<8x32xf32>
    %330 = math.tanh %329 : vector<8x32xf32>
    %331 = arith.mulf %326, %330 : vector<8x32xf32>
    %c2_i32_134 = arith.constant 2 : i32
    %c8_i32_135 = arith.constant 8 : i32
    %332 = arith.muli %c2_i32_134, %c8_i32_135 : i32
    %333 = tpu.assume_multiple %332, 8 : i32
    %334 = arith.index_cast %333 : i32 to index
    %c0_136 = arith.constant 0 : index
    %335 = vector.load %arg11[%334, %c0_136] : memref<64x128xf32, #tpu.memory_space<vmem>>, vector<8x128xf32>
    %336 = arith.truncf %331 : vector<8x32xf32> to vector<8x32xbf16>
    %c0_137 = arith.constant 0 : index
    %c0_138 = arith.constant 0 : index
    %337 = vector.load %arg6[%c0_137, %c0_138] : memref<32x128xbf16, #tpu.memory_space<vmem>>, vector<32x128xbf16>
    %cst_139 = arith.constant dense<0.000000e+00> : vector<8x128xf32>
    %338 = tpu.matmul %336, %337, %cst_139 {dimension_numbers = #tpu.dot_dimension_numbers<[1], [0], [0], [1], [0, 0, 1, 1], [], []>} : vector<8x32xbf16>, vector<32x128xbf16>, vector<8x128xf32> -> vector<8x128xf32>
    %339 = arith.addf %335, %338 : vector<8x128xf32>
    %340 = arith.negf %339 : vector<8x128xf32>
    %341 = math.exp %340 : vector<8x128xf32>
    %cst_140 = arith.constant 1.000000e+00 : f32
    %342 = vector.broadcast %cst_140 : f32 to vector<8x128xf32>
    %343 = arith.addf %342, %341 : vector<8x128xf32>
    %344 = arith.divf %342, %343 : vector<8x128xf32>
    %345 = math.tanh %339 : vector<8x128xf32>
    %346 = vector.extract_strided_slice %344 {offsets = [0, 0], sizes = [8, 32], strides = [1, 1]} : vector<8x128xf32> to vector<8x32xf32>
    %347 = vector.extract_strided_slice %344 {offsets = [0, 32], sizes = [8, 32], strides = [1, 1]} : vector<8x128xf32> to vector<8x32xf32>
    %348 = vector.extract_strided_slice %345 {offsets = [0, 64], sizes = [8, 32], strides = [1, 1]} : vector<8x128xf32> to vector<8x32xf32>
    %349 = vector.extract_strided_slice %344 {offsets = [0, 96], sizes = [8, 32], strides = [1, 1]} : vector<8x128xf32> to vector<8x32xf32>
    %350 = arith.mulf %347, %329 : vector<8x32xf32>
    %351 = arith.mulf %346, %348 : vector<8x32xf32>
    %352 = arith.addf %350, %351 : vector<8x32xf32>
    %353 = math.tanh %352 : vector<8x32xf32>
    %354 = arith.mulf %349, %353 : vector<8x32xf32>
    %c3_i32_141 = arith.constant 3 : i32
    %c8_i32_142 = arith.constant 8 : i32
    %355 = arith.muli %c3_i32_141, %c8_i32_142 : i32
    %356 = tpu.assume_multiple %355, 8 : i32
    %357 = arith.index_cast %356 : i32 to index
    %c0_143 = arith.constant 0 : index
    %358 = vector.load %arg11[%357, %c0_143] : memref<64x128xf32, #tpu.memory_space<vmem>>, vector<8x128xf32>
    %359 = arith.truncf %354 : vector<8x32xf32> to vector<8x32xbf16>
    %c0_144 = arith.constant 0 : index
    %c0_145 = arith.constant 0 : index
    %360 = vector.load %arg6[%c0_144, %c0_145] : memref<32x128xbf16, #tpu.memory_space<vmem>>, vector<32x128xbf16>
    %cst_146 = arith.constant dense<0.000000e+00> : vector<8x128xf32>
    %361 = tpu.matmul %359, %360, %cst_146 {dimension_numbers = #tpu.dot_dimension_numbers<[1], [0], [0], [1], [0, 0, 1, 1], [], []>} : vector<8x32xbf16>, vector<32x128xbf16>, vector<8x128xf32> -> vector<8x128xf32>
    %362 = arith.addf %358, %361 : vector<8x128xf32>
    %363 = arith.negf %362 : vector<8x128xf32>
    %364 = math.exp %363 : vector<8x128xf32>
    %cst_147 = arith.constant 1.000000e+00 : f32
    %365 = vector.broadcast %cst_147 : f32 to vector<8x128xf32>
    %366 = arith.addf %365, %364 : vector<8x128xf32>
    %367 = arith.divf %365, %366 : vector<8x128xf32>
    %368 = math.tanh %362 : vector<8x128xf32>
    %369 = vector.extract_strided_slice %367 {offsets = [0, 0], sizes = [8, 32], strides = [1, 1]} : vector<8x128xf32> to vector<8x32xf32>
    %370 = vector.extract_strided_slice %367 {offsets = [0, 32], sizes = [8, 32], strides = [1, 1]} : vector<8x128xf32> to vector<8x32xf32>
    %371 = vector.extract_strided_slice %368 {offsets = [0, 64], sizes = [8, 32], strides = [1, 1]} : vector<8x128xf32> to vector<8x32xf32>
    %372 = vector.extract_strided_slice %367 {offsets = [0, 96], sizes = [8, 32], strides = [1, 1]} : vector<8x128xf32> to vector<8x32xf32>
    %373 = arith.mulf %370, %352 : vector<8x32xf32>
    %374 = arith.mulf %369, %371 : vector<8x32xf32>
    %375 = arith.addf %373, %374 : vector<8x32xf32>
    %376 = math.tanh %375 : vector<8x32xf32>
    %377 = arith.mulf %372, %376 : vector<8x32xf32>
    %c4_i32_148 = arith.constant 4 : i32
    %c8_i32_149 = arith.constant 8 : i32
    %378 = arith.muli %c4_i32_148, %c8_i32_149 : i32
    %379 = tpu.assume_multiple %378, 8 : i32
    %380 = arith.index_cast %379 : i32 to index
    %c0_150 = arith.constant 0 : index
    %381 = vector.load %arg11[%380, %c0_150] : memref<64x128xf32, #tpu.memory_space<vmem>>, vector<8x128xf32>
    %382 = arith.truncf %377 : vector<8x32xf32> to vector<8x32xbf16>
    %c0_151 = arith.constant 0 : index
    %c0_152 = arith.constant 0 : index
    %383 = vector.load %arg6[%c0_151, %c0_152] : memref<32x128xbf16, #tpu.memory_space<vmem>>, vector<32x128xbf16>
    %cst_153 = arith.constant dense<0.000000e+00> : vector<8x128xf32>
    %384 = tpu.matmul %382, %383, %cst_153 {dimension_numbers = #tpu.dot_dimension_numbers<[1], [0], [0], [1], [0, 0, 1, 1], [], []>} : vector<8x32xbf16>, vector<32x128xbf16>, vector<8x128xf32> -> vector<8x128xf32>
    %385 = arith.addf %381, %384 : vector<8x128xf32>
    %386 = arith.negf %385 : vector<8x128xf32>
    %387 = math.exp %386 : vector<8x128xf32>
    %cst_154 = arith.constant 1.000000e+00 : f32
    %388 = vector.broadcast %cst_154 : f32 to vector<8x128xf32>
    %389 = arith.addf %388, %387 : vector<8x128xf32>
    %390 = arith.divf %388, %389 : vector<8x128xf32>
    %391 = math.tanh %385 : vector<8x128xf32>
    %392 = vector.extract_strided_slice %390 {offsets = [0, 0], sizes = [8, 32], strides = [1, 1]} : vector<8x128xf32> to vector<8x32xf32>
    %393 = vector.extract_strided_slice %390 {offsets = [0, 32], sizes = [8, 32], strides = [1, 1]} : vector<8x128xf32> to vector<8x32xf32>
    %394 = vector.extract_strided_slice %391 {offsets = [0, 64], sizes = [8, 32], strides = [1, 1]} : vector<8x128xf32> to vector<8x32xf32>
    %395 = vector.extract_strided_slice %390 {offsets = [0, 96], sizes = [8, 32], strides = [1, 1]} : vector<8x128xf32> to vector<8x32xf32>
    %396 = arith.mulf %393, %375 : vector<8x32xf32>
    %397 = arith.mulf %392, %394 : vector<8x32xf32>
    %398 = arith.addf %396, %397 : vector<8x32xf32>
    %399 = math.tanh %398 : vector<8x32xf32>
    %400 = arith.mulf %395, %399 : vector<8x32xf32>
    %c5_i32_155 = arith.constant 5 : i32
    %c8_i32_156 = arith.constant 8 : i32
    %401 = arith.muli %c5_i32_155, %c8_i32_156 : i32
    %402 = tpu.assume_multiple %401, 8 : i32
    %403 = arith.index_cast %402 : i32 to index
    %c0_157 = arith.constant 0 : index
    %404 = vector.load %arg11[%403, %c0_157] : memref<64x128xf32, #tpu.memory_space<vmem>>, vector<8x128xf32>
    %405 = arith.truncf %400 : vector<8x32xf32> to vector<8x32xbf16>
    %c0_158 = arith.constant 0 : index
    %c0_159 = arith.constant 0 : index
    %406 = vector.load %arg6[%c0_158, %c0_159] : memref<32x128xbf16, #tpu.memory_space<vmem>>, vector<32x128xbf16>
    %cst_160 = arith.constant dense<0.000000e+00> : vector<8x128xf32>
    %407 = tpu.matmul %405, %406, %cst_160 {dimension_numbers = #tpu.dot_dimension_numbers<[1], [0], [0], [1], [0, 0, 1, 1], [], []>} : vector<8x32xbf16>, vector<32x128xbf16>, vector<8x128xf32> -> vector<8x128xf32>
    %408 = arith.addf %404, %407 : vector<8x128xf32>
    %409 = arith.negf %408 : vector<8x128xf32>
    %410 = math.exp %409 : vector<8x128xf32>
    %cst_161 = arith.constant 1.000000e+00 : f32
    %411 = vector.broadcast %cst_161 : f32 to vector<8x128xf32>
    %412 = arith.addf %411, %410 : vector<8x128xf32>
    %413 = arith.divf %411, %412 : vector<8x128xf32>
    %414 = math.tanh %408 : vector<8x128xf32>
    %415 = vector.extract_strided_slice %413 {offsets = [0, 0], sizes = [8, 32], strides = [1, 1]} : vector<8x128xf32> to vector<8x32xf32>
    %416 = vector.extract_strided_slice %413 {offsets = [0, 32], sizes = [8, 32], strides = [1, 1]} : vector<8x128xf32> to vector<8x32xf32>
    %417 = vector.extract_strided_slice %414 {offsets = [0, 64], sizes = [8, 32], strides = [1, 1]} : vector<8x128xf32> to vector<8x32xf32>
    %418 = vector.extract_strided_slice %413 {offsets = [0, 96], sizes = [8, 32], strides = [1, 1]} : vector<8x128xf32> to vector<8x32xf32>
    %419 = arith.mulf %416, %398 : vector<8x32xf32>
    %420 = arith.mulf %415, %417 : vector<8x32xf32>
    %421 = arith.addf %419, %420 : vector<8x32xf32>
    %422 = math.tanh %421 : vector<8x32xf32>
    %423 = arith.mulf %418, %422 : vector<8x32xf32>
    %c6_i32_162 = arith.constant 6 : i32
    %c8_i32_163 = arith.constant 8 : i32
    %424 = arith.muli %c6_i32_162, %c8_i32_163 : i32
    %425 = tpu.assume_multiple %424, 8 : i32
    %426 = arith.index_cast %425 : i32 to index
    %c0_164 = arith.constant 0 : index
    %427 = vector.load %arg11[%426, %c0_164] : memref<64x128xf32, #tpu.memory_space<vmem>>, vector<8x128xf32>
    %428 = arith.truncf %423 : vector<8x32xf32> to vector<8x32xbf16>
    %c0_165 = arith.constant 0 : index
    %c0_166 = arith.constant 0 : index
    %429 = vector.load %arg6[%c0_165, %c0_166] : memref<32x128xbf16, #tpu.memory_space<vmem>>, vector<32x128xbf16>
    %cst_167 = arith.constant dense<0.000000e+00> : vector<8x128xf32>
    %430 = tpu.matmul %428, %429, %cst_167 {dimension_numbers = #tpu.dot_dimension_numbers<[1], [0], [0], [1], [0, 0, 1, 1], [], []>} : vector<8x32xbf16>, vector<32x128xbf16>, vector<8x128xf32> -> vector<8x128xf32>
    %431 = arith.addf %427, %430 : vector<8x128xf32>
    %432 = arith.negf %431 : vector<8x128xf32>
    %433 = math.exp %432 : vector<8x128xf32>
    %cst_168 = arith.constant 1.000000e+00 : f32
    %434 = vector.broadcast %cst_168 : f32 to vector<8x128xf32>
    %435 = arith.addf %434, %433 : vector<8x128xf32>
    %436 = arith.divf %434, %435 : vector<8x128xf32>
    %437 = math.tanh %431 : vector<8x128xf32>
    %438 = vector.extract_strided_slice %436 {offsets = [0, 0], sizes = [8, 32], strides = [1, 1]} : vector<8x128xf32> to vector<8x32xf32>
    %439 = vector.extract_strided_slice %436 {offsets = [0, 32], sizes = [8, 32], strides = [1, 1]} : vector<8x128xf32> to vector<8x32xf32>
    %440 = vector.extract_strided_slice %437 {offsets = [0, 64], sizes = [8, 32], strides = [1, 1]} : vector<8x128xf32> to vector<8x32xf32>
    %441 = vector.extract_strided_slice %436 {offsets = [0, 96], sizes = [8, 32], strides = [1, 1]} : vector<8x128xf32> to vector<8x32xf32>
    %442 = arith.mulf %439, %421 : vector<8x32xf32>
    %443 = arith.mulf %438, %440 : vector<8x32xf32>
    %444 = arith.addf %442, %443 : vector<8x32xf32>
    %445 = math.tanh %444 : vector<8x32xf32>
    %446 = arith.mulf %441, %445 : vector<8x32xf32>
    %c7_i32_169 = arith.constant 7 : i32
    %c8_i32_170 = arith.constant 8 : i32
    %447 = arith.muli %c7_i32_169, %c8_i32_170 : i32
    %448 = tpu.assume_multiple %447, 8 : i32
    %449 = arith.index_cast %448 : i32 to index
    %c0_171 = arith.constant 0 : index
    %450 = vector.load %arg11[%449, %c0_171] : memref<64x128xf32, #tpu.memory_space<vmem>>, vector<8x128xf32>
    %451 = arith.truncf %446 : vector<8x32xf32> to vector<8x32xbf16>
    %c0_172 = arith.constant 0 : index
    %c0_173 = arith.constant 0 : index
    %452 = vector.load %arg6[%c0_172, %c0_173] : memref<32x128xbf16, #tpu.memory_space<vmem>>, vector<32x128xbf16>
    %cst_174 = arith.constant dense<0.000000e+00> : vector<8x128xf32>
    %453 = tpu.matmul %451, %452, %cst_174 {dimension_numbers = #tpu.dot_dimension_numbers<[1], [0], [0], [1], [0, 0, 1, 1], [], []>} : vector<8x32xbf16>, vector<32x128xbf16>, vector<8x128xf32> -> vector<8x128xf32>
    %454 = arith.addf %450, %453 : vector<8x128xf32>
    %455 = arith.negf %454 : vector<8x128xf32>
    %456 = math.exp %455 : vector<8x128xf32>
    %cst_175 = arith.constant 1.000000e+00 : f32
    %457 = vector.broadcast %cst_175 : f32 to vector<8x128xf32>
    %458 = arith.addf %457, %456 : vector<8x128xf32>
    %459 = arith.divf %457, %458 : vector<8x128xf32>
    %460 = math.tanh %454 : vector<8x128xf32>
    %461 = vector.extract_strided_slice %459 {offsets = [0, 0], sizes = [8, 32], strides = [1, 1]} : vector<8x128xf32> to vector<8x32xf32>
    %462 = vector.extract_strided_slice %459 {offsets = [0, 32], sizes = [8, 32], strides = [1, 1]} : vector<8x128xf32> to vector<8x32xf32>
    %463 = vector.extract_strided_slice %460 {offsets = [0, 64], sizes = [8, 32], strides = [1, 1]} : vector<8x128xf32> to vector<8x32xf32>
    %464 = vector.extract_strided_slice %459 {offsets = [0, 96], sizes = [8, 32], strides = [1, 1]} : vector<8x128xf32> to vector<8x32xf32>
    %465 = arith.mulf %462, %444 : vector<8x32xf32>
    %466 = arith.mulf %461, %463 : vector<8x32xf32>
    %467 = arith.addf %465, %466 : vector<8x32xf32>
    %468 = math.tanh %467 : vector<8x32xf32>
    %469 = arith.mulf %464, %468 : vector<8x32xf32>
    %c8_i32_176 = arith.constant 8 : i32
    %c0_177 = arith.constant 0 : index
    %c0_178 = arith.constant 0 : index
    %470 = vector.load %arg8[%c0_177, %c0_178] : memref<32x128xf32, #tpu.memory_space<vmem>>, vector<32x128xf32>
    %cst_179 = arith.constant dense<0.000000e+00> : vector<8x128xf32>
    %471 = tpu.matmul %469, %470, %cst_179 {dimension_numbers = #tpu.dot_dimension_numbers<[1], [0], [0], [1], [0, 0, 1, 1], [], []>} : vector<8x32xf32>, vector<32x128xf32>, vector<8x128xf32> -> vector<8x128xf32>
    %c0_180 = arith.constant 0 : index
    %c0_181 = arith.constant 0 : index
    %472 = vector.load %arg9[%c0_180, %c0_181] : memref<1x128xf32, #tpu.memory_space<vmem>>, vector<1x128xf32>
    %473 = vector.broadcast %472 : vector<1x128xf32> to vector<8x128xf32>
    %474 = arith.addf %471, %473 : vector<8x128xf32>
    %c0_182 = arith.constant 0 : index
    %c0_183 = arith.constant 0 : index
    %475 = vector.load %arg10[%c0_182, %c0_183] : memref<8x128xf32, #tpu.memory_space<vmem>>, vector<8x128xf32>
    tpu.vector_store %arg10[%c0_182, %c0_183], %474 {strides = array<i32>} : memref<8x128xf32, #tpu.memory_space<vmem>>, vector<8x128xf32>,
    return
  }
  func.func @transform_0(%arg0: i32) -> (i32, i32, i32) {
    %c0_i32 = arith.constant 0 : i32
    %c0_i32_0 = arith.constant 0 : i32
    %c0_i32_1 = arith.constant 0 : i32
    return %arg0, %c0_i32, %c0_i32_0 : i32, i32, i32
  }
  func.func @transform_1(%arg0: i32) -> (i32, i32) {
    %c0_i32 = arith.constant 0 : i32
    %c0_i32_0 = arith.constant 0 : i32
    %c0_i32_1 = arith.constant 0 : i32
    return %c0_i32, %c0_i32_0 : i32, i32
  }
  func.func @transform_2(%arg0: i32) -> (i32, i32) {
    %c0_i32 = arith.constant 0 : i32
    %c0_i32_0 = arith.constant 0 : i32
    %c0_i32_1 = arith.constant 0 : i32
    return %c0_i32, %c0_i32_0 : i32, i32
  }
  func.func @transform_3(%arg0: i32) -> (i32, i32) {
    %c0_i32 = arith.constant 0 : i32
    %c0_i32_0 = arith.constant 0 : i32
    %c0_i32_1 = arith.constant 0 : i32
    return %c0_i32, %c0_i32_0 : i32, i32
  }
  func.func @transform_4(%arg0: i32) -> (i32, i32) {
    %c0_i32 = arith.constant 0 : i32
    %c0_i32_0 = arith.constant 0 : i32
    %c0_i32_1 = arith.constant 0 : i32
    return %c0_i32, %c0_i32_0 : i32, i32
  }
  func.func @transform_5(%arg0: i32) -> (i32, i32) {
    %c0_i32 = arith.constant 0 : i32
    %c0_i32_0 = arith.constant 0 : i32
    %c0_i32_1 = arith.constant 0 : i32
    return %c0_i32, %c0_i32_0 : i32, i32
  }
  func.func @transform_6(%arg0: i32) -> (i32, i32) {
    %c0_i32 = arith.constant 0 : i32
    %c0_i32_0 = arith.constant 0 : i32
    %c0_i32_1 = arith.constant 0 : i32
    return %c0_i32, %c0_i32_0 : i32, i32
  }
  func.func @transform_7(%arg0: i32) -> (i32, i32) {
    %c0_i32 = arith.constant 0 : i32
    %c0_i32_0 = arith.constant 0 : i32
    %c0_i32_1 = arith.constant 0 : i32
    return %c0_i32, %c0_i32_0 : i32, i32
  }
  func.func @transform_8(%arg0: i32) -> (i32, i32) {
    %c0_i32 = arith.constant 0 : i32
    %c0_i32_0 = arith.constant 0 : i32
    %c0_i32_1 = arith.constant 0 : i32
    return %c0_i32, %c0_i32_0 : i32, i32
  }
  func.func @transform_9(%arg0: i32) -> (i32, i32) {
    %c0_i32 = arith.constant 0 : i32
    %c0_i32_0 = arith.constant 0 : i32
    return %arg0, %c0_i32 : i32, i32
  }
}

</mosaic_0001>

<llo_original>
// kernel: tpu_custom_call.1
$region0: #{tpu_custom_call.1}
  #allocation0 [shape = 'u32[]', space=smem, size = 0x4, offset = 0x4, fixed_abs, tag = 'smem constant byte address 0x4 - core index']
  #allocation1 [shape = 'u32[144,128]{1,0:T(1,128)}', space=vmem, size = 0x12000, scoped, tag = 'internal scratch']
  #allocation2 [shape = 'f32[64,128]{1,0:T(8,128)}', space=vmem, size = 0x8000, scoped, tag = 'scratch operand']
  #allocation3 [shape = 'f32[64,128]{1,0:T(8,128)}', space=vmem, size = 0x8000, scoped, tag = 'scratch operand']
  %s0 = inlined_call_operand.vmem [shape: f32[8,8,4], index: 0, kind: input, shape index: {}]
  %s1 = inlined_call_operand.vmem [shape: bf16[4,128], index: 1, kind: input, shape index: {}]
  %s2 = inlined_call_operand.hbm [shape: bf16[32,128], index: 2, kind: input, shape index: {}]
  %s3 = inlined_call_operand.vmem [shape: f32[1,128], index: 3, kind: input, shape index: {}]
  %s4 = inlined_call_operand.vmem [shape: bf16[128,128], index: 4, kind: input, shape index: {}]
  %s5 = inlined_call_operand.hbm [shape: bf16[32,128], index: 5, kind: input, shape index: {}]
  %s6 = inlined_call_operand.vmem [shape: f32[1,128], index: 6, kind: input, shape index: {}]
  %s7 = inlined_call_operand.vmem [shape: f32[32,128], index: 7, kind: input, shape index: {}]
  %s8 = inlined_call_operand.vmem [shape: f32[1,128], index: 8, kind: input, shape index: {}]
  %s9 = inlined_call_operand.hbm [shape: f32[8,128], index: 9, kind: output, shape index: {}]
  %s10 = sld [smem:[#allocation0]]
  $region54: #{tpu_custom_call.1} parent=0
    _
  %s12 = ssub.s32 1, %s10
  %s13 = scalar_select 0, %s12, %s10
  $region1: #{tpu_custom_call.1} parent=0
    #allocation4 [shape = 'u8[8192]{0}', space=vmem, size = 0x2000, scoped, tag = 'input window, operand 2, single buffered']
    #allocation5 [shape = 's32[1]{0}', space=sflag, size = 0x4, scoped, tag = 'scoped memory for tpu_custom_call.1']
    #allocation6 [shape = 's32[1]{0}', space=sflag, size = 0x4, scoped, tag = 'scoped memory for tpu_custom_call.1']
    #allocation7 [shape = 'u8[8192]{0}', space=vmem, size = 0x2000, scoped, tag = 'input window, operand 5, single buffered']
    #allocation8 [shape = 's32[1]{0}', space=sflag, size = 0x4, scoped, tag = 'scoped memory for tpu_custom_call.1']
    #allocation9 [shape = 'u8[4096]{0}', space=vmem, size = 0x1000, scoped, tag = 'output window, operand 0, single buffered']
    %14 = vsyncpa [#allocation5], 0
    %15 = vsyncpa [#allocation8], 0
    %16 = vsyncpa [#allocation6], 0
    // Predicated region
    $region2: #{tpu_custom_call.1} parent=1 // pred_check
      _
    $region3: #{tpu_custom_call.1} parent=1 // pred_check_branch
      %18 = sbr.rel (0) target = $region5
    $region4: #{tpu_custom_call.1} parent=1 // pred_region
      _
    $region5: #{tpu_custom_call.1} parent=1 // pred_fallthru
      _
    // Predicated region
    $region6: #{tpu_custom_call.1} parent=1 // pred_check
      _
    $region7: #{tpu_custom_call.1} parent=1 // pred_check_branch
      %20 = sbr.rel (0) target = $region9
    $region8: #{tpu_custom_call.1} parent=1 // pred_region
      _
    $region9: #{tpu_custom_call.1} parent=1 // pred_fallthru
      _
    // Predicated region
    $region10: #{tpu_custom_call.1} parent=1 // pred_check
      _
    $region11: #{tpu_custom_call.1} parent=1 // pred_check_branch
      %22 = sbr.rel (0) target = $region13
    $region12: #{tpu_custom_call.1} parent=1 // pred_region
      %s24 = ssub.s32 256, 256
      %25 = vsyncadd [#allocation5], %s24
      %s26 = sshll.u32 [#allocation4], 4
      %s27 = int_to_ptr.vmem [resolvable:$true] %s26
      %32 = dma.hbm_to_vmem [thread:$0]  %s2, 256, %s27, [#allocation5], 64, 64, 4
    $region13: #{tpu_custom_call.1} parent=1 // pred_fallthru
      _
    // Predicated region
    $region14: #{tpu_custom_call.1} parent=1 // pred_check
      _
    $region15: #{tpu_custom_call.1} parent=1 // pred_check_branch
      %34 = sbr.rel (0) target = $region17
    $region16: #{tpu_custom_call.1} parent=1 // pred_region
      _
    $region17: #{tpu_custom_call.1} parent=1 // pred_fallthru
      _
    // Predicated region
    $region18: #{tpu_custom_call.1} parent=1 // pred_check
      _
    $region19: #{tpu_custom_call.1} parent=1 // pred_check_branch
      %36 = sbr.rel (0) target = $region21
    $region20: #{tpu_custom_call.1} parent=1 // pred_region
      _
    $region21: #{tpu_custom_call.1} parent=1 // pred_fallthru
      _
    // Predicated region
    $region22: #{tpu_custom_call.1} parent=1 // pred_check
      _
    $region23: #{tpu_custom_call.1} parent=1 // pred_check_branch
      %38 = sbr.rel (0) target = $region25
    $region24: #{tpu_custom_call.1} parent=1 // pred_region
      %s40 = ssub.s32 256, 256
      %41 = vsyncadd [#allocation8], %s40
      %s42 = sshll.u32 [#allocation7], 4
      %s43 = int_to_ptr.vmem [resolvable:$true] %s42
      %48 = dma.hbm_to_vmem [thread:$0]  %s5, 256, %s43, [#allocation8], 64, 64, 4
    $region25: #{tpu_custom_call.1} parent=1 // pred_fallthru
      _
    // Predicated region
    $region26: #{tpu_custom_call.1} parent=1 // pred_check
      _
    $region27: #{tpu_custom_call.1} parent=1 // pred_check_branch
      %50 = sbr.rel (0) target = $region29
    $region28: #{tpu_custom_call.1} parent=1 // pred_region
      _
    $region29: #{tpu_custom_call.1} parent=1 // pred_fallthru
      _
    // Predicated region
    $region30: #{tpu_custom_call.1} parent=1 // pred_check
      _
    $region31: #{tpu_custom_call.1} parent=1 // pred_check_branch
      %52 = sbr.rel (0) target = $region33
    $region32: #{tpu_custom_call.1} parent=1 // pred_region
      _
    $region33: #{tpu_custom_call.1} parent=1 // pred_fallthru
      _
    // Predicated region
    $region34: #{tpu_custom_call.1} parent=1 // pred_check
      _
    $region35: #{tpu_custom_call.1} parent=1 // pred_check_branch
      %54 = sbr.rel (0) target = $region37
    $region36: #{tpu_custom_call.1} parent=1 // pred_region
      _
    $region37: #{tpu_custom_call.1} parent=1 // pred_fallthru
      _
    // Predicated region
    $region38: #{tpu_custom_call.1} parent=1 // pred_check
      _
    $region39: #{tpu_custom_call.1} parent=1 // pred_check_branch
      %56 = sbr.rel (0) target = $region41
    $region40: #{tpu_custom_call.1} parent=1 // pred_region
      %57 = dma.done [#allocation5], 256
    $region41: #{tpu_custom_call.1} parent=1 // pred_fallthru
      _
    // Predicated region
    $region42: #{tpu_custom_call.1} parent=1 // pred_check
      _
    $region43: #{tpu_custom_call.1} parent=1 // pred_check_branch
      %59 = sbr.rel (0) target = $region45
    $region44: #{tpu_custom_call.1} parent=1 // pred_region
      %60 = dma.done [#allocation8], 256
    $region45: #{tpu_custom_call.1} parent=1 // pred_fallthru
      _
    %v62 = vld [vmem:[%s3] sm:$0x1]
    %v63 = vld [vmem:[%s0] sm:$0x1]
    %v64 = vld [vmem:[%s0 + $0x8] sm:$0x1]
    %v65 = vld [vmem:[%s0 + $0x10] sm:$0x1]
    %v66 = vld [vmem:[%s0 + $0x18] sm:$0x1]
    %v67 = vld [vmem:[%s0 + $0x20] sm:$0x1]
    %v68 = vld [vmem:[%s0 + $0x28] sm:$0x1]
    %v69 = vld [vmem:[%s0 + $0x30] sm:$0x1]
    %v70 = vld [vmem:[%s0 + $0x38] sm:$0x1]
    %v71 = vpack.c.bf16 %v63, %v63
    %v72 = vpack.c.bf16 %v64, %v64
    %v73 = vpack.c.bf16 %v65, %v65
    %v74 = vpack.c.bf16 %v66, %v66
    %v75 = vpack.c.bf16 %v67, %v67
    %v76 = vpack.c.bf16 %v68, %v68
    %v77 = vpack.c.bf16 %v69, %v69
    %v78 = vpack.c.bf16 %v70, %v70
    %v79 = vld [vmem:[%s1] sm:$0x3]
    %v81 = vlaneseq
    %v82 = vshrl.u32 %v81, 7
    %v83 = vsub.s32 0, %v82
    %v84 = vrot.slane %v62, %v83
    %v94 = vunpack.c.l.b16 %v71
    %v95 = vunpack.c.l.b16 %v72
    %v96 = vunpack.c.l.b16 %v73
    %v97 = vunpack.c.l.b16 %v74
    %v98 = vunpack.c.l.b16 %v75
    %v99 = vunpack.c.l.b16 %v76
    %v100 = vunpack.c.l.b16 %v77
    %v101 = vunpack.c.l.b16 %v78
    %v102 = vrot.slane %v95, 7
    %vm103 = vcmask 1041409
    %v104 = vsel %vm103, %v102, %v94
    %v105 = vrot.slane %v96, 6
    %vm106 = vcmask 1042434
    %v107 = vsel %vm106, %v105, %v104
    %v108 = vrot.slane %v97, 5
    %vm109 = vcmask 1043459
    %v110 = vsel %vm109, %v108, %v107
    %v111 = vrot.slane %v98, 4
    %vm112 = vcmask 1044484
    %v113 = vsel %vm112, %v111, %v110
    %v114 = vrot.slane %v99, 3
    %vm115 = vcmask 1045509
    %v116 = vsel %vm115, %v114, %v113
    %v117 = vrot.slane %v100, 2
    %vm118 = vcmask 1046534
    %v119 = vsel %vm118, %v117, %v116
    %v120 = vrot.slane %v101, 1
    %vm121 = vcmask 1047559
    %v122 = vsel %vm121, %v120, %v119
    %v123 = vpack.c.b16 %v122, %v122
    %vm124 = vcmask 31744
    %v126 = vsel %vm124, %v123, 0
    %vm128 = vcmask 1041408
    %v130 = vsel %vm128, %v79, 0
    %132 = vmatprep.subr.bf16.mxu0 0
    %133 = vmatpush1.bf16.msra.mxu0 0
    %134 = vmatprep.subr.bf16.mxu0 0
    %135 = vmatpush1.bf16.msra.mxu0 0
    %136 = vmatprep.subr.bf16.mxu0 0
    %137 = vmatpush1.bf16.msra.mxu0 0
    %138 = vmatprep.subr.bf16.mxu0 0
    %139 = vmatpush1.bf16.msra.mxu0 0
    %140 = vmatprep.subr.bf16.mxu0 0
    %141 = vmatpush1.bf16.msra.mxu0 0
    %142 = vmatprep.subr.bf16.mxu0 0
    %143 = vmatpush1.bf16.msra.mxu0 0
    %144 = vmatprep.subr.bf16.mxu0 0
    %145 = vmatpush1.bf16.msra.mxu0 0
    %146 = vmatprep.subr.bf16.mxu0 0
    %147 = vmatpush1.bf16.msra.mxu0 %v130
    %148 = vmatprep.subr.bf16.mxu0 0
    %149 = vmatpush2.bf16.msra.mxu0 0
    %150 = vmatprep.subr.bf16.mxu0 0
    %151 = vmatpush2.bf16.msra.mxu0 0
    %152 = vmatprep.subr.bf16.mxu0 0
    %153 = vmatpush2.bf16.msra.mxu0 0
    %154 = vmatprep.subr.bf16.mxu0 0
    %155 = vmatpush2.bf16.msra.mxu0 0
    %156 = vmatprep.subr.bf16.mxu0 0
    %157 = vmatpush2.bf16.msra.mxu0 0
    %158 = vmatprep.subr.bf16.mxu0 0
    %159 = vmatpush2.bf16.msra.mxu0 0
    %160 = vmatprep.subr.bf16.mxu0 0
    %161 = vmatpush2.bf16.msra.mxu0 0
    %162 = vmatprep.subr.bf16.mxu0 0
    %163 = vmatpush2.bf16.msra.mxu0 0
    %164 = vmatprep.mubr.bf16.mxu0 0
    %165 = vmatmul.mubr.bf16.gmra.mxu0 %v126
    %v166 = vpop.f32.mrf.mxu0
    %v167 = vadd.f32 %v84, %v166
    %v168 = vpop.f32.mrf.mxu0
    %v169 = vpop.f32.mrf.mxu0
    %v170 = vpop.f32.mrf.mxu0
    %171 = vdwg.mxu0
    %172 = vst [vmem:[#allocation2] sm:$0xff] %v167
    %v173 = vld [vmem:[%s0 + $0x1] sm:$0x1]
    %v174 = vld [vmem:[%s0 + $0x9] sm:$0x1]
    %v175 = vld [vmem:[%s0 + $0x11] sm:$0x1]
    %v176 = vld [vmem:[%s0 + $0x19] sm:$0x1]
    %v177 = vld [vmem:[%s0 + $0x21] sm:$0x1]
    %v178 = vld [vmem:[%s0 + $0x29] sm:$0x1]
    %v179 = vld [vmem:[%s0 + $0x31] sm:$0x1]
    %v180 = vld [vmem:[%s0 + $0x39] sm:$0x1]
    %v181 = vpack.c.bf16 %v173, %v173
    %v182 = vpack.c.bf16 %v174, %v174
    %v183 = vpack.c.bf16 %v175, %v175
    %v184 = vpack.c.bf16 %v176, %v176
    %v185 = vpack.c.bf16 %v177, %v177
    %v186 = vpack.c.bf16 %v178, %v178
    %v187 = vpack.c.bf16 %v179, %v179
    %v188 = vpack.c.bf16 %v180, %v180
    %v189 = vld [vmem:[%s1] sm:$0x3]
    %v198 = vunpack.c.l.b16 %v181
    %v199 = vunpack.c.l.b16 %v182
    %v200 = vunpack.c.l.b16 %v183
    %v201 = vunpack.c.l.b16 %v184
    %v202 = vunpack.c.l.b16 %v185
    %v203 = vunpack.c.l.b16 %v186
    %v204 = vunpack.c.l.b16 %v187
    %v205 = vunpack.c.l.b16 %v188
    %v206 = vrot.slane %v199, 7
    %v207 = vsel %vm103, %v206, %v198
    %v208 = vrot.slane %v200, 6
    %v209 = vsel %vm106, %v208, %v207
    %v210 = vrot.slane %v201, 5
    %v211 = vsel %vm109, %v210, %v209
    %v212 = vrot.slane %v202, 4
    %v213 = vsel %vm112, %v212, %v211
    %v214 = vrot.slane %v203, 3
    %v215 = vsel %vm115, %v214, %v213
    %v216 = vrot.slane %v204, 2
    %v217 = vsel %vm118, %v216, %v215
    %v218 = vrot.slane %v205, 1
    %v219 = vsel %vm121, %v218, %v217
    %v220 = vpack.c.b16 %v219, %v219
    %v222 = vsel %vm124, %v220, 0
    %v225 = vsel %vm128, %v189, 0
    %227 = vmatprep.subr.bf16.mxu0 0
    %228 = vmatpush1.bf16.msra.mxu0 0
    %229 = vmatprep.subr.bf16.mxu0 0
    %230 = vmatpush1.bf16.msra.mxu0 0
    %231 = vmatprep.subr.bf16.mxu0 0
    %232 = vmatpush1.bf16.msra.mxu0 0
    %233 = vmatprep.subr.bf16.mxu0 0
    %234 = vmatpush1.bf16.msra.mxu0 0
    %235 = vmatprep.subr.bf16.mxu0 0
    %236 = vmatpush1.bf16.msra.mxu0 0
    %237 = vmatprep.subr.bf16.mxu0 0
    %238 = vmatpush1.bf16.msra.mxu0 0
    %239 = vmatprep.subr.bf16.mxu0 0
    %240 = vmatpush1.bf16.msra.mxu0 0
    %241 = vmatprep.subr.bf16.mxu0 0
    %242 = vmatpush1.bf16.msra.mxu0 %v225
    %243 = vmatprep.subr.bf16.mxu0 0
    %244 = vmatpush2.bf16.msra.mxu0 0
    %245 = vmatprep.subr.bf16.mxu0 0
    %246 = vmatpush2.bf16.msra.mxu0 0
    %247 = vmatprep.subr.bf16.mxu0 0
    %248 = vmatpush2.bf16.msra.mxu0 0
    %249 = vmatprep.subr.bf16.mxu0 0
    %250 = vmatpush2.bf16.msra.mxu0 0
    %251 = vmatprep.subr.bf16.mxu0 0
    %252 = vmatpush2.bf16.msra.mxu0 0
    %253 = vmatprep.subr.bf16.mxu0 0
    %254 = vmatpush2.bf16.msra.mxu0 0
    %255 = vmatprep.subr.bf16.mxu0 0
    %256 = vmatpush2.bf16.msra.mxu0 0
    %257 = vmatprep.subr.bf16.mxu0 0
    %258 = vmatpush2.bf16.msra.mxu0 0
    %259 = vmatprep.mubr.bf16.mxu0 0
    %260 = vmatmul.mubr.bf16.gmra.mxu0 %v222
    %v261 = vpop.f32.mrf.mxu0
    %v262 = vadd.f32 %v84, %v261
    %v263 = vpop.f32.mrf.mxu0
    %v264 = vpop.f32.mrf.mxu0
    %v265 = vpop.f32.mrf.mxu0
    %266 = vdwg.mxu0
    %267 = vst [vmem:[#allocation2 + $0x8] sm:$0xff] %v262
    %v268 = vld [vmem:[%s0 + $0x2] sm:$0x1]
    %v269 = vld [vmem:[%s0 + $0xa] sm:$0x1]
    %v270 = vld [vmem:[%s0 + $0x12] sm:$0x1]
    %v271 = vld [vmem:[%s0 + $0x1a] sm:$0x1]
    %v272 = vld [vmem:[%s0 + $0x22] sm:$0x1]
    %v273 = vld [vmem:[%s0 + $0x2a] sm:$0x1]
    %v274 = vld [vmem:[%s0 + $0x32] sm:$0x1]
    %v275 = vld [vmem:[%s0 + $0x3a] sm:$0x1]
    %v276 = vpack.c.bf16 %v268, %v268
    %v277 = vpack.c.bf16 %v269, %v269
    %v278 = vpack.c.bf16 %v270, %v270
    %v279 = vpack.c.bf16 %v271, %v271
    %v280 = vpack.c.bf16 %v272, %v272
    %v281 = vpack.c.bf16 %v273, %v273
    %v282 = vpack.c.bf16 %v274, %v274
    %v283 = vpack.c.bf16 %v275, %v275
    %v284 = vld [vmem:[%s1] sm:$0x3]
    %v293 = vunpack.c.l.b16 %v276
    %v294 = vunpack.c.l.b16 %v277
    %v295 = vunpack.c.l.b16 %v278
    %v296 = vunpack.c.l.b16 %v279
    %v297 = vunpack.c.l.b16 %v280
    %v298 = vunpack.c.l.b16 %v281
    %v299 = vunpack.c.l.b16 %v282
    %v300 = vunpack.c.l.b16 %v283
    %v301 = vrot.slane %v294, 7
    %v302 = vsel %vm103, %v301, %v293
    %v303 = vrot.slane %v295, 6
    %v304 = vsel %vm106, %v303, %v302
    %v305 = vrot.slane %v296, 5
    %v306 = vsel %vm109, %v305, %v304
    %v307 = vrot.slane %v297, 4
    %v308 = vsel %vm112, %v307, %v306
    %v309 = vrot.slane %v298, 3
    %v310 = vsel %vm115, %v309, %v308
    %v311 = vrot.slane %v299, 2
    %v312 = vsel %vm118, %v311, %v310
    %v313 = vrot.slane %v300, 1
    %v314 = vsel %vm121, %v313, %v312
    %v315 = vpack.c.b16 %v314, %v314
    %v317 = vsel %vm124, %v315, 0
    %v320 = vsel %vm128, %v284, 0
    %322 = vmatprep.subr.bf16.mxu0 0
    %323 = vmatpush1.bf16.msra.mxu0 0
    %324 = vmatprep.subr.bf16.mxu0 0
    %325 = vmatpush1.bf16.msra.mxu0 0
    %326 = vmatprep.subr.bf16.mxu0 0
    %327 = vmatpush1.bf16.msra.mxu0 0
    %328 = vmatprep.subr.bf16.mxu0 0
    %329 = vmatpush1.bf16.msra.mxu0 0
    %330 = vmatprep.subr.bf16.mxu0 0
    %331 = vmatpush1.bf16.msra.mxu0 0
    %332 = vmatprep.subr.bf16.mxu0 0
    %333 = vmatpush1.bf16.msra.mxu0 0
    %334 = vmatprep.subr.bf16.mxu0 0
    %335 = vmatpush1.bf16.msra.mxu0 0
    %336 = vmatprep.subr.bf16.mxu0 0
    %337 = vmatpush1.bf16.msra.mxu0 %v320
    %338 = vmatprep.subr.bf16.mxu0 0
    %339 = vmatpush2.bf16.msra.mxu0 0
    %340 = vmatprep.subr.bf16.mxu0 0
    %341 = vmatpush2.bf16.msra.mxu0 0
    %342 = vmatprep.subr.bf16.mxu0 0
    %343 = vmatpush2.bf16.msra.mxu0 0
    %344 = vmatprep.subr.bf16.mxu0 0
    %345 = vmatpush2.bf16.msra.mxu0 0
    %346 = vmatprep.subr.bf16.mxu0 0
    %347 = vmatpush2.bf16.msra.mxu0 0
    %348 = vmatprep.subr.bf16.mxu0 0
    %349 = vmatpush2.bf16.msra.mxu0 0
    %350 = vmatprep.subr.bf16.mxu0 0
    %351 = vmatpush2.bf16.msra.mxu0 0
    %352 = vmatprep.subr.bf16.mxu0 0
    %353 = vmatpush2.bf16.msra.mxu0 0
    %354 = vmatprep.mubr.bf16.mxu0 0
    %355 = vmatmul.mubr.bf16.gmra.mxu0 %v317
    %v356 = vpop.f32.mrf.mxu0
    %v357 = vadd.f32 %v84, %v356
    %v358 = vpop.f32.mrf.mxu0
    %v359 = vpop.f32.mrf.mxu0
    %v360 = vpop.f32.mrf.mxu0
    %361 = vdwg.mxu0
    %362 = vst [vmem:[#allocation2 + $0x10] sm:$0xff] %v357
    %v363 = vld [vmem:[%s0 + $0x3] sm:$0x1]
    %v364 = vld [vmem:[%s0 + $0xb] sm:$0x1]
    %v365 = vld [vmem:[%s0 + $0x13] sm:$0x1]
    %v366 = vld [vmem:[%s0 + $0x1b] sm:$0x1]
    %v367 = vld [vmem:[%s0 + $0x23] sm:$0x1]
    %v368 = vld [vmem:[%s0 + $0x2b] sm:$0x1]
    %v369 = vld [vmem:[%s0 + $0x33] sm:$0x1]
    %v370 = vld [vmem:[%s0 + $0x3b] sm:$0x1]
    %v371 = vpack.c.bf16 %v363, %v363
    %v372 = vpack.c.bf16 %v364, %v364
    %v373 = vpack.c.bf16 %v365, %v365
    %v374 = vpack.c.bf16 %v366, %v366
    %v375 = vpack.c.bf16 %v367, %v367
    %v376 = vpack.c.bf16 %v368, %v368
    %v377 = vpack.c.bf16 %v369, %v369
    %v378 = vpack.c.bf16 %v370, %v370
    %v379 = vld [vmem:[%s1] sm:$0x3]
    %v388 = vunpack.c.l.b16 %v371
    %v389 = vunpack.c.l.b16 %v372
    %v390 = vunpack.c.l.b16 %v373
    %v391 = vunpack.c.l.b16 %v374
    %v392 = vunpack.c.l.b16 %v375
    %v393 = vunpack.c.l.b16 %v376
    %v394 = vunpack.c.l.b16 %v377
    %v395 = vunpack.c.l.b16 %v378
    %v396 = vrot.slane %v389, 7
    %v397 = vsel %vm103, %v396, %v388
    %v398 = vrot.slane %v390, 6
    %v399 = vsel %vm106, %v398, %v397
    %v400 = vrot.slane %v391, 5
    %v401 = vsel %vm109, %v400, %v399
    %v402 = vrot.slane %v392, 4
    %v403 = vsel %vm112, %v402, %v401
    %v404 = vrot.slane %v393, 3
    %v405 = vsel %vm115, %v404, %v403
    %v406 = vrot.slane %v394, 2
    %v407 = vsel %vm118, %v406, %v405
    %v408 = vrot.slane %v395, 1
    %v409 = vsel %vm121, %v408, %v407
    %v410 = vpack.c.b16 %v409, %v409
    %v412 = vsel %vm124, %v410, 0
    %v415 = vsel %vm128, %v379, 0
    %417 = vmatprep.subr.bf16.mxu0 0
    %418 = vmatpush1.bf16.msra.mxu0 0
    %419 = vmatprep.subr.bf16.mxu0 0
    %420 = vmatpush1.bf16.msra.mxu0 0
    %421 = vmatprep.subr.bf16.mxu0 0
    %422 = vmatpush1.bf16.msra.mxu0 0
    %423 = vmatprep.subr.bf16.mxu0 0
    %424 = vmatpush1.bf16.msra.mxu0 0
    %425 = vmatprep.subr.bf16.mxu0 0
    %426 = vmatpush1.bf16.msra.mxu0 0
    %427 = vmatprep.subr.bf16.mxu0 0
    %428 = vmatpush1.bf16.msra.mxu0 0
    %429 = vmatprep.subr.bf16.mxu0 0
    %430 = vmatpush1.bf16.msra.mxu0 0
    %431 = vmatprep.subr.bf16.mxu0 0
    %432 = vmatpush1.bf16.msra.mxu0 %v415
    %433 = vmatprep.subr.bf16.mxu0 0
    %434 = vmatpush2.bf16.msra.mxu0 0
    %435 = vmatprep.subr.bf16.mxu0 0
    %436 = vmatpush2.bf16.msra.mxu0 0
    %437 = vmatprep.subr.bf16.mxu0 0
    %438 = vmatpush2.bf16.msra.mxu0 0
    %439 = vmatprep.subr.bf16.mxu0 0
    %440 = vmatpush2.bf16.msra.mxu0 0
    %441 = vmatprep.subr.bf16.mxu0 0
    %442 = vmatpush2.bf16.msra.mxu0 0
    %443 = vmatprep.subr.bf16.mxu0 0
    %444 = vmatpush2.bf16.msra.mxu0 0
    %445 = vmatprep.subr.bf16.mxu0 0
    %446 = vmatpush2.bf16.msra.mxu0 0
    %447 = vmatprep.subr.bf16.mxu0 0
    %448 = vmatpush2.bf16.msra.mxu0 0
    %449 = vmatprep.mubr.bf16.mxu0 0
    %450 = vmatmul.mubr.bf16.gmra.mxu0 %v412
    %v451 = vpop.f32.mrf.mxu0
    %v452 = vadd.f32 %v84, %v451
    %v453 = vpop.f32.mrf.mxu0
    %v454 = vpop.f32.mrf.mxu0
    %v455 = vpop.f32.mrf.mxu0
    %456 = vdwg.mxu0
    %457 = vst [vmem:[#allocation2 + $0x18] sm:$0xff] %v452
    %v458 = vld [vmem:[%s0 + $0x4] sm:$0x1]
    %v459 = vld [vmem:[%s0 + $0xc] sm:$0x1]
    %v460 = vld [vmem:[%s0 + $0x14] sm:$0x1]
    %v461 = vld [vmem:[%s0 + $0x1c] sm:$0x1]
    %v462 = vld [vmem:[%s0 + $0x24] sm:$0x1]
    %v463 = vld [vmem:[%s0 + $0x2c] sm:$0x1]
    %v464 = vld [vmem:[%s0 + $0x34] sm:$0x1]
    %v465 = vld [vmem:[%s0 + $0x3c] sm:$0x1]
    %v466 = vpack.c.bf16 %v458, %v458
    %v467 = vpack.c.bf16 %v459, %v459
    %v468 = vpack.c.bf16 %v460, %v460
    %v469 = vpack.c.bf16 %v461, %v461
    %v470 = vpack.c.bf16 %v462, %v462
    %v471 = vpack.c.bf16 %v463, %v463
    %v472 = vpack.c.bf16 %v464, %v464
    %v473 = vpack.c.bf16 %v465, %v465
    %v474 = vld [vmem:[%s1] sm:$0x3]
    %v483 = vunpack.c.l.b16 %v466
    %v484 = vunpack.c.l.b16 %v467
    %v485 = vunpack.c.l.b16 %v468
    %v486 = vunpack.c.l.b16 %v469
    %v487 = vunpack.c.l.b16 %v470
    %v488 = vunpack.c.l.b16 %v471
    %v489 = vunpack.c.l.b16 %v472
    %v490 = vunpack.c.l.b16 %v473
    %v491 = vrot.slane %v484, 7
    %v492 = vsel %vm103, %v491, %v483
    %v493 = vrot.slane %v485, 6
    %v494 = vsel %vm106, %v493, %v492
    %v495 = vrot.slane %v486, 5
    %v496 = vsel %vm109, %v495, %v494
    %v497 = vrot.slane %v487, 4
    %v498 = vsel %vm112, %v497, %v496
    %v499 = vrot.slane %v488, 3
    %v500 = vsel %vm115, %v499, %v498
    %v501 = vrot.slane %v489, 2
    %v502 = vsel %vm118, %v501, %v500
    %v503 = vrot.slane %v490, 1
    %v504 = vsel %vm121, %v503, %v502
    %v505 = vpack.c.b16 %v504, %v504
    %v507 = vsel %vm124, %v505, 0
    %v510 = vsel %vm128, %v474, 0
    %512 = vmatprep.subr.bf16.mxu0 0
    %513 = vmatpush1.bf16.msra.mxu0 0
    %514 = vmatprep.subr.bf16.mxu0 0
    %515 = vmatpush1.bf16.msra.mxu0 0
    %516 = vmatprep.subr.bf16.mxu0 0
    %517 = vmatpush1.bf16.msra.mxu0 0
    %518 = vmatprep.subr.bf16.mxu0 0
    %519 = vmatpush1.bf16.msra.mxu0 0
    %520 = vmatprep.subr.bf16.mxu0 0
    %521 = vmatpush1.bf16.msra.mxu0 0
    %522 = vmatprep.subr.bf16.mxu0 0
    %523 = vmatpush1.bf16.msra.mxu0 0
    %524 = vmatprep.subr.bf16.mxu0 0
    %525 = vmatpush1.bf16.msra.mxu0 0
    %526 = vmatprep.subr.bf16.mxu0 0
    %527 = vmatpush1.bf16.msra.mxu0 %v510
    %528 = vmatprep.subr.bf16.mxu0 0
    %529 = vmatpush2.bf16.msra.mxu0 0
    %530 = vmatprep.subr.bf16.mxu0 0
    %531 = vmatpush2.bf16.msra.mxu0 0
    %532 = vmatprep.subr.bf16.mxu0 0
    %533 = vmatpush2.bf16.msra.mxu0 0
    %534 = vmatprep.subr.bf16.mxu0 0
    %535 = vmatpush2.bf16.msra.mxu0 0
    %536 = vmatprep.subr.bf16.mxu0 0
    %537 = vmatpush2.bf16.msra.mxu0 0
    %538 = vmatprep.subr.bf16.mxu0 0
    %539 = vmatpush2.bf16.msra.mxu0 0
    %540 = vmatprep.subr.bf16.mxu0 0
    %541 = vmatpush2.bf16.msra.mxu0 0
    %542 = vmatprep.subr.bf16.mxu0 0
    %543 = vmatpush2.bf16.msra.mxu0 0
    %544 = vmatprep.mubr.bf16.mxu0 0
    %545 = vmatmul.mubr.bf16.gmra.mxu0 %v507
    %v546 = vpop.f32.mrf.mxu0
    %v547 = vadd.f32 %v84, %v546
    %v548 = vpop.f32.mrf.mxu0
    %v549 = vpop.f32.mrf.mxu0
    %v550 = vpop.f32.mrf.mxu0
    %551 = vdwg.mxu0
    %552 = vst [vmem:[#allocation2 + $0x20] sm:$0xff] %v547
    %v553 = vld [vmem:[%s0 + $0x5] sm:$0x1]
    %v554 = vld [vmem:[%s0 + $0xd] sm:$0x1]
    %v555 = vld [vmem:[%s0 + $0x15] sm:$0x1]
    %v556 = vld [vmem:[%s0 + $0x1d] sm:$0x1]
    %v557 = vld [vmem:[%s0 + $0x25] sm:$0x1]
    %v558 = vld [vmem:[%s0 + $0x2d] sm:$0x1]
    %v559 = vld [vmem:[%s0 + $0x35] sm:$0x1]
    %v560 = vld [vmem:[%s0 + $0x3d] sm:$0x1]
    %v561 = vpack.c.bf16 %v553, %v553
    %v562 = vpack.c.bf16 %v554, %v554
    %v563 = vpack.c.bf16 %v555, %v555
    %v564 = vpack.c.bf16 %v556, %v556
    %v565 = vpack.c.bf16 %v557, %v557
    %v566 = vpack.c.bf16 %v558, %v558
    %v567 = vpack.c.bf16 %v559, %v559
    %v568 = vpack.c.bf16 %v560, %v560
    %v569 = vld [vmem:[%s1] sm:$0x3]
    %v578 = vunpack.c.l.b16 %v561
    %v579 = vunpack.c.l.b16 %v562
    %v580 = vunpack.c.l.b16 %v563
    %v581 = vunpack.c.l.b16 %v564
    %v582 = vunpack.c.l.b16 %v565
    %v583 = vunpack.c.l.b16 %v566
    %v584 = vunpack.c.l.b16 %v567
    %v585 = vunpack.c.l.b16 %v568
    %v586 = vrot.slane %v579, 7
    %v587 = vsel %vm103, %v586, %v578
    %v588 = vrot.slane %v580, 6
    %v589 = vsel %vm106, %v588, %v587
    %v590 = vrot.slane %v581, 5
    %v591 = vsel %vm109, %v590, %v589
    %v592 = vrot.slane %v582, 4
    %v593 = vsel %vm112, %v592, %v591
    %v594 = vrot.slane %v583, 3
    %v595 = vsel %vm115, %v594, %v593
    %v596 = vrot.slane %v584, 2
    %v597 = vsel %vm118, %v596, %v595
    %v598 = vrot.slane %v585, 1
    %v599 = vsel %vm121, %v598, %v597
    %v600 = vpack.c.b16 %v599, %v599
    %v602 = vsel %vm124, %v600, 0
    %v605 = vsel %vm128, %v569, 0
    %607 = vmatprep.subr.bf16.mxu0 0
    %608 = vmatpush1.bf16.msra.mxu0 0
    %609 = vmatprep.subr.bf16.mxu0 0
    %610 = vmatpush1.bf16.msra.mxu0 0
    %611 = vmatprep.subr.bf16.mxu0 0
    %612 = vmatpush1.bf16.msra.mxu0 0
    %613 = vmatprep.subr.bf16.mxu0 0
    %614 = vmatpush1.bf16.msra.mxu0 0
    %615 = vmatprep.subr.bf16.mxu0 0
    %616 = vmatpush1.bf16.msra.mxu0 0
    %617 = vmatprep.subr.bf16.mxu0 0
    %618 = vmatpush1.bf16.msra.mxu0 0
    %619 = vmatprep.subr.bf16.mxu0 0
    %620 = vmatpush1.bf16.msra.mxu0 0
    %621 = vmatprep.subr.bf16.mxu0 0
    %622 = vmatpush1.bf16.msra.mxu0 %v605
    %623 = vmatprep.subr.bf16.mxu0 0
    %624 = vmatpush2.bf16.msra.mxu0 0
    %625 = vmatprep.subr.bf16.mxu0 0
    %626 = vmatpush2.bf16.msra.mxu0 0
    %627 = vmatprep.subr.bf16.mxu0 0
    %628 = vmatpush2.bf16.msra.mxu0 0
    %629 = vmatprep.subr.bf16.mxu0 0
    %630 = vmatpush2.bf16.msra.mxu0 0
    %631 = vmatprep.subr.bf16.mxu0 0
    %632 = vmatpush2.bf16.msra.mxu0 0
    %633 = vmatprep.subr.bf16.mxu0 0
    %634 = vmatpush2.bf16.msra.mxu0 0
    %635 = vmatprep.subr.bf16.mxu0 0
    %636 = vmatpush2.bf16.msra.mxu0 0
    %637 = vmatprep.subr.bf16.mxu0 0
    %638 = vmatpush2.bf16.msra.mxu0 0
    %639 = vmatprep.mubr.bf16.mxu0 0
    %640 = vmatmul.mubr.bf16.gmra.mxu0 %v602
    %v641 = vpop.f32.mrf.mxu0
    %v642 = vadd.f32 %v84, %v641
    %v643 = vpop.f32.mrf.mxu0
    %v644 = vpop.f32.mrf.mxu0
    %v645 = vpop.f32.mrf.mxu0
    %646 = vdwg.mxu0
    %647 = vst [vmem:[#allocation2 + $0x28] sm:$0xff] %v642
    %v648 = vld [vmem:[%s0 + $0x6] sm:$0x1]
    %v649 = vld [vmem:[%s0 + $0xe] sm:$0x1]
    %v650 = vld [vmem:[%s0 + $0x16] sm:$0x1]
    %v651 = vld [vmem:[%s0 + $0x1e] sm:$0x1]
    %v652 = vld [vmem:[%s0 + $0x26] sm:$0x1]
    %v653 = vld [vmem:[%s0 + $0x2e] sm:$0x1]
    %v654 = vld [vmem:[%s0 + $0x36] sm:$0x1]
    %v655 = vld [vmem:[%s0 + $0x3e] sm:$0x1]
    %v656 = vpack.c.bf16 %v648, %v648
    %v657 = vpack.c.bf16 %v649, %v649
    %v658 = vpack.c.bf16 %v650, %v650
    %v659 = vpack.c.bf16 %v651, %v651
    %v660 = vpack.c.bf16 %v652, %v652
    %v661 = vpack.c.bf16 %v653, %v653
    %v662 = vpack.c.bf16 %v654, %v654
    %v663 = vpack.c.bf16 %v655, %v655
    %v664 = vld [vmem:[%s1] sm:$0x3]
    %v673 = vunpack.c.l.b16 %v656
    %v674 = vunpack.c.l.b16 %v657
    %v675 = vunpack.c.l.b16 %v658
    %v676 = vunpack.c.l.b16 %v659
    %v677 = vunpack.c.l.b16 %v660
    %v678 = vunpack.c.l.b16 %v661
    %v679 = vunpack.c.l.b16 %v662
    %v680 = vunpack.c.l.b16 %v663
    %v681 = vrot.slane %v674, 7
    %v682 = vsel %vm103, %v681, %v673
    %v683 = vrot.slane %v675, 6
    %v684 = vsel %vm106, %v683, %v682
    %v685 = vrot.slane %v676, 5
    %v686 = vsel %vm109, %v685, %v684
    %v687 = vrot.slane %v677, 4
    %v688 = vsel %vm112, %v687, %v686
    %v689 = vrot.slane %v678, 3
    %v690 = vsel %vm115, %v689, %v688
    %v691 = vrot.slane %v679, 2
    %v692 = vsel %vm118, %v691, %v690
    %v693 = vrot.slane %v680, 1
    %v694 = vsel %vm121, %v693, %v692
    %v695 = vpack.c.b16 %v694, %v694
    %v697 = vsel %vm124, %v695, 0
    %v700 = vsel %vm128, %v664, 0
    %702 = vmatprep.subr.bf16.mxu0 0
    %703 = vmatpush1.bf16.msra.mxu0 0
    %704 = vmatprep.subr.bf16.mxu0 0
    %705 = vmatpush1.bf16.msra.mxu0 0
    %706 = vmatprep.subr.bf16.mxu0 0
    %707 = vmatpush1.bf16.msra.mxu0 0
    %708 = vmatprep.subr.bf16.mxu0 0
    %709 = vmatpush1.bf16.msra.mxu0 0
    %710 = vmatprep.subr.bf16.mxu0 0
    %711 = vmatpush1.bf16.msra.mxu0 0
    %712 = vmatprep.subr.bf16.mxu0 0
    %713 = vmatpush1.bf16.msra.mxu0 0
    %714 = vmatprep.subr.bf16.mxu0 0
    %715 = vmatpush1.bf16.msra.mxu0 0
    %716 = vmatprep.subr.bf16.mxu0 0
    %717 = vmatpush1.bf16.msra.mxu0 %v700
    %718 = vmatprep.subr.bf16.mxu0 0
    %719 = vmatpush2.bf16.msra.mxu0 0
    %720 = vmatprep.subr.bf16.mxu0 0
    %721 = vmatpush2.bf16.msra.mxu0 0
    %722 = vmatprep.subr.bf16.mxu0 0
    %723 = vmatpush2.bf16.msra.mxu0 0
    %724 = vmatprep.subr.bf16.mxu0 0
    %725 = vmatpush2.bf16.msra.mxu0 0
    %726 = vmatprep.subr.bf16.mxu0 0
    %727 = vmatpush2.bf16.msra.mxu0 0
    %728 = vmatprep.subr.bf16.mxu0 0
    %729 = vmatpush2.bf16.msra.mxu0 0
    %730 = vmatprep.subr.bf16.mxu0 0
    %731 = vmatpush2.bf16.msra.mxu0 0
    %732 = vmatprep.subr.bf16.mxu0 0
    %733 = vmatpush2.bf16.msra.mxu0 0
    %734 = vmatprep.mubr.bf16.mxu0 0
    %735 = vmatmul.mubr.bf16.gmra.mxu0 %v697
    %v736 = vpop.f32.mrf.mxu0
    %v737 = vadd.f32 %v84, %v736
    %v738 = vpop.f32.mrf.mxu0
    %v739 = vpop.f32.mrf.mxu0
    %v740 = vpop.f32.mrf.mxu0
    %741 = vdwg.mxu0
    %742 = vst [vmem:[#allocation2 + $0x30] sm:$0xff] %v737
    %v743 = vld [vmem:[%s0 + $0x7] sm:$0x1]
    %v744 = vld [vmem:[%s0 + $0xf] sm:$0x1]
    %v745 = vld [vmem:[%s0 + $0x17] sm:$0x1]
    %v746 = vld [vmem:[%s0 + $0x1f] sm:$0x1]
    %v747 = vld [vmem:[%s0 + $0x27] sm:$0x1]
    %v748 = vld [vmem:[%s0 + $0x2f] sm:$0x1]
    %v749 = vld [vmem:[%s0 + $0x37] sm:$0x1]
    %v750 = vld [vmem:[%s0 + $0x3f] sm:$0x1]
    %v751 = vpack.c.bf16 %v743, %v743
    %v752 = vpack.c.bf16 %v744, %v744
    %v753 = vpack.c.bf16 %v745, %v745
    %v754 = vpack.c.bf16 %v746, %v746
    %v755 = vpack.c.bf16 %v747, %v747
    %v756 = vpack.c.bf16 %v748, %v748
    %v757 = vpack.c.bf16 %v749, %v749
    %v758 = vpack.c.bf16 %v750, %v750
    %v759 = vld [vmem:[%s1] sm:$0x3]
    %v768 = vunpack.c.l.b16 %v751
    %v769 = vunpack.c.l.b16 %v752
    %v770 = vunpack.c.l.b16 %v753
    %v771 = vunpack.c.l.b16 %v754
    %v772 = vunpack.c.l.b16 %v755
    %v773 = vunpack.c.l.b16 %v756
    %v774 = vunpack.c.l.b16 %v757
    %v775 = vunpack.c.l.b16 %v758
    %v776 = vrot.slane %v769, 7
    %v777 = vsel %vm103, %v776, %v768
    %v778 = vrot.slane %v770, 6
    %v779 = vsel %vm106, %v778, %v777
    %v780 = vrot.slane %v771, 5
    %v781 = vsel %vm109, %v780, %v779
    %v782 = vrot.slane %v772, 4
    %v783 = vsel %vm112, %v782, %v781
    %v784 = vrot.slane %v773, 3
    %v785 = vsel %vm115, %v784, %v783
    %v786 = vrot.slane %v774, 2
    %v787 = vsel %vm118, %v786, %v785
    %v788 = vrot.slane %v775, 1
    %v789 = vsel %vm121, %v788, %v787
    %v790 = vpack.c.b16 %v789, %v789
    %v792 = vsel %vm124, %v790, 0
    %v795 = vsel %vm128, %v759, 0
    %797 = vmatprep.subr.bf16.mxu0 0
    %798 = vmatpush1.bf16.msra.mxu0 0
    %799 = vmatprep.subr.bf16.mxu0 0
    %800 = vmatpush1.bf16.msra.mxu0 0
    %801 = vmatprep.subr.bf16.mxu0 0
    %802 = vmatpush1.bf16.msra.mxu0 0
    %803 = vmatprep.subr.bf16.mxu0 0
    %804 = vmatpush1.bf16.msra.mxu0 0
    %805 = vmatprep.subr.bf16.mxu0 0
    %806 = vmatpush1.bf16.msra.mxu0 0
    %807 = vmatprep.subr.bf16.mxu0 0
    %808 = vmatpush1.bf16.msra.mxu0 0
    %809 = vmatprep.subr.bf16.mxu0 0
    %810 = vmatpush1.bf16.msra.mxu0 0
    %811 = vmatprep.subr.bf16.mxu0 0
    %812 = vmatpush1.bf16.msra.mxu0 %v795
    %813 = vmatprep.subr.bf16.mxu0 0
    %814 = vmatpush2.bf16.msra.mxu0 0
    %815 = vmatprep.subr.bf16.mxu0 0
    %816 = vmatpush2.bf16.msra.mxu0 0
    %817 = vmatprep.subr.bf16.mxu0 0
    %818 = vmatpush2.bf16.msra.mxu0 0
    %819 = vmatprep.subr.bf16.mxu0 0
    %820 = vmatpush2.bf16.msra.mxu0 0
    %821 = vmatprep.subr.bf16.mxu0 0
    %822 = vmatpush2.bf16.msra.mxu0 0
    %823 = vmatprep.subr.bf16.mxu0 0
    %824 = vmatpush2.bf16.msra.mxu0 0
    %825 = vmatprep.subr.bf16.mxu0 0
    %826 = vmatpush2.bf16.msra.mxu0 0
    %827 = vmatprep.subr.bf16.mxu0 0
    %828 = vmatpush2.bf16.msra.mxu0 0
    %829 = vmatprep.mubr.bf16.mxu0 0
    %830 = vmatmul.mubr.bf16.gmra.mxu0 %v792
    %v831 = vpop.f32.mrf.mxu0
    %v832 = vadd.f32 %v84, %v831
    %v833 = vpop.f32.mrf.mxu0
    %v834 = vpop.f32.mrf.mxu0
    %v835 = vpop.f32.mrf.mxu0
    %836 = vdwg.mxu0
    %837 = vst [vmem:[#allocation2 + $0x38] sm:$0xff] %v832
    %v838 = vld [vmem:[#allocation2] sm:$0xff]
    %v839 = vld [vmem:[#allocation4] sm:$0xf]
    %v840 = vld [vmem:[#allocation4 + $0x4] sm:$0xf]
    %v841 = vld [vmem:[#allocation4 + $0x8] sm:$0xf]
    %v842 = vld [vmem:[#allocation4 + $0xc] sm:$0xf]
    %v847 = vunpack.c.l.b16 %v839
    %v848 = vunpack.c.l.b16 %v840
    %v849 = vunpack.c.l.b16 %v841
    %v850 = vunpack.c.l.b16 %v842
    %v851 = vpack.c.b16 %v848, %v847
    %v852 = vpack.c.b16 %v850, %v849
    %vm855 = vcmask 261120
    %v857 = vsel %vm855, 0, 0
    %859 = vmatprep.subr.bf16.mxu0 0
    %860 = vmatpush1.bf16.msra.mxu0 0
    %861 = vmatprep.subr.bf16.mxu0 0
    %862 = vmatpush1.bf16.msra.mxu0 0
    %863 = vmatprep.subr.bf16.mxu0 0
    %864 = vmatpush1.bf16.msra.mxu0 0
    %865 = vmatprep.subr.bf16.mxu0 0
    %866 = vmatpush1.bf16.msra.mxu0 0
    %867 = vmatprep.subr.bf16.mxu0 0
    %868 = vmatpush1.bf16.msra.mxu0 0
    %869 = vmatprep.subr.bf16.mxu0 0
    %870 = vmatpush1.bf16.msra.mxu0 0
    %871 = vmatprep.subr.bf16.mxu0 0
    %872 = vmatpush1.bf16.msra.mxu0 %v852
    %873 = vmatprep.subr.bf16.mxu0 0
    %874 = vmatpush1.bf16.msra.mxu0 %v851
    %875 = vmatprep.subr.bf16.mxu0 0
    %876 = vmatpush2.bf16.msra.mxu0 0
    %877 = vmatprep.subr.bf16.mxu0 0
    %878 = vmatpush2.bf16.msra.mxu0 0
    %879 = vmatprep.subr.bf16.mxu0 0
    %880 = vmatpush2.bf16.msra.mxu0 0
    %881 = vmatprep.subr.bf16.mxu0 0
    %882 = vmatpush2.bf16.msra.mxu0 0
    %883 = vmatprep.subr.bf16.mxu0 0
    %884 = vmatpush2.bf16.msra.mxu0 0
    %885 = vmatprep.subr.bf16.mxu0 0
    %886 = vmatpush2.bf16.msra.mxu0 0
    %887 = vmatprep.subr.bf16.mxu0 0
    %888 = vmatpush2.bf16.msra.mxu0 0
    %889 = vmatprep.subr.bf16.mxu0 0
    %890 = vmatpush2.bf16.msra.mxu0 0
    %891 = vmatprep.mubr.bf16.mxu0 0
    %892 = vmatmul.mubr.bf16.gmra.mxu0 %v857
    %v893 = vpop.f32.mrf.mxu0
    %v894 = vadd.f32 0.0, %v893
    %v895 = vpop.f32.mrf.mxu0
    %v896 = vpop.f32.mrf.mxu0
    %v897 = vpop.f32.mrf.mxu0
    %898 = vdwg.mxu0
    %v899 = vadd.f32 %v838, %v894
    %v900 = vxor.u32 %v899, 2147483648
    %v901 = vmul.f32 %v900, 1.442695
    %v902 = vpow.pop %v901
    %v903 = vadd.f32 %v902, 1.0
    %v904 = vrcp.pop %v903
    %v905 = vmul.f32 1.0, %v904
    %v906 = vtanh.pop %v899
    %v907 = vmul.f32 %v905, 0.0
    %909 = vrot.lane.b32.xlu0 %v906, 64
    %v910 = vpop.permute.xlu0 %909
    %v912 = vmul.f32 %v905, %v910
    %914 = vrot.lane.b32.xlu0 %v912, 32
    %v915 = vpop.permute.xlu0 %914
    %v917 = vadd.f32 %v907, %v915
    %v918 = vtanh.pop %v917
    %920 = vrot.lane.b32.xlu0 %v918, 64
    %v921 = vpop.permute.xlu0 %920
    %v923 = vmul.f32 %v905, %v921
    %925 = vrot.lane.b32.xlu0 %v923, 32
    %v926 = vpop.permute.xlu0 %925
    %v928 = vsel %vm855, %v926, 0.0
    %929 = vst [vmem:[#allocation3] sm:$0xff] %v928
    %s930 = scalar_lea.vmem [#allocation2], 8
    %v931 = vld [vmem:[%s930] sm:$0xff]
    %v932 = vpack.c.bf16 %v923, %v923
    %v933 = vld [vmem:[#allocation4] sm:$0xf]
    %v934 = vld [vmem:[#allocation4 + $0x4] sm:$0xf]
    %v935 = vld [vmem:[#allocation4 + $0x8] sm:$0xf]
    %v936 = vld [vmem:[#allocation4 + $0xc] sm:$0xf]
    %938 = vrot.lane.b32.xlu0 %v932, 32
    %v939 = vpop.permute.xlu0 %938
    %v944 = vunpack.c.l.b16 %v933
    %v945 = vunpack.c.l.b16 %v934
    %v946 = vunpack.c.l.b16 %v935
    %v947 = vunpack.c.l.b16 %v936
    %v948 = vpack.c.b16 %v945, %v944
    %v949 = vpack.c.b16 %v947, %v946
    %v953 = vsel %vm855, %v939, 0
    %955 = vmatprep.subr.bf16.mxu0 0
    %956 = vmatpush1.bf16.msra.mxu0 0
    %957 = vmatprep.subr.bf16.mxu0 0
    %958 = vmatpush1.bf16.msra.mxu0 0
    %959 = vmatprep.subr.bf16.mxu0 0
    %960 = vmatpush1.bf16.msra.mxu0 0
    %961 = vmatprep.subr.bf16.mxu0 0
    %962 = vmatpush1.bf16.msra.mxu0 0
    %963 = vmatprep.subr.bf16.mxu0 0
    %964 = vmatpush1.bf16.msra.mxu0 0
    %965 = vmatprep.subr.bf16.mxu0 0
    %966 = vmatpush1.bf16.msra.mxu0 0
    %967 = vmatprep.subr.bf16.mxu0 0
    %968 = vmatpush1.bf16.msra.mxu0 %v949
    %969 = vmatprep.subr.bf16.mxu0 0
    %970 = vmatpush1.bf16.msra.mxu0 %v948
    %971 = vmatprep.subr.bf16.mxu0 0
    %972 = vmatpush2.bf16.msra.mxu0 0
    %973 = vmatprep.subr.bf16.mxu0 0
    %974 = vmatpush2.bf16.msra.mxu0 0
    %975 = vmatprep.subr.bf16.mxu0 0
    %976 = vmatpush2.bf16.msra.mxu0 0
    %977 = vmatprep.subr.bf16.mxu0 0
    %978 = vmatpush2.bf16.msra.mxu0 0
    %979 = vmatprep.subr.bf16.mxu0 0
    %980 = vmatpush2.bf16.msra.mxu0 0
    %981 = vmatprep.subr.bf16.mxu0 0
    %982 = vmatpush2.bf16.msra.mxu0 0
    %983 = vmatprep.subr.bf16.mxu0 0
    %984 = vmatpush2.bf16.msra.mxu0 0
    %985 = vmatprep.subr.bf16.mxu0 0
    %986 = vmatpush2.bf16.msra.mxu0 0
    %987 = vmatprep.mubr.bf16.mxu0 0
    %988 = vmatmul.mubr.bf16.gmra.mxu0 %v953
    %v989 = vpop.f32.mrf.mxu0
    %v990 = vadd.f32 0.0, %v989
    %v991 = vpop.f32.mrf.mxu0
    %v992 = vpop.f32.mrf.mxu0
    %v993 = vpop.f32.mrf.mxu0
    %994 = vdwg.mxu0
    %v995 = vadd.f32 %v931, %v990
    %v996 = vxor.u32 %v995, 2147483648
    %v997 = vmul.f32 %v996, 1.442695
    %v998 = vpow.pop %v997
    %v999 = vadd.f32 %v998, 1.0
    %v1000 = vrcp.pop %v999
    %v1001 = vmul.f32 1.0, %v1000
    %v1002 = vtanh.pop %v995
    %v1003 = vmul.f32 %v1001, %v917
    %1005 = vrot.lane.b32.xlu0 %v1002, 64
    %v1006 = vpop.permute.xlu0 %1005
    %v1008 = vmul.f32 %v1001, %v1006
    %1010 = vrot.lane.b32.xlu0 %v1008, 32
    %v1011 = vpop.permute.xlu0 %1010
    %v1013 = vadd.f32 %v1003, %v1011
    %v1014 = vtanh.pop %v1013
    %1016 = vrot.lane.b32.xlu0 %v1014, 64
    %v1017 = vpop.permute.xlu0 %1016
    %v1019 = vmul.f32 %v1001, %v1017
    %1021 = vrot.lane.b32.xlu0 %v1019, 32
    %v1022 = vpop.permute.xlu0 %1021
    %v1024 = vsel %vm855, %v1022, 0.0
    %s1025 = scalar_lea.vmem [#allocation3], 8
    %1026 = vst [vmem:[%s1025] sm:$0xff] %v1024
    %s1027 = scalar_lea.vmem [#allocation2], 16
    %v1028 = vld [vmem:[%s1027] sm:$0xff]
    %v1029 = vpack.c.bf16 %v1019, %v1019
    %v1030 = vld [vmem:[#allocation4] sm:$0xf]
    %v1031 = vld [vmem:[#allocation4 + $0x4] sm:$0xf]
    %v1032 = vld [vmem:[#allocation4 + $0x8] sm:$0xf]
    %v1033 = vld [vmem:[#allocation4 + $0xc] sm:$0xf]
    %1035 = vrot.lane.b32.xlu0 %v1029, 32
    %v1036 = vpop.permute.xlu0 %1035
    %v1041 = vunpack.c.l.b16 %v1030
    %v1042 = vunpack.c.l.b16 %v1031
    %v1043 = vunpack.c.l.b16 %v1032
    %v1044 = vunpack.c.l.b16 %v1033
    %v1045 = vpack.c.b16 %v1042, %v1041
    %v1046 = vpack.c.b16 %v1044, %v1043
    %v1050 = vsel %vm855, %v1036, 0
    %1052 = vmatprep.subr.bf16.mxu0 0
    %1053 = vmatpush1.bf16.msra.mxu0 0
    %1054 = vmatprep.subr.bf16.mxu0 0
    %1055 = vmatpush1.bf16.msra.mxu0 0
    %1056 = vmatprep.subr.bf16.mxu0 0
    %1057 = vmatpush1.bf16.msra.mxu0 0
    %1058 = vmatprep.subr.bf16.mxu0 0
    %1059 = vmatpush1.bf16.msra.mxu0 0
    %1060 = vmatprep.subr.bf16.mxu0 0
    %1061 = vmatpush1.bf16.msra.mxu0 0
    %1062 = vmatprep.subr.bf16.mxu0 0
    %1063 = vmatpush1.bf16.msra.mxu0 0
    %1064 = vmatprep.subr.bf16.mxu0 0
    %1065 = vmatpush1.bf16.msra.mxu0 %v1046
    %1066 = vmatprep.subr.bf16.mxu0 0
    %1067 = vmatpush1.bf16.msra.mxu0 %v1045
    %1068 = vmatprep.subr.bf16.mxu0 0
    %1069 = vmatpush2.bf16.msra.mxu0 0
    %1070 = vmatprep.subr.bf16.mxu0 0
    %1071 = vmatpush2.bf16.msra.mxu0 0
    %1072 = vmatprep.subr.bf16.mxu0 0
    %1073 = vmatpush2.bf16.msra.mxu0 0
    %1074 = vmatprep.subr.bf16.mxu0 0
    %1075 = vmatpush2.bf16.msra.mxu0 0
    %1076 = vmatprep.subr.bf16.mxu0 0
    %1077 = vmatpush2.bf16.msra.mxu0 0
    %1078 = vmatprep.subr.bf16.mxu0 0
    %1079 = vmatpush2.bf16.msra.mxu0 0
    %1080 = vmatprep.subr.bf16.mxu0 0
    %1081 = vmatpush2.bf16.msra.mxu0 0
    %1082 = vmatprep.subr.bf16.mxu0 0
    %1083 = vmatpush2.bf16.msra.mxu0 0
    %1084 = vmatprep.mubr.bf16.mxu0 0
    %1085 = vmatmul.mubr.bf16.gmra.mxu0 %v1050
    %v1086 = vpop.f32.mrf.mxu0
    %v1087 = vadd.f32 0.0, %v1086
    %v1088 = vpop.f32.mrf.mxu0
    %v1089 = vpop.f32.mrf.mxu0
    %v1090 = vpop.f32.mrf.mxu0
    %1091 = vdwg.mxu0
    %v1092 = vadd.f32 %v1028, %v1087
    %v1093 = vxor.u32 %v1092, 2147483648
    %v1094 = vmul.f32 %v1093, 1.442695
    %v1095 = vpow.pop %v1094
    %v1096 = vadd.f32 %v1095, 1.0
    %v1097 = vrcp.pop %v1096
    %v1098 = vmul.f32 1.0, %v1097
    %v1099 = vtanh.pop %v1092
    %v1100 = vmul.f32 %v1098, %v1013
    %1102 = vrot.lane.b32.xlu0 %v1099, 64
    %v1103 = vpop.permute.xlu0 %1102
    %v1105 = vmul.f32 %v1098, %v1103
    %1107 = vrot.lane.b32.xlu0 %v1105, 32
    %v1108 = vpop.permute.xlu0 %1107
    %v1110 = vadd.f32 %v1100, %v1108
    %v1111 = vtanh.pop %v1110
    %1113 = vrot.lane.b32.xlu0 %v1111, 64
    %v1114 = vpop.permute.xlu0 %1113
    %v1116 = vmul.f32 %v1098, %v1114
    %1118 = vrot.lane.b32.xlu0 %v1116, 32
    %v1119 = vpop.permute.xlu0 %1118
    %v1121 = vsel %vm855, %v1119, 0.0
    %s1122 = scalar_lea.vmem [#allocation3], 16
    %1123 = vst [vmem:[%s1122] sm:$0xff] %v1121
    %s1124 = scalar_lea.vmem [#allocation2], 24
    %v1125 = vld [vmem:[%s1124] sm:$0xff]
    %v1126 = vpack.c.bf16 %v1116, %v1116
    %v1127 = vld [vmem:[#allocation4] sm:$0xf]
    %v1128 = vld [vmem:[#allocation4 + $0x4] sm:$0xf]
    %v1129 = vld [vmem:[#allocation4 + $0x8] sm:$0xf]
    %v1130 = vld [vmem:[#allocation4 + $0xc] sm:$0xf]
    %1132 = vrot.lane.b32.xlu0 %v1126, 32
    %v1133 = vpop.permute.xlu0 %1132
    %v1138 = vunpack.c.l.b16 %v1127
    %v1139 = vunpack.c.l.b16 %v1128
    %v1140 = vunpack.c.l.b16 %v1129
    %v1141 = vunpack.c.l.b16 %v1130
    %v1142 = vpack.c.b16 %v1139, %v1138
    %v1143 = vpack.c.b16 %v1141, %v1140
    %v1147 = vsel %vm855, %v1133, 0
    %1149 = vmatprep.subr.bf16.mxu0 0
    %1150 = vmatpush1.bf16.msra.mxu0 0
    %1151 = vmatprep.subr.bf16.mxu0 0
    %1152 = vmatpush1.bf16.msra.mxu0 0
    %1153 = vmatprep.subr.bf16.mxu0 0
    %1154 = vmatpush1.bf16.msra.mxu0 0
    %1155 = vmatprep.subr.bf16.mxu0 0
    %1156 = vmatpush1.bf16.msra.mxu0 0
    %1157 = vmatprep.subr.bf16.mxu0 0
    %1158 = vmatpush1.bf16.msra.mxu0 0
    %1159 = vmatprep.subr.bf16.mxu0 0
    %1160 = vmatpush1.bf16.msra.mxu0 0
    %1161 = vmatprep.subr.bf16.mxu0 0
    %1162 = vmatpush1.bf16.msra.mxu0 %v1143
    %1163 = vmatprep.subr.bf16.mxu0 0
    %1164 = vmatpush1.bf16.msra.mxu0 %v1142
    %1165 = vmatprep.subr.bf16.mxu0 0
    %1166 = vmatpush2.bf16.msra.mxu0 0
    %1167 = vmatprep.subr.bf16.mxu0 0
    %1168 = vmatpush2.bf16.msra.mxu0 0
    %1169 = vmatprep.subr.bf16.mxu0 0
    %1170 = vmatpush2.bf16.msra.mxu0 0
    %1171 = vmatprep.subr.bf16.mxu0 0
    %1172 = vmatpush2.bf16.msra.mxu0 0
    %1173 = vmatprep.subr.bf16.mxu0 0
    %1174 = vmatpush2.bf16.msra.mxu0 0
    %1175 = vmatprep.subr.bf16.mxu0 0
    %1176 = vmatpush2.bf16.msra.mxu0 0
    %1177 = vmatprep.subr.bf16.mxu0 0
    %1178 = vmatpush2.bf16.msra.mxu0 0
    %1179 = vmatprep.subr.bf16.mxu0 0
    %1180 = vmatpush2.bf16.msra.mxu0 0
    %1181 = vmatprep.mubr.bf16.mxu0 0
    %1182 = vmatmul.mubr.bf16.gmra.mxu0 %v1147
    %v1183 = vpop.f32.mrf.mxu0
    %v1184 = vadd.f32 0.0, %v1183
    %v1185 = vpop.f32.mrf.mxu0
    %v1186 = vpop.f32.mrf.mxu0
    %v1187 = vpop.f32.mrf.mxu0
    %1188 = vdwg.mxu0
    %v1189 = vadd.f32 %v1125, %v1184
    %v1190 = vxor.u32 %v1189, 2147483648
    %v1191 = vmul.f32 %v1190, 1.442695
    %v1192 = vpow.pop %v1191
    %v1193 = vadd.f32 %v1192, 1.0
    %v1194 = vrcp.pop %v1193
    %v1195 = vmul.f32 1.0, %v1194
    %v1196 = vtanh.pop %v1189
    %v1197 = vmul.f32 %v1195, %v1110
    %1199 = vrot.lane.b32.xlu0 %v1196, 64
    %v1200 = vpop.permute.xlu0 %1199
    %v1202 = vmul.f32 %v1195, %v1200
    %1204 = vrot.lane.b32.xlu0 %v1202, 32
    %v1205 = vpop.permute.xlu0 %1204
    %v1207 = vadd.f32 %v1197, %v1205
    %v1208 = vtanh.pop %v1207
    %1210 = vrot.lane.b32.xlu0 %v1208, 64
    %v1211 = vpop.permute.xlu0 %1210
    %v1213 = vmul.f32 %v1195, %v1211
    %1215 = vrot.lane.b32.xlu0 %v1213, 32
    %v1216 = vpop.permute.xlu0 %1215
    %v1218 = vsel %vm855, %v1216, 0.0
    %s1219 = scalar_lea.vmem [#allocation3], 24
    %1220 = vst [vmem:[%s1219] sm:$0xff] %v1218
    %s1221 = scalar_lea.vmem [#allocation2], 32
    %v1222 = vld [vmem:[%s1221] sm:$0xff]
    %v1223 = vpack.c.bf16 %v1213, %v1213
    %v1224 = vld [vmem:[#allocation4] sm:$0xf]
    %v1225 = vld [vmem:[#allocation4 + $0x4] sm:$0xf]
    %v1226 = vld [vmem:[#allocation4 + $0x8] sm:$0xf]
    %v1227 = vld [vmem:[#allocation4 + $0xc] sm:$0xf]
    %1229 = vrot.lane.b32.xlu0 %v1223, 32
    %v1230 = vpop.permute.xlu0 %1229
    %v1235 = vunpack.c.l.b16 %v1224
    %v1236 = vunpack.c.l.b16 %v1225
    %v1237 = vunpack.c.l.b16 %v1226
    %v1238 = vunpack.c.l.b16 %v1227
    %v1239 = vpack.c.b16 %v1236, %v1235
    %v1240 = vpack.c.b16 %v1238, %v1237
    %v1244 = vsel %vm855, %v1230, 0
    %1246 = vmatprep.subr.bf16.mxu0 0
    %1247 = vmatpush1.bf16.msra.mxu0 0
    %1248 = vmatprep.subr.bf16.mxu0 0
    %1249 = vmatpush1.bf16.msra.mxu0 0
    %1250 = vmatprep.subr.bf16.mxu0 0
    %1251 = vmatpush1.bf16.msra.mxu0 0
    %1252 = vmatprep.subr.bf16.mxu0 0
    %1253 = vmatpush1.bf16.msra.mxu0 0
    %1254 = vmatprep.subr.bf16.mxu0 0
    %1255 = vmatpush1.bf16.msra.mxu0 0
    %1256 = vmatprep.subr.bf16.mxu0 0
    %1257 = vmatpush1.bf16.msra.mxu0 0
    %1258 = vmatprep.subr.bf16.mxu0 0
    %1259 = vmatpush1.bf16.msra.mxu0 %v1240
    %1260 = vmatprep.subr.bf16.mxu0 0
    %1261 = vmatpush1.bf16.msra.mxu0 %v1239
    %1262 = vmatprep.subr.bf16.mxu0 0
    %1263 = vmatpush2.bf16.msra.mxu0 0
    %1264 = vmatprep.subr.bf16.mxu0 0
    %1265 = vmatpush2.bf16.msra.mxu0 0
    %1266 = vmatprep.subr.bf16.mxu0 0
    %1267 = vmatpush2.bf16.msra.mxu0 0
    %1268 = vmatprep.subr.bf16.mxu0 0
    %1269 = vmatpush2.bf16.msra.mxu0 0
    %1270 = vmatprep.subr.bf16.mxu0 0
    %1271 = vmatpush2.bf16.msra.mxu0 0
    %1272 = vmatprep.subr.bf16.mxu0 0
    %1273 = vmatpush2.bf16.msra.mxu0 0
    %1274 = vmatprep.subr.bf16.mxu0 0
    %1275 = vmatpush2.bf16.msra.mxu0 0
    %1276 = vmatprep.subr.bf16.mxu0 0
    %1277 = vmatpush2.bf16.msra.mxu0 0
    %1278 = vmatprep.mubr.bf16.mxu0 0
    %1279 = vmatmul.mubr.bf16.gmra.mxu0 %v1244
    %v1280 = vpop.f32.mrf.mxu0
    %v1281 = vadd.f32 0.0, %v1280
    %v1282 = vpop.f32.mrf.mxu0
    %v1283 = vpop.f32.mrf.mxu0
    %v1284 = vpop.f32.mrf.mxu0
    %1285 = vdwg.mxu0
    %v1286 = vadd.f32 %v1222, %v1281
    %v1287 = vxor.u32 %v1286, 2147483648
    %v1288 = vmul.f32 %v1287, 1.442695
    %v1289 = vpow.pop %v1288
    %v1290 = vadd.f32 %v1289, 1.0
    %v1291 = vrcp.pop %v1290
    %v1292 = vmul.f32 1.0, %v1291
    %v1293 = vtanh.pop %v1286
    %v1294 = vmul.f32 %v1292, %v1207
    %1296 = vrot.lane.b32.xlu0 %v1293, 64
    %v1297 = vpop.permute.xlu0 %1296
    %v1299 = vmul.f32 %v1292, %v1297
    %1301 = vrot.lane.b32.xlu0 %v1299, 32
    %v1302 = vpop.permute.xlu0 %1301
    %v1304 = vadd.f32 %v1294, %v1302
    %v1305 = vtanh.pop %v1304
    %1307 = vrot.lane.b32.xlu0 %v1305, 64
    %v1308 = vpop.permute.xlu0 %1307
    %v1310 = vmul.f32 %v1292, %v1308
    %1312 = vrot.lane.b32.xlu0 %v1310, 32
    %v1313 = vpop.permute.xlu0 %1312
    %v1315 = vsel %vm855, %v1313, 0.0
    %s1316 = scalar_lea.vmem [#allocation3], 32
    %1317 = vst [vmem:[%s1316] sm:$0xff] %v1315
    %s1318 = scalar_lea.vmem [#allocation2], 40
    %v1319 = vld [vmem:[%s1318] sm:$0xff]
    %v1320 = vpack.c.bf16 %v1310, %v1310
    %v1321 = vld [vmem:[#allocation4] sm:$0xf]
    %v1322 = vld [vmem:[#allocation4 + $0x4] sm:$0xf]
    %v1323 = vld [vmem:[#allocation4 + $0x8] sm:$0xf]
    %v1324 = vld [vmem:[#allocation4 + $0xc] sm:$0xf]
    %1326 = vrot.lane.b32.xlu0 %v1320, 32
    %v1327 = vpop.permute.xlu0 %1326
    %v1332 = vunpack.c.l.b16 %v1321
    %v1333 = vunpack.c.l.b16 %v1322
    %v1334 = vunpack.c.l.b16 %v1323
    %v1335 = vunpack.c.l.b16 %v1324
    %v1336 = vpack.c.b16 %v1333, %v1332
    %v1337 = vpack.c.b16 %v1335, %v1334
    %v1341 = vsel %vm855, %v1327, 0
    %1343 = vmatprep.subr.bf16.mxu0 0
    %1344 = vmatpush1.bf16.msra.mxu0 0
    %1345 = vmatprep.subr.bf16.mxu0 0
    %1346 = vmatpush1.bf16.msra.mxu0 0
    %1347 = vmatprep.subr.bf16.mxu0 0
    %1348 = vmatpush1.bf16.msra.mxu0 0
    %1349 = vmatprep.subr.bf16.mxu0 0
    %1350 = vmatpush1.bf16.msra.mxu0 0
    %1351 = vmatprep.subr.bf16.mxu0 0
    %1352 = vmatpush1.bf16.msra.mxu0 0
    %1353 = vmatprep.subr.bf16.mxu0 0
    %1354 = vmatpush1.bf16.msra.mxu0 0
    %1355 = vmatprep.subr.bf16.mxu0 0
    %1356 = vmatpush1.bf16.msra.mxu0 %v1337
    %1357 = vmatprep.subr.bf16.mxu0 0
    %1358 = vmatpush1.bf16.msra.mxu0 %v1336
    %1359 = vmatprep.subr.bf16.mxu0 0
    %1360 = vmatpush2.bf16.msra.mxu0 0
    %1361 = vmatprep.subr.bf16.mxu0 0
    %1362 = vmatpush2.bf16.msra.mxu0 0
    %1363 = vmatprep.subr.bf16.mxu0 0
    %1364 = vmatpush2.bf16.msra.mxu0 0
    %1365 = vmatprep.subr.bf16.mxu0 0
    %1366 = vmatpush2.bf16.msra.mxu0 0
    %1367 = vmatprep.subr.bf16.mxu0 0
    %1368 = vmatpush2.bf16.msra.mxu0 0
    %1369 = vmatprep.subr.bf16.mxu0 0
    %1370 = vmatpush2.bf16.msra.mxu0 0
    %1371 = vmatprep.subr.bf16.mxu0 0
    %1372 = vmatpush2.bf16.msra.mxu0 0
    %1373 = vmatprep.subr.bf16.mxu0 0
    %1374 = vmatpush2.bf16.msra.mxu0 0
    %1375 = vmatprep.mubr.bf16.mxu0 0
    %1376 = vmatmul.mubr.bf16.gmra.mxu0 %v1341
    %v1377 = vpop.f32.mrf.mxu0
    %v1378 = vadd.f32 0.0, %v1377
    %v1379 = vpop.f32.mrf.mxu0
    %v1380 = vpop.f32.mrf.mxu0
    %v1381 = vpop.f32.mrf.mxu0
    %1382 = vdwg.mxu0
    %v1383 = vadd.f32 %v1319, %v1378
    %v1384 = vxor.u32 %v1383, 2147483648
    %v1385 = vmul.f32 %v1384, 1.442695
    %v1386 = vpow.pop %v1385
    %v1387 = vadd.f32 %v1386, 1.0
    %v1388 = vrcp.pop %v1387
    %v1389 = vmul.f32 1.0, %v1388
    %v1390 = vtanh.pop %v1383
    %v1391 = vmul.f32 %v1389, %v1304
    %1393 = vrot.lane.b32.xlu0 %v1390, 64
    %v1394 = vpop.permute.xlu0 %1393
    %v1396 = vmul.f32 %v1389, %v1394
    %1398 = vrot.lane.b32.xlu0 %v1396, 32
    %v1399 = vpop.permute.xlu0 %1398
    %v1401 = vadd.f32 %v1391, %v1399
    %v1402 = vtanh.pop %v1401
    %1404 = vrot.lane.b32.xlu0 %v1402, 64
    %v1405 = vpop.permute.xlu0 %1404
    %v1407 = vmul.f32 %v1389, %v1405
    %1409 = vrot.lane.b32.xlu0 %v1407, 32
    %v1410 = vpop.permute.xlu0 %1409
    %v1412 = vsel %vm855, %v1410, 0.0
    %s1413 = scalar_lea.vmem [#allocation3], 40
    %1414 = vst [vmem:[%s1413] sm:$0xff] %v1412
    %s1415 = scalar_lea.vmem [#allocation2], 48
    %v1416 = vld [vmem:[%s1415] sm:$0xff]
    %v1417 = vpack.c.bf16 %v1407, %v1407
    %v1418 = vld [vmem:[#allocation4] sm:$0xf]
    %v1419 = vld [vmem:[#allocation4 + $0x4] sm:$0xf]
    %v1420 = vld [vmem:[#allocation4 + $0x8] sm:$0xf]
    %v1421 = vld [vmem:[#allocation4 + $0xc] sm:$0xf]
    %1423 = vrot.lane.b32.xlu0 %v1417, 32
    %v1424 = vpop.permute.xlu0 %1423
    %v1429 = vunpack.c.l.b16 %v1418
    %v1430 = vunpack.c.l.b16 %v1419
    %v1431 = vunpack.c.l.b16 %v1420
    %v1432 = vunpack.c.l.b16 %v1421
    %v1433 = vpack.c.b16 %v1430, %v1429
    %v1434 = vpack.c.b16 %v1432, %v1431
    %v1438 = vsel %vm855, %v1424, 0
    %1440 = vmatprep.subr.bf16.mxu0 0
    %1441 = vmatpush1.bf16.msra.mxu0 0
    %1442 = vmatprep.subr.bf16.mxu0 0
    %1443 = vmatpush1.bf16.msra.mxu0 0
    %1444 = vmatprep.subr.bf16.mxu0 0
    %1445 = vmatpush1.bf16.msra.mxu0 0
    %1446 = vmatprep.subr.bf16.mxu0 0
    %1447 = vmatpush1.bf16.msra.mxu0 0
    %1448 = vmatprep.subr.bf16.mxu0 0
    %1449 = vmatpush1.bf16.msra.mxu0 0
    %1450 = vmatprep.subr.bf16.mxu0 0
    %1451 = vmatpush1.bf16.msra.mxu0 0
    %1452 = vmatprep.subr.bf16.mxu0 0
    %1453 = vmatpush1.bf16.msra.mxu0 %v1434
    %1454 = vmatprep.subr.bf16.mxu0 0
    %1455 = vmatpush1.bf16.msra.mxu0 %v1433
    %1456 = vmatprep.subr.bf16.mxu0 0
    %1457 = vmatpush2.bf16.msra.mxu0 0
    %1458 = vmatprep.subr.bf16.mxu0 0
    %1459 = vmatpush2.bf16.msra.mxu0 0
    %1460 = vmatprep.subr.bf16.mxu0 0
    %1461 = vmatpush2.bf16.msra.mxu0 0
    %1462 = vmatprep.subr.bf16.mxu0 0
    %1463 = vmatpush2.bf16.msra.mxu0 0
    %1464 = vmatprep.subr.bf16.mxu0 0
    %1465 = vmatpush2.bf16.msra.mxu0 0
    %1466 = vmatprep.subr.bf16.mxu0 0
    %1467 = vmatpush2.bf16.msra.mxu0 0
    %1468 = vmatprep.subr.bf16.mxu0 0
    %1469 = vmatpush2.bf16.msra.mxu0 0
    %1470 = vmatprep.subr.bf16.mxu0 0
    %1471 = vmatpush2.bf16.msra.mxu0 0
    %1472 = vmatprep.mubr.bf16.mxu0 0
    %1473 = vmatmul.mubr.bf16.gmra.mxu0 %v1438
    %v1474 = vpop.f32.mrf.mxu0
    %v1475 = vadd.f32 0.0, %v1474
    %v1476 = vpop.f32.mrf.mxu0
    %v1477 = vpop.f32.mrf.mxu0
    %v1478 = vpop.f32.mrf.mxu0
    %1479 = vdwg.mxu0
    %v1480 = vadd.f32 %v1416, %v1475
    %v1481 = vxor.u32 %v1480, 2147483648
    %v1482 = vmul.f32 %v1481, 1.442695
    %v1483 = vpow.pop %v1482
    %v1484 = vadd.f32 %v1483, 1.0
    %v1485 = vrcp.pop %v1484
    %v1486 = vmul.f32 1.0, %v1485
    %v1487 = vtanh.pop %v1480
    %v1488 = vmul.f32 %v1486, %v1401
    %1490 = vrot.lane.b32.xlu0 %v1487, 64
    %v1491 = vpop.permute.xlu0 %1490
    %v1493 = vmul.f32 %v1486, %v1491
    %1495 = vrot.lane.b32.xlu0 %v1493, 32
    %v1496 = vpop.permute.xlu0 %1495
    %v1498 = vadd.f32 %v1488, %v1496
    %v1499 = vtanh.pop %v1498
    %1501 = vrot.lane.b32.xlu0 %v1499, 64
    %v1502 = vpop.permute.xlu0 %1501
    %v1504 = vmul.f32 %v1486, %v1502
    %1506 = vrot.lane.b32.xlu0 %v1504, 32
    %v1507 = vpop.permute.xlu0 %1506
    %v1509 = vsel %vm855, %v1507, 0.0
    %s1510 = scalar_lea.vmem [#allocation3], 48
    %1511 = vst [vmem:[%s1510] sm:$0xff] %v1509
    %s1512 = scalar_lea.vmem [#allocation2], 56
    %v1513 = vld [vmem:[%s1512] sm:$0xff]
    %v1514 = vpack.c.bf16 %v1504, %v1504
    %v1515 = vld [vmem:[#allocation4] sm:$0xf]
    %v1516 = vld [vmem:[#allocation4 + $0x4] sm:$0xf]
    %v1517 = vld [vmem:[#allocation4 + $0x8] sm:$0xf]
    %v1518 = vld [vmem:[#allocation4 + $0xc] sm:$0xf]
    %1520 = vrot.lane.b32.xlu0 %v1514, 32
    %v1521 = vpop.permute.xlu0 %1520
    %v1526 = vunpack.c.l.b16 %v1515
    %v1527 = vunpack.c.l.b16 %v1516
    %v1528 = vunpack.c.l.b16 %v1517
    %v1529 = vunpack.c.l.b16 %v1518
    %v1530 = vpack.c.b16 %v1527, %v1526
    %v1531 = vpack.c.b16 %v1529, %v1528
    %v1535 = vsel %vm855, %v1521, 0
    %1537 = vmatprep.subr.bf16.mxu0 0
    %1538 = vmatpush1.bf16.msra.mxu0 0
    %1539 = vmatprep.subr.bf16.mxu0 0
    %1540 = vmatpush1.bf16.msra.mxu0 0
    %1541 = vmatprep.subr.bf16.mxu0 0
    %1542 = vmatpush1.bf16.msra.mxu0 0
    %1543 = vmatprep.subr.bf16.mxu0 0
    %1544 = vmatpush1.bf16.msra.mxu0 0
    %1545 = vmatprep.subr.bf16.mxu0 0
    %1546 = vmatpush1.bf16.msra.mxu0 0
    %1547 = vmatprep.subr.bf16.mxu0 0
    %1548 = vmatpush1.bf16.msra.mxu0 0
    %1549 = vmatprep.subr.bf16.mxu0 0
    %1550 = vmatpush1.bf16.msra.mxu0 %v1531
    %1551 = vmatprep.subr.bf16.mxu0 0
    %1552 = vmatpush1.bf16.msra.mxu0 %v1530
    %1553 = vmatprep.subr.bf16.mxu0 0
    %1554 = vmatpush2.bf16.msra.mxu0 0
    %1555 = vmatprep.subr.bf16.mxu0 0
    %1556 = vmatpush2.bf16.msra.mxu0 0
    %1557 = vmatprep.subr.bf16.mxu0 0
    %1558 = vmatpush2.bf16.msra.mxu0 0
    %1559 = vmatprep.subr.bf16.mxu0 0
    %1560 = vmatpush2.bf16.msra.mxu0 0
    %1561 = vmatprep.subr.bf16.mxu0 0
    %1562 = vmatpush2.bf16.msra.mxu0 0
    %1563 = vmatprep.subr.bf16.mxu0 0
    %1564 = vmatpush2.bf16.msra.mxu0 0
    %1565 = vmatprep.subr.bf16.mxu0 0
    %1566 = vmatpush2.bf16.msra.mxu0 0
    %1567 = vmatprep.subr.bf16.mxu0 0
    %1568 = vmatpush2.bf16.msra.mxu0 0
    %1569 = vmatprep.mubr.bf16.mxu0 0
    %1570 = vmatmul.mubr.bf16.gmra.mxu0 %v1535
    %v1571 = vpop.f32.mrf.mxu0
    %v1572 = vadd.f32 0.0, %v1571
    %v1573 = vpop.f32.mrf.mxu0
    %v1574 = vpop.f32.mrf.mxu0
    %v1575 = vpop.f32.mrf.mxu0
    %1576 = vdwg.mxu0
    %v1577 = vadd.f32 %v1513, %v1572
    %v1578 = vxor.u32 %v1577, 2147483648
    %v1579 = vmul.f32 %v1578, 1.442695
    %v1580 = vpow.pop %v1579
    %v1581 = vadd.f32 %v1580, 1.0
    %v1582 = vrcp.pop %v1581
    %v1583 = vmul.f32 1.0, %v1582
    %v1584 = vtanh.pop %v1577
    %v1585 = vmul.f32 %v1583, %v1498
    %1587 = vrot.lane.b32.xlu0 %v1584, 64
    %v1588 = vpop.permute.xlu0 %1587
    %v1590 = vmul.f32 %v1583, %v1588
    %1592 = vrot.lane.b32.xlu0 %v1590, 32
    %v1593 = vpop.permute.xlu0 %1592
    %v1595 = vadd.f32 %v1585, %v1593
    %v1596 = vtanh.pop %v1595
    %1598 = vrot.lane.b32.xlu0 %v1596, 64
    %v1599 = vpop.permute.xlu0 %1598
    %v1601 = vmul.f32 %v1583, %v1599
    %1603 = vrot.lane.b32.xlu0 %v1601, 32
    %v1604 = vpop.permute.xlu0 %1603
    %v1606 = vsel %vm855, %v1604, 0.0
    %s1607 = scalar_lea.vmem [#allocation3], 56
    %1608 = vst [vmem:[%s1607] sm:$0xff] %v1606
    %v1609 = vld [vmem:[%s6] sm:$0x1]
    %v1610 = vld [vmem:[#allocation3] sm:$0xff]
    %v1611 = vld [vmem:[#allocation3 + $0x8] sm:$0xff]
    %v1612 = vld [vmem:[#allocation3 + $0x10] sm:$0xff]
    %v1613 = vld [vmem:[#allocation3 + $0x18] sm:$0xff]
    %v1614 = vld [vmem:[#allocation3 + $0x20] sm:$0xff]
    %v1615 = vld [vmem:[#allocation3 + $0x28] sm:$0xff]
    %v1616 = vld [vmem:[#allocation3 + $0x30] sm:$0xff]
    %v1617 = vld [vmem:[#allocation3 + $0x38] sm:$0xff]
    %v1618 = vpack.c.bf16 %v1611, %v1610
    %v1619 = vpack.c.bf16 %v1613, %v1612
    %v1620 = vpack.c.bf16 %v1615, %v1614
    %v1621 = vpack.c.bf16 %v1617, %v1616
    %v1622 = vld [vmem:[%s4] sm:$0xf]
    %v1623 = vld [vmem:[%s4 + $0x4] sm:$0xf]
    %v1624 = vld [vmem:[%s4 + $0x8] sm:$0xf]
    %v1625 = vld [vmem:[%s4 + $0xc] sm:$0xf]
    %v1626 = vld [vmem:[%s4 + $0x10] sm:$0xf]
    %v1627 = vld [vmem:[%s4 + $0x14] sm:$0xf]
    %v1628 = vld [vmem:[%s4 + $0x18] sm:$0xf]
    %v1629 = vld [vmem:[%s4 + $0x1c] sm:$0xf]
    %v1630 = vld [vmem:[%s4 + $0x20] sm:$0xf]
    %v1631 = vld [vmem:[%s4 + $0x24] sm:$0xf]
    %v1632 = vld [vmem:[%s4 + $0x28] sm:$0xf]
    %v1633 = vld [vmem:[%s4 + $0x2c] sm:$0xf]
    %v1634 = vld [vmem:[%s4 + $0x30] sm:$0xf]
    %v1635 = vld [vmem:[%s4 + $0x34] sm:$0xf]
    %v1636 = vld [vmem:[%s4 + $0x38] sm:$0xf]
    %v1637 = vld [vmem:[%s4 + $0x3c] sm:$0xf]
    %v1639 = vlaneseq
    %v1640 = vshrl.u32 %v1639, 7
    %v1641 = vsub.s32 0, %v1640
    %v1642 = vrot.slane %v1609, %v1641
    %v1660 = vunpack.c.l.b16 %v1622
    %v1661 = vunpack.c.l.b16 %v1623
    %v1662 = vunpack.c.l.b16 %v1624
    %v1663 = vunpack.c.l.b16 %v1625
    %v1664 = vunpack.c.l.b16 %v1626
    %v1665 = vunpack.c.l.b16 %v1627
    %v1666 = vunpack.c.l.b16 %v1628
    %v1667 = vunpack.c.l.b16 %v1629
    %v1668 = vunpack.c.l.b16 %v1630
    %v1669 = vunpack.c.l.b16 %v1631
    %v1670 = vunpack.c.l.b16 %v1632
    %v1671 = vunpack.c.l.b16 %v1633
    %v1672 = vunpack.c.l.b16 %v1634
    %v1673 = vunpack.c.l.b16 %v1635
    %v1674 = vunpack.c.l.b16 %v1636
    %v1675 = vunpack.c.l.b16 %v1637
    %v1676 = vpack.c.b16 %v1661, %v1660
    %v1677 = vpack.c.b16 %v1663, %v1662
    %v1678 = vpack.c.b16 %v1665, %v1664
    %v1679 = vpack.c.b16 %v1667, %v1666
    %v1680 = vpack.c.b16 %v1669, %v1668
    %v1681 = vpack.c.b16 %v1671, %v1670
    %v1682 = vpack.c.b16 %v1673, %v1672
    %v1683 = vpack.c.b16 %v1675, %v1674
    %1692 = vmatprep.subr.bf16.mxu0 0
    %1693 = vmatpush1.bf16.msra.mxu0 %v1683
    %1694 = vmatprep.subr.bf16.mxu0 0
    %1695 = vmatpush1.bf16.msra.mxu0 %v1682
    %1696 = vmatprep.subr.bf16.mxu0 0
    %1697 = vmatpush1.bf16.msra.mxu0 %v1681
    %1698 = vmatprep.subr.bf16.mxu0 0
    %1699 = vmatpush1.bf16.msra.mxu0 %v1680
    %1700 = vmatprep.subr.bf16.mxu0 0
    %1701 = vmatpush1.bf16.msra.mxu0 %v1679
    %1702 = vmatprep.subr.bf16.mxu0 0
    %1703 = vmatpush1.bf16.msra.mxu0 %v1678
    %1704 = vmatprep.subr.bf16.mxu0 0
    %1705 = vmatpush1.bf16.msra.mxu0 %v1677
    %1706 = vmatprep.subr.bf16.mxu0 0
    %1707 = vmatpush1.bf16.msra.mxu0 %v1676
    %1708 = vmatprep.subr.bf16.mxu0 0
    %1709 = vmatpush2.bf16.msra.mxu0 0
    %1710 = vmatprep.subr.bf16.mxu0 0
    %1711 = vmatpush2.bf16.msra.mxu0 0
    %1712 = vmatprep.subr.bf16.mxu0 0
    %1713 = vmatpush2.bf16.msra.mxu0 0
    %1714 = vmatprep.subr.bf16.mxu0 0
    %1715 = vmatpush2.bf16.msra.mxu0 0
    %1716 = vmatprep.subr.bf16.mxu0 0
    %1717 = vmatpush2.bf16.msra.mxu0 0
    %1718 = vmatprep.subr.bf16.mxu0 0
    %1719 = vmatpush2.bf16.msra.mxu0 0
    %1720 = vmatprep.subr.bf16.mxu0 0
    %1721 = vmatpush2.bf16.msra.mxu0 0
    %1722 = vmatprep.subr.bf16.mxu0 0
    %1723 = vmatpush2.bf16.msra.mxu0 0
    %1724 = vmatprep.mubr.bf16.mxu0 0
    %1725 = vmatmul.mubr.bf16.gmra.mxu0 %v1618
    %v1726 = vpop.f32.mrf.mxu0
    %v1727 = vadd.f32 %v1642, %v1726
    %v1728 = vpop.f32.mrf.mxu0
    %v1729 = vpop.f32.mrf.mxu0
    %v1730 = vadd.f32 %v1642, %v1729
    %v1731 = vpop.f32.mrf.mxu0
    %1732 = vmatprep.mubr.bf16.mxu0 0
    %1733 = vmatmul.mubr.bf16.gmra.mxu0 %v1619
    %v1734 = vpop.f32.mrf.mxu0
    %v1735 = vadd.f32 %v1642, %v1734
    %v1736 = vpop.f32.mrf.mxu0
    %v1737 = vpop.f32.mrf.mxu0
    %v1738 = vadd.f32 %v1642, %v1737
    %v1739 = vpop.f32.mrf.mxu0
    %1740 = vmatprep.mubr.bf16.mxu0 0
    %1741 = vmatmul.mubr.bf16.gmra.mxu0 %v1620
    %v1742 = vpop.f32.mrf.mxu0
    %v1743 = vadd.f32 %v1642, %v1742
    %v1744 = vpop.f32.mrf.mxu0
    %v1745 = vpop.f32.mrf.mxu0
    %v1746 = vadd.f32 %v1642, %v1745
    %v1747 = vpop.f32.mrf.mxu0
    %1748 = vmatprep.mubr.bf16.mxu0 0
    %1749 = vmatmul.mubr.bf16.gmra.mxu0 %v1621
    %v1750 = vpop.f32.mrf.mxu0
    %v1751 = vadd.f32 %v1642, %v1750
    %v1752 = vpop.f32.mrf.mxu0
    %v1753 = vpop.f32.mrf.mxu0
    %v1754 = vadd.f32 %v1642, %v1753
    %v1755 = vpop.f32.mrf.mxu0
    %1756 = vdwg.mxu0
    %1757 = vst [vmem:[#allocation2] sm:$0xff] %v1727
    %1758 = vst [vmem:[#allocation2 + $0x8] sm:$0xff] %v1730
    %1759 = vst [vmem:[#allocation2 + $0x10] sm:$0xff] %v1735
    %1760 = vst [vmem:[#allocation2 + $0x18] sm:$0xff] %v1738
    %1761 = vst [vmem:[#allocation2 + $0x20] sm:$0xff] %v1743
    %1762 = vst [vmem:[#allocation2 + $0x28] sm:$0xff] %v1746
    %1763 = vst [vmem:[#allocation2 + $0x30] sm:$0xff] %v1751
    %1764 = vst [vmem:[#allocation2 + $0x38] sm:$0xff] %v1754
    %v1765 = vld [vmem:[#allocation2] sm:$0xff]
    %v1766 = vld [vmem:[#allocation7] sm:$0xf]
    %v1767 = vld [vmem:[#allocation7 + $0x4] sm:$0xf]
    %v1768 = vld [vmem:[#allocation7 + $0x8] sm:$0xf]
    %v1769 = vld [vmem:[#allocation7 + $0xc] sm:$0xf]
    %v1774 = vunpack.c.l.b16 %v1766
    %v1775 = vunpack.c.l.b16 %v1767
    %v1776 = vunpack.c.l.b16 %v1768
    %v1777 = vunpack.c.l.b16 %v1769
    %v1778 = vpack.c.b16 %v1775, %v1774
    %v1779 = vpack.c.b16 %v1777, %v1776
    %1782 = vmatprep.subr.bf16.mxu0 0
    %1783 = vmatpush1.bf16.msra.mxu0 0
    %1784 = vmatprep.subr.bf16.mxu0 0
    %1785 = vmatpush1.bf16.msra.mxu0 0
    %1786 = vmatprep.subr.bf16.mxu0 0
    %1787 = vmatpush1.bf16.msra.mxu0 0
    %1788 = vmatprep.subr.bf16.mxu0 0
    %1789 = vmatpush1.bf16.msra.mxu0 0
    %1790 = vmatprep.subr.bf16.mxu0 0
    %1791 = vmatpush1.bf16.msra.mxu0 0
    %1792 = vmatprep.subr.bf16.mxu0 0
    %1793 = vmatpush1.bf16.msra.mxu0 0
    %1794 = vmatprep.subr.bf16.mxu0 0
    %1795 = vmatpush1.bf16.msra.mxu0 %v1779
    %1796 = vmatprep.subr.bf16.mxu0 0
    %1797 = vmatpush1.bf16.msra.mxu0 %v1778
    %1798 = vmatprep.subr.bf16.mxu0 0
    %1799 = vmatpush2.bf16.msra.mxu0 0
    %1800 = vmatprep.subr.bf16.mxu0 0
    %1801 = vmatpush2.bf16.msra.mxu0 0
    %1802 = vmatprep.subr.bf16.mxu0 0
    %1803 = vmatpush2.bf16.msra.mxu0 0
    %1804 = vmatprep.subr.bf16.mxu0 0
    %1805 = vmatpush2.bf16.msra.mxu0 0
    %1806 = vmatprep.subr.bf16.mxu0 0
    %1807 = vmatpush2.bf16.msra.mxu0 0
    %1808 = vmatprep.subr.bf16.mxu0 0
    %1809 = vmatpush2.bf16.msra.mxu0 0
    %1810 = vmatprep.subr.bf16.mxu0 0
    %1811 = vmatpush2.bf16.msra.mxu0 0
    %1812 = vmatprep.subr.bf16.mxu0 0
    %1813 = vmatpush2.bf16.msra.mxu0 0
    %1814 = vmatprep.mubr.bf16.mxu0 0
    %1815 = vmatmul.mubr.bf16.gmra.mxu0 %v857
    %v1816 = vpop.f32.mrf.mxu0
    %v1817 = vadd.f32 0.0, %v1816
    %v1818 = vpop.f32.mrf.mxu0
    %v1819 = vpop.f32.mrf.mxu0
    %v1820 = vpop.f32.mrf.mxu0
    %1821 = vdwg.mxu0
    %v1822 = vadd.f32 %v1765, %v1817
    %v1823 = vxor.u32 %v1822, 2147483648
    %v1824 = vmul.f32 %v1823, 1.442695
    %v1825 = vpow.pop %v1824
    %v1826 = vadd.f32 %v1825, 1.0
    %v1827 = vrcp.pop %v1826
    %v1828 = vmul.f32 1.0, %v1827
    %v1829 = vtanh.pop %v1822
    %v1830 = vmul.f32 %v1828, 0.0
    %1832 = vrot.lane.b32.xlu0 %v1829, 64
    %v1833 = vpop.permute.xlu0 %1832
    %v1835 = vmul.f32 %v1828, %v1833
    %1837 = vrot.lane.b32.xlu0 %v1835, 32
    %v1838 = vpop.permute.xlu0 %1837
    %v1840 = vadd.f32 %v1830, %v1838
    %v1841 = vtanh.pop %v1840
    %1843 = vrot.lane.b32.xlu0 %v1841, 64
    %v1844 = vpop.permute.xlu0 %1843
    %v1846 = vmul.f32 %v1828, %v1844
    %v1847 = vld [vmem:[%s930] sm:$0xff]
    %v1848 = vpack.c.bf16 %v1846, %v1846
    %1850 = vrot.lane.b32.xlu0 %v1848, 32
    %v1851 = vpop.permute.xlu0 %1850
    %v1853 = vsel %vm855, %v1851, 0
    %1855 = vmatprep.subr.bf16.mxu0 0
    %1856 = vmatpush1.bf16.msra.mxu0 0
    %1857 = vmatprep.subr.bf16.mxu0 0
    %1858 = vmatpush1.bf16.msra.mxu0 0
    %1859 = vmatprep.subr.bf16.mxu0 0
    %1860 = vmatpush1.bf16.msra.mxu0 0
    %1861 = vmatprep.subr.bf16.mxu0 0
    %1862 = vmatpush1.bf16.msra.mxu0 0
    %1863 = vmatprep.subr.bf16.mxu0 0
    %1864 = vmatpush1.bf16.msra.mxu0 0
    %1865 = vmatprep.subr.bf16.mxu0 0
    %1866 = vmatpush1.bf16.msra.mxu0 0
    %1867 = vmatprep.subr.bf16.mxu0 0
    %1868 = vmatpush1.bf16.msra.mxu0 %v1779
    %1869 = vmatprep.subr.bf16.mxu0 0
    %1870 = vmatpush1.bf16.msra.mxu0 %v1778
    %1871 = vmatprep.subr.bf16.mxu0 0
    %1872 = vmatpush2.bf16.msra.mxu0 0
    %1873 = vmatprep.subr.bf16.mxu0 0
    %1874 = vmatpush2.bf16.msra.mxu0 0
    %1875 = vmatprep.subr.bf16.mxu0 0
    %1876 = vmatpush2.bf16.msra.mxu0 0
    %1877 = vmatprep.subr.bf16.mxu0 0
    %1878 = vmatpush2.bf16.msra.mxu0 0
    %1879 = vmatprep.subr.bf16.mxu0 0
    %1880 = vmatpush2.bf16.msra.mxu0 0
    %1881 = vmatprep.subr.bf16.mxu0 0
    %1882 = vmatpush2.bf16.msra.mxu0 0
    %1883 = vmatprep.subr.bf16.mxu0 0
    %1884 = vmatpush2.bf16.msra.mxu0 0
    %1885 = vmatprep.subr.bf16.mxu0 0
    %1886 = vmatpush2.bf16.msra.mxu0 0
    %1887 = vmatprep.mubr.bf16.mxu0 0
    %1888 = vmatmul.mubr.bf16.gmra.mxu0 %v1853
    %v1889 = vpop.f32.mrf.mxu0
    %v1890 = vadd.f32 0.0, %v1889
    %v1891 = vpop.f32.mrf.mxu0
    %v1892 = vpop.f32.mrf.mxu0
    %v1893 = vpop.f32.mrf.mxu0
    %1894 = vdwg.mxu0
    %v1895 = vadd.f32 %v1847, %v1890
    %v1896 = vxor.u32 %v1895, 2147483648
    %v1897 = vmul.f32 %v1896, 1.442695
    %v1898 = vpow.pop %v1897
    %v1899 = vadd.f32 %v1898, 1.0
    %v1900 = vrcp.pop %v1899
    %v1901 = vmul.f32 1.0, %v1900
    %v1902 = vtanh.pop %v1895
    %v1903 = vmul.f32 %v1901, %v1840
    %1905 = vrot.lane.b32.xlu0 %v1902, 64
    %v1906 = vpop.permute.xlu0 %1905
    %v1908 = vmul.f32 %v1901, %v1906
    %1910 = vrot.lane.b32.xlu0 %v1908, 32
    %v1911 = vpop.permute.xlu0 %1910
    %v1913 = vadd.f32 %v1903, %v1911
    %v1914 = vtanh.pop %v1913
    %1916 = vrot.lane.b32.xlu0 %v1914, 64
    %v1917 = vpop.permute.xlu0 %1916
    %v1919 = vmul.f32 %v1901, %v1917
    %v1920 = vld [vmem:[%s1027] sm:$0xff]
    %v1921 = vpack.c.bf16 %v1919, %v1919
    %1923 = vrot.lane.b32.xlu0 %v1921, 32
    %v1924 = vpop.permute.xlu0 %1923
    %v1926 = vsel %vm855, %v1924, 0
    %1928 = vmatprep.subr.bf16.mxu0 0
    %1929 = vmatpush1.bf16.msra.mxu0 0
    %1930 = vmatprep.subr.bf16.mxu0 0
    %1931 = vmatpush1.bf16.msra.mxu0 0
    %1932 = vmatprep.subr.bf16.mxu0 0
    %1933 = vmatpush1.bf16.msra.mxu0 0
    %1934 = vmatprep.subr.bf16.mxu0 0
    %1935 = vmatpush1.bf16.msra.mxu0 0
    %1936 = vmatprep.subr.bf16.mxu0 0
    %1937 = vmatpush1.bf16.msra.mxu0 0
    %1938 = vmatprep.subr.bf16.mxu0 0
    %1939 = vmatpush1.bf16.msra.mxu0 0
    %1940 = vmatprep.subr.bf16.mxu0 0
    %1941 = vmatpush1.bf16.msra.mxu0 %v1779
    %1942 = vmatprep.subr.bf16.mxu0 0
    %1943 = vmatpush1.bf16.msra.mxu0 %v1778
    %1944 = vmatprep.subr.bf16.mxu0 0
    %1945 = vmatpush2.bf16.msra.mxu0 0
    %1946 = vmatprep.subr.bf16.mxu0 0
    %1947 = vmatpush2.bf16.msra.mxu0 0
    %1948 = vmatprep.subr.bf16.mxu0 0
    %1949 = vmatpush2.bf16.msra.mxu0 0
    %1950 = vmatprep.subr.bf16.mxu0 0
    %1951 = vmatpush2.bf16.msra.mxu0 0
    %1952 = vmatprep.subr.bf16.mxu0 0
    %1953 = vmatpush2.bf16.msra.mxu0 0
    %1954 = vmatprep.subr.bf16.mxu0 0
    %1955 = vmatpush2.bf16.msra.mxu0 0
    %1956 = vmatprep.subr.bf16.mxu0 0
    %1957 = vmatpush2.bf16.msra.mxu0 0
    %1958 = vmatprep.subr.bf16.mxu0 0
    %1959 = vmatpush2.bf16.msra.mxu0 0
    %1960 = vmatprep.mubr.bf16.mxu0 0
    %1961 = vmatmul.mubr.bf16.gmra.mxu0 %v1926
    %v1962 = vpop.f32.mrf.mxu0
    %v1963 = vadd.f32 0.0, %v1962
    %v1964 = vpop.f32.mrf.mxu0
    %v1965 = vpop.f32.mrf.mxu0
    %v1966 = vpop.f32.mrf.mxu0
    %1967 = vdwg.mxu0
    %v1968 = vadd.f32 %v1920, %v1963
    %v1969 = vxor.u32 %v1968, 2147483648
    %v1970 = vmul.f32 %v1969, 1.442695
    %v1971 = vpow.pop %v1970
    %v1972 = vadd.f32 %v1971, 1.0
    %v1973 = vrcp.pop %v1972
    %v1974 = vmul.f32 1.0, %v1973
    %v1975 = vtanh.pop %v1968
    %v1976 = vmul.f32 %v1974, %v1913
    %1978 = vrot.lane.b32.xlu0 %v1975, 64
    %v1979 = vpop.permute.xlu0 %1978
    %v1981 = vmul.f32 %v1974, %v1979
    %1983 = vrot.lane.b32.xlu0 %v1981, 32
    %v1984 = vpop.permute.xlu0 %1983
    %v1986 = vadd.f32 %v1976, %v1984
    %v1987 = vtanh.pop %v1986
    %1989 = vrot.lane.b32.xlu0 %v1987, 64
    %v1990 = vpop.permute.xlu0 %1989
    %v1992 = vmul.f32 %v1974, %v1990
    %v1993 = vld [vmem:[%s1124] sm:$0xff]
    %v1994 = vpack.c.bf16 %v1992, %v1992
    %1996 = vrot.lane.b32.xlu0 %v1994, 32
    %v1997 = vpop.permute.xlu0 %1996
    %v1999 = vsel %vm855, %v1997, 0
    %2001 = vmatprep.subr.bf16.mxu0 0
    %2002 = vmatpush1.bf16.msra.mxu0 0
    %2003 = vmatprep.subr.bf16.mxu0 0
    %2004 = vmatpush1.bf16.msra.mxu0 0
    %2005 = vmatprep.subr.bf16.mxu0 0
    %2006 = vmatpush1.bf16.msra.mxu0 0
    %2007 = vmatprep.subr.bf16.mxu0 0
    %2008 = vmatpush1.bf16.msra.mxu0 0
    %2009 = vmatprep.subr.bf16.mxu0 0
    %2010 = vmatpush1.bf16.msra.mxu0 0
    %2011 = vmatprep.subr.bf16.mxu0 0
    %2012 = vmatpush1.bf16.msra.mxu0 0
    %2013 = vmatprep.subr.bf16.mxu0 0
    %2014 = vmatpush1.bf16.msra.mxu0 %v1779
    %2015 = vmatprep.subr.bf16.mxu0 0
    %2016 = vmatpush1.bf16.msra.mxu0 %v1778
    %2017 = vmatprep.subr.bf16.mxu0 0
    %2018 = vmatpush2.bf16.msra.mxu0 0
    %2019 = vmatprep.subr.bf16.mxu0 0
    %2020 = vmatpush2.bf16.msra.mxu0 0
    %2021 = vmatprep.subr.bf16.mxu0 0
    %2022 = vmatpush2.bf16.msra.mxu0 0
    %2023 = vmatprep.subr.bf16.mxu0 0
    %2024 = vmatpush2.bf16.msra.mxu0 0
    %2025 = vmatprep.subr.bf16.mxu0 0
    %2026 = vmatpush2.bf16.msra.mxu0 0
    %2027 = vmatprep.subr.bf16.mxu0 0
    %2028 = vmatpush2.bf16.msra.mxu0 0
    %2029 = vmatprep.subr.bf16.mxu0 0
    %2030 = vmatpush2.bf16.msra.mxu0 0
    %2031 = vmatprep.subr.bf16.mxu0 0
    %2032 = vmatpush2.bf16.msra.mxu0 0
    %2033 = vmatprep.mubr.bf16.mxu0 0
    %2034 = vmatmul.mubr.bf16.gmra.mxu0 %v1999
    %v2035 = vpop.f32.mrf.mxu0
    %v2036 = vadd.f32 0.0, %v2035
    %v2037 = vpop.f32.mrf.mxu0
    %v2038 = vpop.f32.mrf.mxu0
    %v2039 = vpop.f32.mrf.mxu0
    %2040 = vdwg.mxu0
    %v2041 = vadd.f32 %v1993, %v2036
    %v2042 = vxor.u32 %v2041, 2147483648
    %v2043 = vmul.f32 %v2042, 1.442695
    %v2044 = vpow.pop %v2043
    %v2045 = vadd.f32 %v2044, 1.0
    %v2046 = vrcp.pop %v2045
    %v2047 = vmul.f32 1.0, %v2046
    %v2048 = vtanh.pop %v2041
    %v2049 = vmul.f32 %v2047, %v1986
    %2051 = vrot.lane.b32.xlu0 %v2048, 64
    %v2052 = vpop.permute.xlu0 %2051
    %v2054 = vmul.f32 %v2047, %v2052
    %2056 = vrot.lane.b32.xlu0 %v2054, 32
    %v2057 = vpop.permute.xlu0 %2056
    %v2059 = vadd.f32 %v2049, %v2057
    %v2060 = vtanh.pop %v2059
    %2062 = vrot.lane.b32.xlu0 %v2060, 64
    %v2063 = vpop.permute.xlu0 %2062
    %v2065 = vmul.f32 %v2047, %v2063
    %v2066 = vld [vmem:[%s1221] sm:$0xff]
    %v2067 = vpack.c.bf16 %v2065, %v2065
    %2069 = vrot.lane.b32.xlu0 %v2067, 32
    %v2070 = vpop.permute.xlu0 %2069
    %v2072 = vsel %vm855, %v2070, 0
    %2074 = vmatprep.subr.bf16.mxu0 0
    %2075 = vmatpush1.bf16.msra.mxu0 0
    %2076 = vmatprep.subr.bf16.mxu0 0
    %2077 = vmatpush1.bf16.msra.mxu0 0
    %2078 = vmatprep.subr.bf16.mxu0 0
    %2079 = vmatpush1.bf16.msra.mxu0 0
    %2080 = vmatprep.subr.bf16.mxu0 0
    %2081 = vmatpush1.bf16.msra.mxu0 0
    %2082 = vmatprep.subr.bf16.mxu0 0
    %2083 = vmatpush1.bf16.msra.mxu0 0
    %2084 = vmatprep.subr.bf16.mxu0 0
    %2085 = vmatpush1.bf16.msra.mxu0 0
    %2086 = vmatprep.subr.bf16.mxu0 0
    %2087 = vmatpush1.bf16.msra.mxu0 %v1779
    %2088 = vmatprep.subr.bf16.mxu0 0
    %2089 = vmatpush1.bf16.msra.mxu0 %v1778
    %2090 = vmatprep.subr.bf16.mxu0 0
    %2091 = vmatpush2.bf16.msra.mxu0 0
    %2092 = vmatprep.subr.bf16.mxu0 0
    %2093 = vmatpush2.bf16.msra.mxu0 0
    %2094 = vmatprep.subr.bf16.mxu0 0
    %2095 = vmatpush2.bf16.msra.mxu0 0
    %2096 = vmatprep.subr.bf16.mxu0 0
    %2097 = vmatpush2.bf16.msra.mxu0 0
    %2098 = vmatprep.subr.bf16.mxu0 0
    %2099 = vmatpush2.bf16.msra.mxu0 0
    %2100 = vmatprep.subr.bf16.mxu0 0
    %2101 = vmatpush2.bf16.msra.mxu0 0
    %2102 = vmatprep.subr.bf16.mxu0 0
    %2103 = vmatpush2.bf16.msra.mxu0 0
    %2104 = vmatprep.subr.bf16.mxu0 0
    %2105 = vmatpush2.bf16.msra.mxu0 0
    %2106 = vmatprep.mubr.bf16.mxu0 0
    %2107 = vmatmul.mubr.bf16.gmra.mxu0 %v2072
    %v2108 = vpop.f32.mrf.mxu0
    %v2109 = vadd.f32 0.0, %v2108
    %v2110 = vpop.f32.mrf.mxu0
    %v2111 = vpop.f32.mrf.mxu0
    %v2112 = vpop.f32.mrf.mxu0
    %2113 = vdwg.mxu0
    %v2114 = vadd.f32 %v2066, %v2109
    %v2115 = vxor.u32 %v2114, 2147483648
    %v2116 = vmul.f32 %v2115, 1.442695
    %v2117 = vpow.pop %v2116
    %v2118 = vadd.f32 %v2117, 1.0
    %v2119 = vrcp.pop %v2118
    %v2120 = vmul.f32 1.0, %v2119
    %v2121 = vtanh.pop %v2114
    %v2122 = vmul.f32 %v2120, %v2059
    %2124 = vrot.lane.b32.xlu0 %v2121, 64
    %v2125 = vpop.permute.xlu0 %2124
    %v2127 = vmul.f32 %v2120, %v2125
    %2129 = vrot.lane.b32.xlu0 %v2127, 32
    %v2130 = vpop.permute.xlu0 %2129
    %v2132 = vadd.f32 %v2122, %v2130
    %v2133 = vtanh.pop %v2132
    %2135 = vrot.lane.b32.xlu0 %v2133, 64
    %v2136 = vpop.permute.xlu0 %2135
    %v2138 = vmul.f32 %v2120, %v2136
    %v2139 = vld [vmem:[%s1318] sm:$0xff]
    %v2140 = vpack.c.bf16 %v2138, %v2138
    %2142 = vrot.lane.b32.xlu0 %v2140, 32
    %v2143 = vpop.permute.xlu0 %2142
    %v2145 = vsel %vm855, %v2143, 0
    %2147 = vmatprep.subr.bf16.mxu0 0
    %2148 = vmatpush1.bf16.msra.mxu0 0
    %2149 = vmatprep.subr.bf16.mxu0 0
    %2150 = vmatpush1.bf16.msra.mxu0 0
    %2151 = vmatprep.subr.bf16.mxu0 0
    %2152 = vmatpush1.bf16.msra.mxu0 0
    %2153 = vmatprep.subr.bf16.mxu0 0
    %2154 = vmatpush1.bf16.msra.mxu0 0
    %2155 = vmatprep.subr.bf16.mxu0 0
    %2156 = vmatpush1.bf16.msra.mxu0 0
    %2157 = vmatprep.subr.bf16.mxu0 0
    %2158 = vmatpush1.bf16.msra.mxu0 0
    %2159 = vmatprep.subr.bf16.mxu0 0
    %2160 = vmatpush1.bf16.msra.mxu0 %v1779
    %2161 = vmatprep.subr.bf16.mxu0 0
    %2162 = vmatpush1.bf16.msra.mxu0 %v1778
    %2163 = vmatprep.subr.bf16.mxu0 0
    %2164 = vmatpush2.bf16.msra.mxu0 0
    %2165 = vmatprep.subr.bf16.mxu0 0
    %2166 = vmatpush2.bf16.msra.mxu0 0
    %2167 = vmatprep.subr.bf16.mxu0 0
    %2168 = vmatpush2.bf16.msra.mxu0 0
    %2169 = vmatprep.subr.bf16.mxu0 0
    %2170 = vmatpush2.bf16.msra.mxu0 0
    %2171 = vmatprep.subr.bf16.mxu0 0
    %2172 = vmatpush2.bf16.msra.mxu0 0
    %2173 = vmatprep.subr.bf16.mxu0 0
    %2174 = vmatpush2.bf16.msra.mxu0 0
    %2175 = vmatprep.subr.bf16.mxu0 0
    %2176 = vmatpush2.bf16.msra.mxu0 0
    %2177 = vmatprep.subr.bf16.mxu0 0
    %2178 = vmatpush2.bf16.msra.mxu0 0
    %2179 = vmatprep.mubr.bf16.mxu0 0
    %2180 = vmatmul.mubr.bf16.gmra.mxu0 %v2145
    %v2181 = vpop.f32.mrf.mxu0
    %v2182 = vadd.f32 0.0, %v2181
    %v2183 = vpop.f32.mrf.mxu0
    %v2184 = vpop.f32.mrf.mxu0
    %v2185 = vpop.f32.mrf.mxu0
    %2186 = vdwg.mxu0
    %v2187 = vadd.f32 %v2139, %v2182
    %v2188 = vxor.u32 %v2187, 2147483648
    %v2189 = vmul.f32 %v2188, 1.442695
    %v2190 = vpow.pop %v2189
    %v2191 = vadd.f32 %v2190, 1.0
    %v2192 = vrcp.pop %v2191
    %v2193 = vmul.f32 1.0, %v2192
    %v2194 = vtanh.pop %v2187
    %v2195 = vmul.f32 %v2193, %v2132
    %2197 = vrot.lane.b32.xlu0 %v2194, 64
    %v2198 = vpop.permute.xlu0 %2197
    %v2200 = vmul.f32 %v2193, %v2198
    %2202 = vrot.lane.b32.xlu0 %v2200, 32
    %v2203 = vpop.permute.xlu0 %2202
    %v2205 = vadd.f32 %v2195, %v2203
    %v2206 = vtanh.pop %v2205
    %2208 = vrot.lane.b32.xlu0 %v2206, 64
    %v2209 = vpop.permute.xlu0 %2208
    %v2211 = vmul.f32 %v2193, %v2209
    %v2212 = vld [vmem:[%s1415] sm:$0xff]
    %v2213 = vpack.c.bf16 %v2211, %v2211
    %2215 = vrot.lane.b32.xlu0 %v2213, 32
    %v2216 = vpop.permute.xlu0 %2215
    %v2218 = vsel %vm855, %v2216, 0
    %2220 = vmatprep.subr.bf16.mxu0 0
    %2221 = vmatpush1.bf16.msra.mxu0 0
    %2222 = vmatprep.subr.bf16.mxu0 0
    %2223 = vmatpush1.bf16.msra.mxu0 0
    %2224 = vmatprep.subr.bf16.mxu0 0
    %2225 = vmatpush1.bf16.msra.mxu0 0
    %2226 = vmatprep.subr.bf16.mxu0 0
    %2227 = vmatpush1.bf16.msra.mxu0 0
    %2228 = vmatprep.subr.bf16.mxu0 0
    %2229 = vmatpush1.bf16.msra.mxu0 0
    %2230 = vmatprep.subr.bf16.mxu0 0
    %2231 = vmatpush1.bf16.msra.mxu0 0
    %2232 = vmatprep.subr.bf16.mxu0 0
    %2233 = vmatpush1.bf16.msra.mxu0 %v1779
    %2234 = vmatprep.subr.bf16.mxu0 0
    %2235 = vmatpush1.bf16.msra.mxu0 %v1778
    %2236 = vmatprep.subr.bf16.mxu0 0
    %2237 = vmatpush2.bf16.msra.mxu0 0
    %2238 = vmatprep.subr.bf16.mxu0 0
    %2239 = vmatpush2.bf16.msra.mxu0 0
    %2240 = vmatprep.subr.bf16.mxu0 0
    %2241 = vmatpush2.bf16.msra.mxu0 0
    %2242 = vmatprep.subr.bf16.mxu0 0
    %2243 = vmatpush2.bf16.msra.mxu0 0
    %2244 = vmatprep.subr.bf16.mxu0 0
    %2245 = vmatpush2.bf16.msra.mxu0 0
    %2246 = vmatprep.subr.bf16.mxu0 0
    %2247 = vmatpush2.bf16.msra.mxu0 0
    %2248 = vmatprep.subr.bf16.mxu0 0
    %2249 = vmatpush2.bf16.msra.mxu0 0
    %2250 = vmatprep.subr.bf16.mxu0 0
    %2251 = vmatpush2.bf16.msra.mxu0 0
    %2252 = vmatprep.mubr.bf16.mxu0 0
    %2253 = vmatmul.mubr.bf16.gmra.mxu0 %v2218
    %v2254 = vpop.f32.mrf.mxu0
    %v2255 = vadd.f32 0.0, %v2254
    %v2256 = vpop.f32.mrf.mxu0
    %v2257 = vpop.f32.mrf.mxu0
    %v2258 = vpop.f32.mrf.mxu0
    %2259 = vdwg.mxu0
    %v2260 = vadd.f32 %v2212, %v2255
    %v2261 = vxor.u32 %v2260, 2147483648
    %v2262 = vmul.f32 %v2261, 1.442695
    %v2263 = vpow.pop %v2262
    %v2264 = vadd.f32 %v2263, 1.0
    %v2265 = vrcp.pop %v2264
    %v2266 = vmul.f32 1.0, %v2265
    %v2267 = vtanh.pop %v2260
    %v2268 = vmul.f32 %v2266, %v2205
    %2270 = vrot.lane.b32.xlu0 %v2267, 64
    %v2271 = vpop.permute.xlu0 %2270
    %v2273 = vmul.f32 %v2266, %v2271
    %2275 = vrot.lane.b32.xlu0 %v2273, 32
    %v2276 = vpop.permute.xlu0 %2275
    %v2278 = vadd.f32 %v2268, %v2276
    %v2279 = vtanh.pop %v2278
    %2281 = vrot.lane.b32.xlu0 %v2279, 64
    %v2282 = vpop.permute.xlu0 %2281
    %v2284 = vmul.f32 %v2266, %v2282
    %v2285 = vld [vmem:[%s1512] sm:$0xff]
    %v2286 = vpack.c.bf16 %v2284, %v2284
    %2288 = vrot.lane.b32.xlu0 %v2286, 32
    %v2289 = vpop.permute.xlu0 %2288
    %v2291 = vsel %vm855, %v2289, 0
    %2293 = vmatprep.subr.bf16.mxu0 0
    %2294 = vmatpush1.bf16.msra.mxu0 0
    %2295 = vmatprep.subr.bf16.mxu0 0
    %2296 = vmatpush1.bf16.msra.mxu0 0
    %2297 = vmatprep.subr.bf16.mxu0 0
    %2298 = vmatpush1.bf16.msra.mxu0 0
    %2299 = vmatprep.subr.bf16.mxu0 0
    %2300 = vmatpush1.bf16.msra.mxu0 0
    %2301 = vmatprep.subr.bf16.mxu0 0
    %2302 = vmatpush1.bf16.msra.mxu0 0
    %2303 = vmatprep.subr.bf16.mxu0 0
    %2304 = vmatpush1.bf16.msra.mxu0 0
    %2305 = vmatprep.subr.bf16.mxu0 0
    %2306 = vmatpush1.bf16.msra.mxu0 %v1779
    %2307 = vmatprep.subr.bf16.mxu0 0
    %2308 = vmatpush1.bf16.msra.mxu0 %v1778
    %2309 = vmatprep.subr.bf16.mxu0 0
    %2310 = vmatpush2.bf16.msra.mxu0 0
    %2311 = vmatprep.subr.bf16.mxu0 0
    %2312 = vmatpush2.bf16.msra.mxu0 0
    %2313 = vmatprep.subr.bf16.mxu0 0
    %2314 = vmatpush2.bf16.msra.mxu0 0
    %2315 = vmatprep.subr.bf16.mxu0 0
    %2316 = vmatpush2.bf16.msra.mxu0 0
    %2317 = vmatprep.subr.bf16.mxu0 0
    %2318 = vmatpush2.bf16.msra.mxu0 0
    %2319 = vmatprep.subr.bf16.mxu0 0
    %2320 = vmatpush2.bf16.msra.mxu0 0
    %2321 = vmatprep.subr.bf16.mxu0 0
    %2322 = vmatpush2.bf16.msra.mxu0 0
    %2323 = vmatprep.subr.bf16.mxu0 0
    %2324 = vmatpush2.bf16.msra.mxu0 0
    %2325 = vmatprep.mubr.bf16.mxu0 0
    %2326 = vmatmul.mubr.bf16.gmra.mxu0 %v2291
    %v2327 = vpop.f32.mrf.mxu0
    %v2328 = vadd.f32 0.0, %v2327
    %v2329 = vpop.f32.mrf.mxu0
    %v2330 = vpop.f32.mrf.mxu0
    %v2331 = vpop.f32.mrf.mxu0
    %2332 = vdwg.mxu0
    %v2333 = vadd.f32 %v2285, %v2328
    %v2334 = vxor.u32 %v2333, 2147483648
    %v2335 = vmul.f32 %v2334, 1.442695
    %v2336 = vpow.pop %v2335
    %v2337 = vadd.f32 %v2336, 1.0
    %v2338 = vrcp.pop %v2337
    %v2339 = vmul.f32 1.0, %v2338
    %v2340 = vtanh.pop %v2333
    %v2341 = vmul.f32 %v2339, %v2278
    %2343 = vrot.lane.b32.xlu0 %v2340, 64
    %v2344 = vpop.permute.xlu0 %2343
    %v2346 = vmul.f32 %v2339, %v2344
    %2348 = vrot.lane.b32.xlu0 %v2346, 32
    %v2349 = vpop.permute.xlu0 %2348
    %v2351 = vadd.f32 %v2341, %v2349
    %v2352 = vtanh.pop %v2351
    %2354 = vrot.lane.b32.xlu0 %v2352, 64
    %v2355 = vpop.permute.xlu0 %2354
    %v2357 = vmul.f32 %v2339, %v2355
    %v2358 = vld [vmem:[%s7] sm:$0xff]
    %v2359 = vld [vmem:[%s7 + $0x8] sm:$0xff]
    %v2360 = vld [vmem:[%s7 + $0x10] sm:$0xff]
    %v2361 = vld [vmem:[%s7 + $0x18] sm:$0xff]
    %v2362 = vld [vmem:[%s8] sm:$0x1]
    %v2364 = vlaneseq
    %v2365 = vshrl.u32 %v2364, 7
    %v2366 = vsub.s32 0, %v2365
    %v2367 = vrot.slane %v2362, %v2366
    %2370 = vrot.lane.b32.xlu0 %v2357, 32
    %v2371 = vpop.permute.xlu0 %2370
    %v2372 = vsel %vm855, %v2371, 0
    %2374 = vmatprep.subr.mxu0 0.0
    %2375 = vmatpush1.msra.mxu0 0.0
    %2376 = vmatprep.subr.mxu0 0.0
    %2377 = vmatpush1.msra.mxu0 0.0
    %2378 = vmatprep.subr.mxu0 0.0
    %2379 = vmatpush1.msra.mxu0 0.0
    %2380 = vmatprep.subr.mxu0 0.0
    %2381 = vmatpush1.msra.mxu0 0.0
    %2382 = vmatprep.subr.mxu0 0.0
    %2383 = vmatpush1.msra.mxu0 0.0
    %2384 = vmatprep.subr.mxu0 0.0
    %2385 = vmatpush1.msra.mxu0 0.0
    %2386 = vmatprep.subr.mxu0 0.0
    %2387 = vmatpush1.msra.mxu0 0.0
    %2388 = vmatprep.subr.mxu0 0.0
    %2389 = vmatpush1.msra.mxu0 0.0
    %2390 = vmatprep.subr.mxu0 0.0
    %2391 = vmatpush1.msra.mxu0 0.0
    %2392 = vmatprep.subr.mxu0 0.0
    %2393 = vmatpush1.msra.mxu0 0.0
    %2394 = vmatprep.subr.mxu0 0.0
    %2395 = vmatpush1.msra.mxu0 0.0
    %2396 = vmatprep.subr.mxu0 0.0
    %2397 = vmatpush1.msra.mxu0 0.0
    %2398 = vmatprep.subr.mxu0 0.0
    %2399 = vmatpush1.msra.mxu0 %v2361
    %2400 = vmatprep.subr.mxu0 0.0
    %2401 = vmatpush1.msra.mxu0 %v2360
    %2402 = vmatprep.subr.mxu0 0.0
    %2403 = vmatpush1.msra.mxu0 %v2359
    %2404 = vmatprep.subr.mxu0 0.0
    %2405 = vmatpush1.msra.mxu0 %v2358
    %2406 = vmatprep.subr.mxu0 0.0
    %2407 = vmatpush2.msra.mxu0 0.0
    %2408 = vmatprep.subr.mxu0 0.0
    %2409 = vmatpush2.msra.mxu0 0.0
    %2410 = vmatprep.subr.mxu0 0.0
    %2411 = vmatpush2.msra.mxu0 0.0
    %2412 = vmatprep.subr.mxu0 0.0
    %2413 = vmatpush2.msra.mxu0 0.0
    %2414 = vmatprep.subr.mxu0 0.0
    %2415 = vmatpush2.msra.mxu0 0.0
    %2416 = vmatprep.subr.mxu0 0.0
    %2417 = vmatpush2.msra.mxu0 0.0
    %2418 = vmatprep.subr.mxu0 0.0
    %2419 = vmatpush2.msra.mxu0 0.0
    %2420 = vmatprep.subr.mxu0 0.0
    %2421 = vmatpush2.msra.mxu0 0.0
    %2422 = vmatprep.subr.mxu0 0.0
    %2423 = vmatpush2.msra.mxu0 0.0
    %2424 = vmatprep.subr.mxu0 0.0
    %2425 = vmatpush2.msra.mxu0 0.0
    %2426 = vmatprep.subr.mxu0 0.0
    %2427 = vmatpush2.msra.mxu0 0.0
    %2428 = vmatprep.subr.mxu0 0.0
    %2429 = vmatpush2.msra.mxu0 0.0
    %2430 = vmatprep.subr.mxu0 0.0
    %2431 = vmatpush2.msra.mxu0 0.0
    %2432 = vmatprep.subr.mxu0 0.0
    %2433 = vmatpush2.msra.mxu0 0.0
    %2434 = vmatprep.subr.mxu0 0.0
    %2435 = vmatpush2.msra.mxu0 0.0
    %2436 = vmatprep.subr.mxu0 0.0
    %2437 = vmatpush2.msra.mxu0 0.0
    %2438 = vmatprep.mubr.f32.mxu0 0.0
    %2439 = vmatmul.mubr.f32.gmra.mxu0 %v2372
    %v2440 = vpop.f32.mrf.mxu0
    %v2441 = vadd.f32 %v2367, %v2440
    %v2442 = vpop.f32.mrf.mxu0
    %2443 = vdwg.mxu0
    %2444 = vst [vmem:[#allocation9] sm:$0xff] %v2441
    // Predicated region
    $region46: #{tpu_custom_call.1} parent=1 // pred_check
      _
    $region47: #{tpu_custom_call.1} parent=1 // pred_check_branch
      %2446 = sbr.rel (0) target = $region49
    $region48: #{tpu_custom_call.1} parent=1 // pred_region
      %s2448 = ssub.s32 128, 128
      %2449 = vsyncadd [#allocation6], %s2448
      %s2451 = sshll.u32 [#allocation9], 4
      %s2452 = int_to_ptr.vmem [resolvable:$true] %s2451
      %2454 = dma.vmem_to_hbm [thread:$0]  %s2452, 128, %s9, [#allocation6]
    $region49: #{tpu_custom_call.1} parent=1 // pred_fallthru
      _
    // Predicated region
    $region50: #{tpu_custom_call.1} parent=1 // pred_check
      _
    $region51: #{tpu_custom_call.1} parent=1 // pred_check_branch
      %2456 = sbr.rel (0) target = $region53
    $region52: #{tpu_custom_call.1} parent=1 // pred_region
      %2457 = dma.done [#allocation6], 128
    $region53: #{tpu_custom_call.1} parent=1 // pred_fallthru
      _
    %2458 = vsyncpa [#allocation5], 1
    %2459 = vsyncpa [#allocation8], 1
    %2460 = vsyncpa [#allocation6], 1

</llo_original>
